<compile_context>
chip_gen: v5e
topology: v5e:2x2
jax: 0.10.0
libtpu: 0.0.40
codegen_flags: <defaults>
</compile_context>

<pallas_src>
import functools
import math

import jax
import jax.numpy as jnp
from jax import lax
from jax.experimental import pallas as pl
from jax.experimental.pallas import tpu as pltpu


# ---------------------------------------------------------------------------
# generation-aware limits & tiling helpers
# ---------------------------------------------------------------------------

def _round_up(x, m):
    return ((x + m - 1) // m) * m


@functools.lru_cache(maxsize=1)
def _tpu_limits():
    """Returns (max vmem_limit_bytes, two-TensorCores-per-chip heuristic).

    v5e/v6e: 128 MiB VMEM per TC, 1 TC/chip.  v7x: 64 MiB per TC, 2 TC/chip.
    ~15% headroom is left for Mosaic internal scratch / compiler temps.
    """
    cap = None
    try:
        info = pltpu.get_tpu_info()
        cap = int(getattr(info, "vmem_capacity_bytes"))
    except Exception:
        cap = None
    if not cap or cap <= 0:
        return 56 * 2 ** 20, True          # unknown chip: stay v7x-safe
    two_tc = cap <= 80 * 2 ** 20           # 64 MiB VMEM <=> v7x (2 TCs/chip)
    return int(cap * 0.85), two_tc


def _compiler_params(semantics, vmem_bytes):
    max_cap, _ = _tpu_limits()
    limit = int(min(max(2 * int(vmem_bytes) + (4 << 20), 16 << 20), max_cap))
    return pltpu.CompilerParams(dimension_semantics=semantics,
                                vmem_limit_bytes=limit)


def _row_tile(m, target):
    """Row tile: multiple of 16 (bf16 native sublane tile), capped by the
    padded row count and `target`; split once only on 2-TC chips (v7x
    megacore) when there is enough work for two tiles."""
    _, two_tc = _tpu_limits()
    tm = _round_up(min(target, _round_up(m, 16)), 16)
    if two_tc and m > 2 * 16 and _round_up(m, tm) // tm < 2:
        tm = _round_up((tm + 1) // 2, 16)
    return max(tm, 16)


def _col_tile(d_out, d_in, wsz, n_mats):
    """Output-column tile: full d_out when small, otherwise the largest
    128-multiple keeping the double-buffered weight strips inside a VMEM
    budget (v7x-aware); pads d_out when no exact divisor exists."""
    max_cap, _ = _tpu_limits()
    budget = max_cap // 3
    per_col = max(2 * n_mats * d_in * wsz, 1)
    cap = min(2048, max(128, (budget // per_col) // 128 * 128))
    if d_out <= cap:
        return d_out, d_out
    for t in range(cap, 127, -128):
        if d_out % t == 0:
            return t, d_out
    return cap, _round_up(d_out, cap)


def _pad_rows(a, rows):
    return a if a.shape[0] == rows else jnp.pad(a, ((0, rows - a.shape[0]), (0, 0)))


def _pad_cols(a, cols):
    return a if a.shape[1] == cols else jnp.pad(a, ((0, 0), (0, cols - a.shape[1])))


# ---------------------------------------------------------------------------
# fused (LayerNorm?) -> x @ W_p + b_p (+ residual) kernel
# ---------------------------------------------------------------------------

def _make_proj_kernel(n_mats, has_ln, has_res, eps):
    def kernel(*refs):
        i = 0
        x_ref = refs[i]; i += 1
        if has_ln:
            g_ref, beta_ref = refs[i], refs[i + 1]; i += 2
        w_refs = refs[i:i + n_mats]; i += n_mats
        b_refs = refs[i:i + n_mats]; i += n_mats
        if has_res:
            res_ref = refs[i]; i += 1
        o_refs = refs[i:i + n_mats]

        if has_ln:
            # LayerNorm prologue in f32 (PyTorch semantics: unbiased std,
            # eps added to the std).
            x = x_ref[...].astype(jnp.float32)
            d = x.shape[-1]
            mean = jnp.mean(x, axis=-1, keepdims=True)
            xc = x - mean
            std = jnp.sqrt(jnp.sum(xc * xc, axis=-1, keepdims=True) / (d - 1))
            h32 = (g_ref[...].astype(jnp.float32) * (xc * (1.0 / (std + eps)))
                   + beta_ref[...].astype(jnp.float32))
            h = h32.astype(w_refs[0].dtype)      # MXU in the storage dtype
        else:
            h = x_ref[...]

        for p in range(n_mats):
            y = jnp.dot(h, w_refs[p][...], preferred_element_type=jnp.float32)
            y = y + b_refs[p][...].astype(jnp.float32)
            if has_res and p == 0:
                y = y + res_ref[...].astype(jnp.float32)
            o_refs[p][...] = y.astype(o_refs[p].dtype)
    return kernel


def fused_proj(x2d, ws, bs, *, gamma=None, beta=None, residual=None,
               eps=1e-6, tm_target=256):
    """y_p = (LN(x) if gamma is given else x) @ ws[p] + bs[p], optionally
    + residual (single-output case).  One pallas_call: x is read from HBM
    once for all projections, LN is a kernel prologue and the residual add a
    kernel epilogue (no extra activation round-trips through HBM)."""
    m, d_in = x2d.shape
    d_out = ws[0].shape[1]
    n_mats = len(ws)
    has_ln = gamma is not None
    has_res = residual is not None
    assert all(w.shape == (d_in, d_out) for w in ws)
    assert not (has_res and n_mats != 1)

    tm = _row_tile(m, tm_target)
    m_pad = _round_up(m, tm)
    wsz = jnp.dtype(ws[0].dtype).itemsize
    tn, n_pad = _col_tile(d_out, d_in, wsz, n_mats)

    isz = jnp.dtype(x2d.dtype).itemsize
    vmem = (2 * tm * d_in * isz + 4 * d_in * 4
            + n_mats * 2 * (d_in + 1) * tn * wsz
            + n_mats * 2 * tm * tn * isz
            + (2 * tm * tn * isz if has_res else 0)
            + tm * (d_in + tn) * 4)              # f32 intermediates (LN, acc)

    x_p = _pad_rows(x2d, m_pad)
    in_specs = [pl.BlockSpec((tm, d_in), lambda i, j: (i, 0))]
    args = [x_p]
    if has_ln:
        in_specs += [pl.BlockSpec((1, d_in), lambda i, j: (0, 0))] * 2
        args += [gamma.reshape(1, d_in), beta.reshape(1, d_in)]
    for w in ws:
        in_specs.append(pl.BlockSpec((d_in, tn), lambda i, j: (0, j)))
        args.append(_pad_cols(w, n_pad))
    for b in bs:
        in_specs.append(pl.BlockSpec((1, tn), lambda i, j: (0, j)))
        args.append(_pad_cols(b.reshape(1, d_out), n_pad))
    if has_res:
        in_specs.append(pl.BlockSpec((tm, tn), lambda i, j: (i, j)))
        args.append(_pad_cols(_pad_rows(residual, m_pad), n_pad))

    out_shape = tuple(jax.ShapeDtypeStruct((m_pad, n_pad), x2d.dtype)
                      for _ in range(n_mats))
    out_specs = tuple(pl.BlockSpec((tm, tn), lambda i, j: (i, j))
                      for _ in range(n_mats))

    outs = pl.pallas_call(
        _make_proj_kernel(n_mats, has_ln, has_res, eps),
        out_shape=out_shape,
        grid_spec=pltpu.PrefetchScalarGridSpec(
            num_scalar_prefetch=0,
            grid=(m_pad // tm, n_pad // tn),
            in_specs=in_specs,
            out_specs=out_specs,
        ),
        compiler_params=_compiler_params(("parallel", "parallel"), vmem),
    )(*args)
    if not isinstance(outs, (tuple, list)):
        outs = (outs,)
    return tuple(o[:m, :d_out] for o in outs)


# ---------------------------------------------------------------------------
# attention core: softmax(Q K^T / sqrt(dk), masked) V, head-group blocked
# ---------------------------------------------------------------------------

def _heads_per_block(n_heads, dk, max_lane=512):
    hb = n_heads
    # Shrink only while the lane axis of the Q/K/V blocks stays a multiple
    # of 128 (lane-dense DMAs) and above the VMEM-friendly cap.
    while hb % 2 == 0 and hb * dk > max_lane and ((hb // 2) * dk) % 128 == 0:
        hb //= 2
    return hb


def _make_attn_kernel(hb, dk, scale, mask_mode):
    def kernel(q_ref, k_ref, v_ref, *rest):
        if mask_mode == "none":
            (o_ref,) = rest
            drop = None
        else:
            m_ref, o_ref = rest
            drop = m_ref[...].astype(jnp.int32) == 0     # (Sq,Sk) or (1,Sk)
        for j in range(hb):
            sl = pl.ds(j * dk, dk)
            qj = q_ref[:, sl]
            kj = k_ref[:, sl]
            vj = v_ref[:, sl]
            # Q K^T with both operands in native (storage-dtype) layout:
            # contract the last dims instead of materializing k.T.
            s = lax.dot_general(qj, kj, (((1,), (1,)), ((), ())),
                                preferred_element_type=jnp.float32) * scale
            if drop is not None:
                s = jnp.where(drop, jnp.float32(-1e9), s)
            s = s - jnp.max(s, axis=-1, keepdims=True)
            p = jnp.exp(s)
            den = jnp.sum(p, axis=-1, keepdims=True)
            r = pl.reciprocal(den, approx=True)          # EUP slot
            r = r * (2.0 - den * r)                      # one Newton step
            p = p * r
            o = jnp.dot(p.astype(vj.dtype), vj,
                        preferred_element_type=jnp.float32)
            o_ref[:, sl] = o.astype(o_ref.dtype)
    return kernel


def _attn_core(q, k, v, mask_mode, mask, n_heads):
    """q: (B, Sq, H*dk); k, v: (B, Sk, H*dk); mask int8 (B,Sq,Sk) or (B,1,Sk)."""
    B, Sq, D = q.shape
    Sk = k.shape[1]
    dk = D // n_heads
    hb = _heads_per_block(n_heads, dk)
    n_grp = n_heads // hb
    scale = 1.0 / math.sqrt(dk)

    # TODO(synk): flash-style Sk tiling with online softmax for long sequences
    # (here the f32 (Sq, Sk) score block must fit in VMEM per head).
    in_specs = [
        pl.BlockSpec((None, Sq, hb * dk), lambda b, g: (b, 0, g)),
        pl.BlockSpec((None, Sk, hb * dk), lambda b, g: (b, 0, g)),
        pl.BlockSpec((None, Sk, hb * dk), lambda b, g: (b, 0, g)),
    ]
    args = [q, k, v]
    if mask_mode == "full":
        in_specs.append(pl.BlockSpec((None, Sq, Sk), lambda b, g: (b, 0, 0)))
        args.append(mask)
    elif mask_mode == "kv":
        in_specs.append(pl.BlockSpec((None, 1, Sk), lambda b, g: (b, 0, 0)))
        args.append(mask)

    isz = jnp.dtype(q.dtype).itemsize
    vmem = (2 * (Sq + 2 * Sk) * hb * dk * isz      # q, k, v blocks
            + 2 * Sq * hb * dk * isz               # out block
            + 2 * Sq * Sk                          # int8 mask
            + 3 * Sq * Sk * 4 + Sq * dk * 4)       # f32 scores / probs

    return pl.pallas_call(
        _make_attn_kernel(hb, dk, scale, mask_mode),
        out_shape=jax.ShapeDtypeStruct((B, Sq, D), q.dtype),
        grid_spec=pltpu.PrefetchScalarGridSpec(
            num_scalar_prefetch=0,
            grid=(B, n_grp),
            in_specs=in_specs,
            out_specs=pl.BlockSpec((None, Sq, hb * dk), lambda b, g: (b, 0, g)),
        ),
        compiler_params=_compiler_params(("parallel", "parallel"), vmem),
    )(*args)


def _prep_mask(mask, B, Sq, Sk):
    """Compact int8 mask: (B,1,Sk) key-validity when the mask is constant
    over queries, else (B,Sq,Sk).  Shared across heads inside the kernel, so
    no (B,1,Sq,Sk) f32 broadcast is ever materialized."""
    m = jnp.asarray(mask)
    if m.ndim == 4:
        m = m[:, 0]   # head dim; the reference broadcasts the mask over heads
    elif m.ndim == 2:
        m = m[None]
    if m.shape[-2] == 1:
        return "kv", jnp.broadcast_to(m, (B, 1, Sk)).astype(jnp.int8)
    # TODO(synk): generate purely-causal masks in-kernel with broadcasted_iota
    # instead of materializing (B, Sq, Sk) int8.
    return "full", jnp.broadcast_to(m, (B, Sq, Sk)).astype(jnp.int8)


# ---------------------------------------------------------------------------
# position-wise feed-forward: x + w2(relu(w1(LN(x)) + b1)) + b2, d_ff tiled
# ---------------------------------------------------------------------------

def _ffn_kernel(x_ref, g_ref, beta_ref, w1_ref, b1_ref, w2_ref, b2_ref, o_ref,
                h_scr, acc_scr, *, eps):
    kk = pl.program_id(1)

    @pl.when(kk == 0)
    def _():
        # LayerNorm prologue (f32), cached in VMEM and reused for every d_ff
        # tile; x stays resident across the d_ff axis (block index (i, 0)).
        x = x_ref[...].astype(jnp.float32)
        d = x.shape[-1]
        mean = jnp.mean(x, axis=-1, keepdims=True)
        xc = x - mean
        std = jnp.sqrt(jnp.sum(xc * xc, axis=-1, keepdims=True) / (d - 1))
        h = (g_ref[...].astype(jnp.float32) * (xc * (1.0 / (std + eps)))
             + beta_ref[...].astype(jnp.float32))
        h_scr[...] = h.astype(h_scr.dtype)
        acc_scr[...] = jnp.zeros_like(acc_scr)

    # MXU in the weight storage dtype (bf16 weights -> bf16 matmul), f32 acc.
    t = jnp.dot(h_scr[...], w1_ref[...], preferred_element_type=jnp.float32)
    t = jnp.maximum(t + b1_ref[...].astype(jnp.float32), 0.0)
    # Dropout (eval mode) == identity.
    # TODO(synk): training-mode dropout (pltpu.prng_seed + stateful_bernoulli).
    acc_scr[...] += jnp.dot(t.astype(w2_ref.dtype), w2_ref[...],
                            preferred_element_type=jnp.float32)

    @pl.when(kk == pl.num_programs(1) - 1)
    def _():
        o_ref[...] = (acc_scr[...] + b2_ref[...].astype(jnp.float32)
                      + x_ref[...].astype(jnp.float32)).astype(o_ref.dtype)


def _ff_tile(d_ff, d_model, wsz):
    max_cap, _ = _tpu_limits()
    budget = max_cap // 3
    per_col = max(4 * d_model * wsz, 1)      # double-buffered w1 col + w2 row
    cap = min(2048, max(128, (budget // per_col) // 128 * 128))
    if d_ff <= cap:
        return d_ff, d_ff
    for t in range(cap, 127, -128):
        if d_ff % t == 0:
            return t, d_ff
    # Pad d_ff: zero w1 columns / b1 entries give relu(0)=0 rows that add 0.
    return cap, _round_up(d_ff, cap)


def positionwise_feed_forward(x2d, gamma, beta, w1, b1, w2, b2, *, eps=1e-6,
                              tm_target=512):
    """x + w2 @ relu(w1 @ LN(x) + b1) + b2 in one pallas_call: LN prologue,
    residual epilogue, tiled over d_ff with an f32 VMEM accumulator so only
    weight tiles are double-buffered (bounded VMEM on v7x)."""
    m, d_model = x2d.shape
    d_ff = w1.shape[1]

    tm = _row_tile(m, tm_target)
    m_pad = _round_up(m, tm)
    wsz = jnp.dtype(w1.dtype).itemsize
    tf, d_ff_pad = _ff_tile(d_ff, d_model, wsz)

    x_p = _pad_rows(x2d, m_pad)
    w1_p = _pad_cols(w1, d_ff_pad)
    b1_p = _pad_cols(b1.reshape(1, d_ff), d_ff_pad)
    w2_p = _pad_rows(w2, d_ff_pad)

    isz = jnp.dtype(x2d.dtype).itemsize
    vmem = (2 * tm * d_model * isz + 4 * d_model * 4
            + 2 * d_model * tf * wsz + 2 * tf * wsz
            + 2 * tf * d_model * wsz + 2 * d_model * wsz
            + 2 * tm * d_model * isz
            + tm * d_model * (4 + wsz)          # acc + h scratch
            + 2 * tm * tf * 4)                  # f32 ReLU intermediate

    out = pl.pallas_call(
        functools.partial(_ffn_kernel, eps=eps),
        out_shape=jax.ShapeDtypeStruct((m_pad, d_model), x2d.dtype),
        grid_spec=pltpu.PrefetchScalarGridSpec(
            num_scalar_prefetch=0,
            grid=(m_pad // tm, d_ff_pad // tf),
            in_specs=[
                pl.BlockSpec((tm, d_model), lambda i, k: (i, 0)),   # x rows
                pl.BlockSpec((1, d_model), lambda i, k: (0, 0)),    # ln gamma
                pl.BlockSpec((1, d_model), lambda i, k: (0, 0)),    # ln beta
                pl.BlockSpec((d_model, tf), lambda i, k: (0, k)),   # w1 tile
                pl.BlockSpec((1, tf), lambda i, k: (0, k)),         # b1 tile
                pl.BlockSpec((tf, d_model), lambda i, k: (k, 0)),   # w2 tile
                pl.BlockSpec((1, d_model), lambda i, k: (0, 0)),    # b2
            ],
            out_specs=pl.BlockSpec((tm, d_model), lambda i, k: (i, 0)),
            scratch_shapes=[pltpu.VMEM((tm, d_model), w1.dtype),
                            pltpu.VMEM((tm, d_model), jnp.float32)],
        ),
        compiler_params=_compiler_params(("parallel", "arbitrary"), vmem),
    )(x_p, gamma.reshape(1, d_model), beta.reshape(1, d_model),
      w1_p, b1_p, w2_p, b2.reshape(1, d_model))
    return out[:m]


# ---------------------------------------------------------------------------
# Full DecoderLayer forward (pre-LN residual sublayers, eval-mode dropout)
# ---------------------------------------------------------------------------

@functools.partial(jax.jit, static_argnames=("n_heads",))
def decoder_layer_forward(params, x, memory, src_mask, tgt_mask, *, n_heads):
    B, St, D = x.shape
    Ss = memory.shape[1]
    x2 = x.reshape(B * St, D)
    mem2 = memory.reshape(B * Ss, D)

    # --- sublayer 0: masked self-attention -----------------------------
    p = params["self_attn"]
    q, k, v = fused_proj(x2, [p["wq"], p["wk"], p["wv"]],
                         [p["bq"], p["bk"], p["bv"]],
                         gamma=params["ln0_g"], beta=params["ln0_b"])
    mode, m8 = _prep_mask(tgt_mask, B, St, St)
    ctx = _attn_core(q.reshape(B, St, D), k.reshape(B, St, D),
                     v.reshape(B, St, D), mode, m8, n_heads)
    (x2,) = fused_proj(ctx.reshape(B * St, D), [p["wo"]], [p["bo"]],
                       residual=x2)

    # --- sublayer 1: source attention (LN applies to x only) -----------
    p = params["src_attn"]
    (q,) = fused_proj(x2, [p["wq"]], [p["bq"]],
                      gamma=params["ln1_g"], beta=params["ln1_b"])
    k, v = fused_proj(mem2, [p["wk"], p["wv"]], [p["bk"], p["bv"]])
    mode, m8 = _prep_mask(src_mask, B, St, Ss)
    ctx = _attn_core(q.reshape(B, St, D), k.reshape(B, Ss, D),
                     v.reshape(B, Ss, D), mode, m8, n_heads)
    (x2,) = fused_proj(ctx.reshape(B * St, D), [p["wo"]], [p["bo"]],
                       residual=x2)

    # --- sublayer 2: position-wise feed-forward -------------------------
    x2 = positionwise_feed_forward(x2, params["ln2_g"], params["ln2_b"],
                                   params["ffn_w1"], params["ffn_b1"],
                                   params["ffn_w2"], params["ffn_b2"])
    return x2.reshape(B, St, D)


# ---------------------------------------------------------------------------
# Pure-JAX reference (mirrors the PyTorch module in eval mode)
# ---------------------------------------------------------------------------

def _layernorm_ref(x, g, b, eps=1e-6):
    mean = jnp.mean(x, axis=-1, keepdims=True)
    std = jnp.std(x, axis=-1, keepdims=True, ddof=1)
    return g * (x - mean) / (std + eps) + b


def _mha_ref(q_in, k_in, v_in, mask, p, n_heads):
    B, Sq, D = q_in.shape
    Sk = k_in.shape[1]
    dk = D // n_heads

    def proj(t, s, w, b):
        return ((t.reshape(B * s, D) @ w + b)
                .reshape(B, s, n_heads, dk).transpose(0, 2, 1, 3))

    q = proj(q_in, Sq, p["wq"], p["bq"])
    k = proj(k_in, Sk, p["wk"], p["bk"])
    v = proj(v_in, Sk, p["wv"], p["bv"])
    scores = jnp.einsum("bhqd,bhkd->bhqk", q, k) / math.sqrt(dk)
    scores = jnp.where(mask == 0, -1e9, scores)
    attn = jax.nn.softmax(scores, axis=-1)
    ctx = jnp.einsum("bhqk,bhkd->bhqd", attn, v)
    ctx = ctx.transpose(0, 2, 1, 3).reshape(B * Sq, D)
    return (ctx @ p["wo"] + p["bo"]).reshape(B, Sq, D)


def _ffn_ref(x, w1, b1, w2, b2):
    return jnp.maximum(x @ w1 + b1, 0.0) @ w2 + b2


def _decoder_ref(params, x, memory, src_mask, tgt_mask, n_heads):
    h = _layernorm_ref(x, params["ln0_g"], params["ln0_b"])
    x = x + _mha_ref(h, h, h, tgt_mask, params["self_attn"], n_heads)
    h = _layernorm_ref(x, params["ln1_g"], params["ln1_b"])
    x = x + _mha_ref(h, memory, memory, src_mask, params["src_attn"], n_heads)
    h = _layernorm_ref(x, params["ln2_g"], params["ln2_b"])
    return x + _ffn_ref(h, params["ffn_w1"], params["ffn_b1"],
                        params["ffn_w2"], params["ffn_b2"])


# ---------------------------------------------------------------------------
# main
# ---------------------------------------------------------------------------

if __name__ == "__main__":
    B, S_tgt, S_src = 2, 8, 16
    d_model, n_heads, d_ff = 32, 4, 64

    key = jax.random.PRNGKey(0)
    keys = jax.random.split(key, 24)
    kit = iter(keys)

    def linear_init(kw, kb, fan_in, fan_out):
        bound = 1.0 / math.sqrt(fan_in)
        w = jax.random.uniform(kw, (fan_in, fan_out), jnp.float32, -bound, bound)
        b = jax.random.uniform(kb, (fan_out,), jnp.float32, -bound, bound)
        return w, b

    def attn_params():
        p = {}
        for name in ("q", "k", "v", "o"):
            w, b = linear_init(next(kit), next(kit), d_model, d_model)
            p["w" + name] = w
            p["b" + name] = b
        return p

    params = {
        "ln0_g": jnp.ones((d_model,), jnp.float32),
        "ln0_b": jnp.zeros((d_model,), jnp.float32),
        "ln1_g": jnp.ones((d_model,), jnp.float32),
        "ln1_b": jnp.zeros((d_model,), jnp.float32),
        "ln2_g": jnp.ones((d_model,), jnp.float32),
        "ln2_b": jnp.zeros((d_model,), jnp.float32),
        "self_attn": attn_params(),
        "src_attn": attn_params(),
    }
    w1, b1 = linear_init(next(kit), next(kit), d_model, d_ff)
    w2, b2 = linear_init(next(kit), next(kit), d_ff, d_model)
    params["ffn_w1"], params["ffn_b1"] = w1, b1
    params["ffn_w2"], params["ffn_b2"] = w2, b2

    x = jax.random.normal(next(kit), (B, S_tgt, d_model), jnp.float32)
    memory = jax.random.normal(next(kit), (B, S_src, d_model), jnp.float32)

    # PyTorch-style masks (1 = attend, 0 = masked).
    tgt_mask = jnp.tril(jnp.ones((S_tgt, S_tgt), jnp.float32))[None, None]   # (1,1,St,St)
    src_valid = jnp.array([[1.0] * S_src,
                           [1.0] * (S_src - 3) + [0.0] * 3], jnp.float32)
    src_mask = src_valid[:, None, None, :]                                   # (B,1,1,Ss)

    y = decoder_layer_forward(params, x, memory, src_mask, tgt_mask,
                              n_heads=n_heads)
    y = jax.block_until_ready(y)

    y_ref = _decoder_ref(params, x, memory, src_mask, tgt_mask, n_heads)
    assert y.shape == (B, S_tgt, d_model)
    assert bool(jnp.all(jnp.isfinite(y)))
    assert jnp.allclose(y, y_ref, atol=2e-3, rtol=2e-3), \
        "decoder layer mismatch vs reference"

    # bf16 end-to-end smoke test: bf16 activations/weights on the MXU with
    # f32 accumulation inside every kernel (LN/softmax stay in f32).
    to_bf16 = lambda t: jax.tree_util.tree_map(
        lambda a: a.astype(jnp.bfloat16) if a.dtype == jnp.float32 else a, t)
    y_bf = decoder_layer_forward(to_bf16(params), x.astype(jnp.bfloat16),
                                 memory.astype(jnp.bfloat16),
                                 src_mask, tgt_mask, n_heads=n_heads)
    y_bf = jax.block_until_ready(y_bf).astype(jnp.float32)
    assert bool(jnp.all(jnp.isfinite(y_bf)))
    assert jnp.allclose(y_bf, y_ref, atol=1e-1, rtol=1e-1), \
        "bf16 decoder layer mismatch vs reference"

    print("KERNEL_OK")
</pallas_src>

<mosaic_0001>
module attributes {stable_mosaic.version = 11 : i64} {
  func.func @kernel(%arg0: i32, %arg1: i32, %arg2: memref<1x8x32xf32, #tpu.memory_space<vmem>>, %arg3: memref<1x8x32xf32, #tpu.memory_space<vmem>>, %arg4: memref<1x8x32xf32, #tpu.memory_space<vmem>>, %arg5: memref<1x8x8xi8, #tpu.memory_space<vmem>>, %arg6: memref<1x8x32xf32, #tpu.memory_space<vmem>>) attributes {dimension_semantics = [#tpu.dimension_semantics<parallel>, #tpu.dimension_semantics<parallel>], iteration_bounds = array<i64: 2, 1>, scalar_prefetch = 0 : i64, scratch_operands = 0 : i64, tpu.core_type = #tpu.core_type<tc>, window_params = [{transform_indices = @transform_0, window_bounds = array<i64: 1, 8, 32>}, {transform_indices = @transform_1, window_bounds = array<i64: 1, 8, 32>}, {transform_indices = @transform_2, window_bounds = array<i64: 1, 8, 32>}, {transform_indices = @transform_3, window_bounds = array<i64: 1, 8, 8>}, {transform_indices = @transform_4, window_bounds = array<i64: 1, 8, 32>}]} {
    %c0 = arith.constant 0 : index
    %c0_0 = arith.constant 0 : index
    %c0_1 = arith.constant 0 : index
    %0 = vector.load %arg5[%c0, %c0_0, %c0_1] : memref<1x8x8xi8, #tpu.memory_space<vmem>>, vector<1x8x8xi8>
    %1 = vector.shape_cast %0 : vector<1x8x8xi8> to vector<8x8xi8>
    %2 = arith.extsi %1 : vector<8x8xi8> to vector<8x8xi32>
    %c0_i32 = arith.constant 0 : i32
    %3 = vector.broadcast %c0_i32 : i32 to vector<8x8xi32>
    %4 = arith.cmpi eq, %2, %3 : vector<8x8xi32>
    %c0_2 = arith.constant 0 : index
    %c0_3 = arith.constant 0 : index
    %c0_4 = arith.constant 0 : index
    %5 = vector.load %arg2[%c0_2, %c0_3, %c0_4] : memref<1x8x32xf32, #tpu.memory_space<vmem>>, vector<1x8x8xf32>
    %6 = vector.shape_cast %5 : vector<1x8x8xf32> to vector<8x8xf32>
    %c0_5 = arith.constant 0 : index
    %c0_6 = arith.constant 0 : index
    %c0_7 = arith.constant 0 : index
    %7 = vector.load %arg3[%c0_5, %c0_6, %c0_7] : memref<1x8x32xf32, #tpu.memory_space<vmem>>, vector<1x8x8xf32>
    %8 = vector.shape_cast %7 : vector<1x8x8xf32> to vector<8x8xf32>
    %c0_8 = arith.constant 0 : index
    %c0_9 = arith.constant 0 : index
    %c0_10 = arith.constant 0 : index
    %9 = vector.load %arg4[%c0_8, %c0_9, %c0_10] : memref<1x8x32xf32, #tpu.memory_space<vmem>>, vector<1x8x8xf32>
    %10 = vector.shape_cast %9 : vector<1x8x8xf32> to vector<8x8xf32>
    %cst = arith.constant dense<0.000000e+00> : vector<8x8xf32>
    %11 = tpu.matmul %6, %8, %cst {dimension_numbers = #tpu.dot_dimension_numbers<[1], [1], [0], [0], [0, 0, 1, 0], [], []>} : vector<8x8xf32>, vector<8x8xf32>, vector<8x8xf32> -> vector<8x8xf32>
    %cst_11 = arith.constant 0.353553385 : f32
    %12 = vector.broadcast %cst_11 : f32 to vector<8x8xf32>
    %13 = arith.mulf %11, %12 : vector<8x8xf32>
    %cst_12 = arith.constant -1.000000e+09 : f32
    %14 = vector.broadcast %cst_12 : f32 to vector<8x8xf32>
    %15 = arith.select %4, %14, %13 : vector<8x8xi1>, vector<8x8xf32>
    %cst_13 = arith.constant dense<0xFF800000> : vector<8xf32>
    %16 = vector.multi_reduction <maximumf>, %15, %cst_13 [1] : vector<8x8xf32> to vector<8xf32>
    %17 = vector.shape_cast %16 : vector<8xf32> to vector<8x1xf32>
    %18 = vector.broadcast %17 : vector<8x1xf32> to vector<8x8xf32>
    %19 = arith.subf %15, %18 : vector<8x8xf32>
    %20 = math.exp %19 : vector<8x8xf32>
    %cst_14 = arith.constant dense<0.000000e+00> : vector<8xf32>
    %21 = vector.multi_reduction <add>, %20, %cst_14 [1] : vector<8x8xf32> to vector<8xf32>
    %22 = vector.shape_cast %21 : vector<8xf32> to vector<8x1xf32>
    %23 = tpu.reciprocal %22 {approx = true} : vector<8x1xf32> -> vector<8x1xf32>
    %24 = arith.mulf %22, %23 : vector<8x1xf32>
    %cst_15 = arith.constant 2.000000e+00 : f32
    %25 = vector.broadcast %cst_15 : f32 to vector<8x1xf32>
    %26 = arith.subf %25, %24 : vector<8x1xf32>
    %27 = arith.mulf %23, %26 : vector<8x1xf32>
    %28 = vector.broadcast %27 : vector<8x1xf32> to vector<8x8xf32>
    %29 = arith.mulf %20, %28 : vector<8x8xf32>
    %cst_16 = arith.constant dense<0.000000e+00> : vector<8x8xf32>
    %30 = tpu.matmul %29, %10, %cst_16 {dimension_numbers = #tpu.dot_dimension_numbers<[1], [0], [0], [1], [0, 0, 1, 1], [], []>} : vector<8x8xf32>, vector<8x8xf32>, vector<8x8xf32> -> vector<8x8xf32>
    %c0_17 = arith.constant 0 : index
    %c0_18 = arith.constant 0 : index
    %c0_19 = arith.constant 0 : index
    %31 = vector.load %arg6[%c0_17, %c0_18, %c0_19] : memref<1x8x32xf32, #tpu.memory_space<vmem>>, vector<1x8x8xf32>
    %32 = vector.shape_cast %31 : vector<1x8x8xf32> to vector<8x8xf32>
    %33 = vector.shape_cast %30 : vector<8x8xf32> to vector<1x8x8xf32>
    tpu.vector_store %arg6[%c0_17, %c0_18, %c0_19], %33 {strides = array<i32>} : memref<1x8x32xf32, #tpu.memory_space<vmem>>, vector<1x8x8xf32>,
    %c0_20 = arith.constant 0 : index
    %c0_21 = arith.constant 0 : index
    %c8 = arith.constant 8 : index
    %34 = vector.load %arg2[%c0_20, %c0_21, %c8] : memref<1x8x32xf32, #tpu.memory_space<vmem>>, vector<1x8x8xf32>
    %35 = vector.shape_cast %34 : vector<1x8x8xf32> to vector<8x8xf32>
    %c0_22 = arith.constant 0 : index
    %c0_23 = arith.constant 0 : index
    %c8_24 = arith.constant 8 : index
    %36 = vector.load %arg3[%c0_22, %c0_23, %c8_24] : memref<1x8x32xf32, #tpu.memory_space<vmem>>, vector<1x8x8xf32>
    %37 = vector.shape_cast %36 : vector<1x8x8xf32> to vector<8x8xf32>
    %c0_25 = arith.constant 0 : index
    %c0_26 = arith.constant 0 : index
    %c8_27 = arith.constant 8 : index
    %38 = vector.load %arg4[%c0_25, %c0_26, %c8_27] : memref<1x8x32xf32, #tpu.memory_space<vmem>>, vector<1x8x8xf32>
    %39 = vector.shape_cast %38 : vector<1x8x8xf32> to vector<8x8xf32>
    %cst_28 = arith.constant dense<0.000000e+00> : vector<8x8xf32>
    %40 = tpu.matmul %35, %37, %cst_28 {dimension_numbers = #tpu.dot_dimension_numbers<[1], [1], [0], [0], [0, 0, 1, 0], [], []>} : vector<8x8xf32>, vector<8x8xf32>, vector<8x8xf32> -> vector<8x8xf32>
    %cst_29 = arith.constant 0.353553385 : f32
    %41 = vector.broadcast %cst_29 : f32 to vector<8x8xf32>
    %42 = arith.mulf %40, %41 : vector<8x8xf32>
    %cst_30 = arith.constant -1.000000e+09 : f32
    %43 = vector.broadcast %cst_30 : f32 to vector<8x8xf32>
    %44 = arith.select %4, %43, %42 : vector<8x8xi1>, vector<8x8xf32>
    %cst_31 = arith.constant dense<0xFF800000> : vector<8xf32>
    %45 = vector.multi_reduction <maximumf>, %44, %cst_31 [1] : vector<8x8xf32> to vector<8xf32>
    %46 = vector.shape_cast %45 : vector<8xf32> to vector<8x1xf32>
    %47 = vector.broadcast %46 : vector<8x1xf32> to vector<8x8xf32>
    %48 = arith.subf %44, %47 : vector<8x8xf32>
    %49 = math.exp %48 : vector<8x8xf32>
    %cst_32 = arith.constant dense<0.000000e+00> : vector<8xf32>
    %50 = vector.multi_reduction <add>, %49, %cst_32 [1] : vector<8x8xf32> to vector<8xf32>
    %51 = vector.shape_cast %50 : vector<8xf32> to vector<8x1xf32>
    %52 = tpu.reciprocal %51 {approx = true} : vector<8x1xf32> -> vector<8x1xf32>
    %53 = arith.mulf %51, %52 : vector<8x1xf32>
    %cst_33 = arith.constant 2.000000e+00 : f32
    %54 = vector.broadcast %cst_33 : f32 to vector<8x1xf32>
    %55 = arith.subf %54, %53 : vector<8x1xf32>
    %56 = arith.mulf %52, %55 : vector<8x1xf32>
    %57 = vector.broadcast %56 : vector<8x1xf32> to vector<8x8xf32>
    %58 = arith.mulf %49, %57 : vector<8x8xf32>
    %cst_34 = arith.constant dense<0.000000e+00> : vector<8x8xf32>
    %59 = tpu.matmul %58, %39, %cst_34 {dimension_numbers = #tpu.dot_dimension_numbers<[1], [0], [0], [1], [0, 0, 1, 1], [], []>} : vector<8x8xf32>, vector<8x8xf32>, vector<8x8xf32> -> vector<8x8xf32>
    %c0_35 = arith.constant 0 : index
    %c0_36 = arith.constant 0 : index
    %c8_37 = arith.constant 8 : index
    %60 = vector.load %arg6[%c0_35, %c0_36, %c8_37] : memref<1x8x32xf32, #tpu.memory_space<vmem>>, vector<1x8x8xf32>
    %61 = vector.shape_cast %60 : vector<1x8x8xf32> to vector<8x8xf32>
    %62 = vector.shape_cast %59 : vector<8x8xf32> to vector<1x8x8xf32>
    tpu.vector_store %arg6[%c0_35, %c0_36, %c8_37], %62 {strides = array<i32>} : memref<1x8x32xf32, #tpu.memory_space<vmem>>, vector<1x8x8xf32>,
    %c0_38 = arith.constant 0 : index
    %c0_39 = arith.constant 0 : index
    %c16 = arith.constant 16 : index
    %63 = vector.load %arg2[%c0_38, %c0_39, %c16] : memref<1x8x32xf32, #tpu.memory_space<vmem>>, vector<1x8x8xf32>
    %64 = vector.shape_cast %63 : vector<1x8x8xf32> to vector<8x8xf32>
    %c0_40 = arith.constant 0 : index
    %c0_41 = arith.constant 0 : index
    %c16_42 = arith.constant 16 : index
    %65 = vector.load %arg3[%c0_40, %c0_41, %c16_42] : memref<1x8x32xf32, #tpu.memory_space<vmem>>, vector<1x8x8xf32>
    %66 = vector.shape_cast %65 : vector<1x8x8xf32> to vector<8x8xf32>
    %c0_43 = arith.constant 0 : index
    %c0_44 = arith.constant 0 : index
    %c16_45 = arith.constant 16 : index
    %67 = vector.load %arg4[%c0_43, %c0_44, %c16_45] : memref<1x8x32xf32, #tpu.memory_space<vmem>>, vector<1x8x8xf32>
    %68 = vector.shape_cast %67 : vector<1x8x8xf32> to vector<8x8xf32>
    %cst_46 = arith.constant dense<0.000000e+00> : vector<8x8xf32>
    %69 = tpu.matmul %64, %66, %cst_46 {dimension_numbers = #tpu.dot_dimension_numbers<[1], [1], [0], [0], [0, 0, 1, 0], [], []>} : vector<8x8xf32>, vector<8x8xf32>, vector<8x8xf32> -> vector<8x8xf32>
    %cst_47 = arith.constant 0.353553385 : f32
    %70 = vector.broadcast %cst_47 : f32 to vector<8x8xf32>
    %71 = arith.mulf %69, %70 : vector<8x8xf32>
    %cst_48 = arith.constant -1.000000e+09 : f32
    %72 = vector.broadcast %cst_48 : f32 to vector<8x8xf32>
    %73 = arith.select %4, %72, %71 : vector<8x8xi1>, vector<8x8xf32>
    %cst_49 = arith.constant dense<0xFF800000> : vector<8xf32>
    %74 = vector.multi_reduction <maximumf>, %73, %cst_49 [1] : vector<8x8xf32> to vector<8xf32>
    %75 = vector.shape_cast %74 : vector<8xf32> to vector<8x1xf32>
    %76 = vector.broadcast %75 : vector<8x1xf32> to vector<8x8xf32>
    %77 = arith.subf %73, %76 : vector<8x8xf32>
    %78 = math.exp %77 : vector<8x8xf32>
    %cst_50 = arith.constant dense<0.000000e+00> : vector<8xf32>
    %79 = vector.multi_reduction <add>, %78, %cst_50 [1] : vector<8x8xf32> to vector<8xf32>
    %80 = vector.shape_cast %79 : vector<8xf32> to vector<8x1xf32>
    %81 = tpu.reciprocal %80 {approx = true} : vector<8x1xf32> -> vector<8x1xf32>
    %82 = arith.mulf %80, %81 : vector<8x1xf32>
    %cst_51 = arith.constant 2.000000e+00 : f32
    %83 = vector.broadcast %cst_51 : f32 to vector<8x1xf32>
    %84 = arith.subf %83, %82 : vector<8x1xf32>
    %85 = arith.mulf %81, %84 : vector<8x1xf32>
    %86 = vector.broadcast %85 : vector<8x1xf32> to vector<8x8xf32>
    %87 = arith.mulf %78, %86 : vector<8x8xf32>
    %cst_52 = arith.constant dense<0.000000e+00> : vector<8x8xf32>
    %88 = tpu.matmul %87, %68, %cst_52 {dimension_numbers = #tpu.dot_dimension_numbers<[1], [0], [0], [1], [0, 0, 1, 1], [], []>} : vector<8x8xf32>, vector<8x8xf32>, vector<8x8xf32> -> vector<8x8xf32>
    %c0_53 = arith.constant 0 : index
    %c0_54 = arith.constant 0 : index
    %c16_55 = arith.constant 16 : index
    %89 = vector.load %arg6[%c0_53, %c0_54, %c16_55] : memref<1x8x32xf32, #tpu.memory_space<vmem>>, vector<1x8x8xf32>
    %90 = vector.shape_cast %89 : vector<1x8x8xf32> to vector<8x8xf32>
    %91 = vector.shape_cast %88 : vector<8x8xf32> to vector<1x8x8xf32>
    tpu.vector_store %arg6[%c0_53, %c0_54, %c16_55], %91 {strides = array<i32>} : memref<1x8x32xf32, #tpu.memory_space<vmem>>, vector<1x8x8xf32>,
    %c0_56 = arith.constant 0 : index
    %c0_57 = arith.constant 0 : index
    %c24 = arith.constant 24 : index
    %92 = vector.load %arg2[%c0_56, %c0_57, %c24] : memref<1x8x32xf32, #tpu.memory_space<vmem>>, vector<1x8x8xf32>
    %93 = vector.shape_cast %92 : vector<1x8x8xf32> to vector<8x8xf32>
    %c0_58 = arith.constant 0 : index
    %c0_59 = arith.constant 0 : index
    %c24_60 = arith.constant 24 : index
    %94 = vector.load %arg3[%c0_58, %c0_59, %c24_60] : memref<1x8x32xf32, #tpu.memory_space<vmem>>, vector<1x8x8xf32>
    %95 = vector.shape_cast %94 : vector<1x8x8xf32> to vector<8x8xf32>
    %c0_61 = arith.constant 0 : index
    %c0_62 = arith.constant 0 : index
    %c24_63 = arith.constant 24 : index
    %96 = vector.load %arg4[%c0_61, %c0_62, %c24_63] : memref<1x8x32xf32, #tpu.memory_space<vmem>>, vector<1x8x8xf32>
    %97 = vector.shape_cast %96 : vector<1x8x8xf32> to vector<8x8xf32>
    %cst_64 = arith.constant dense<0.000000e+00> : vector<8x8xf32>
    %98 = tpu.matmul %93, %95, %cst_64 {dimension_numbers = #tpu.dot_dimension_numbers<[1], [1], [0], [0], [0, 0, 1, 0], [], []>} : vector<8x8xf32>, vector<8x8xf32>, vector<8x8xf32> -> vector<8x8xf32>
    %cst_65 = arith.constant 0.353553385 : f32
    %99 = vector.broadcast %cst_65 : f32 to vector<8x8xf32>
    %100 = arith.mulf %98, %99 : vector<8x8xf32>
    %cst_66 = arith.constant -1.000000e+09 : f32
    %101 = vector.broadcast %cst_66 : f32 to vector<8x8xf32>
    %102 = arith.select %4, %101, %100 : vector<8x8xi1>, vector<8x8xf32>
    %cst_67 = arith.constant dense<0xFF800000> : vector<8xf32>
    %103 = vector.multi_reduction <maximumf>, %102, %cst_67 [1] : vector<8x8xf32> to vector<8xf32>
    %104 = vector.shape_cast %103 : vector<8xf32> to vector<8x1xf32>
    %105 = vector.broadcast %104 : vector<8x1xf32> to vector<8x8xf32>
    %106 = arith.subf %102, %105 : vector<8x8xf32>
    %107 = math.exp %106 : vector<8x8xf32>
    %cst_68 = arith.constant dense<0.000000e+00> : vector<8xf32>
    %108 = vector.multi_reduction <add>, %107, %cst_68 [1] : vector<8x8xf32> to vector<8xf32>
    %109 = vector.shape_cast %108 : vector<8xf32> to vector<8x1xf32>
    %110 = tpu.reciprocal %109 {approx = true} : vector<8x1xf32> -> vector<8x1xf32>
    %111 = arith.mulf %109, %110 : vector<8x1xf32>
    %cst_69 = arith.constant 2.000000e+00 : f32
    %112 = vector.broadcast %cst_69 : f32 to vector<8x1xf32>
    %113 = arith.subf %112, %111 : vector<8x1xf32>
    %114 = arith.mulf %110, %113 : vector<8x1xf32>
    %115 = vector.broadcast %114 : vector<8x1xf32> to vector<8x8xf32>
    %116 = arith.mulf %107, %115 : vector<8x8xf32>
    %cst_70 = arith.constant dense<0.000000e+00> : vector<8x8xf32>
    %117 = tpu.matmul %116, %97, %cst_70 {dimension_numbers = #tpu.dot_dimension_numbers<[1], [0], [0], [1], [0, 0, 1, 1], [], []>} : vector<8x8xf32>, vector<8x8xf32>, vector<8x8xf32> -> vector<8x8xf32>
    %c0_71 = arith.constant 0 : index
    %c0_72 = arith.constant 0 : index
    %c24_73 = arith.constant 24 : index
    %118 = vector.load %arg6[%c0_71, %c0_72, %c24_73] : memref<1x8x32xf32, #tpu.memory_space<vmem>>, vector<1x8x8xf32>
    %119 = vector.shape_cast %118 : vector<1x8x8xf32> to vector<8x8xf32>
    %120 = vector.shape_cast %117 : vector<8x8xf32> to vector<1x8x8xf32>
    tpu.vector_store %arg6[%c0_71, %c0_72, %c24_73], %120 {strides = array<i32>} : memref<1x8x32xf32, #tpu.memory_space<vmem>>, vector<1x8x8xf32>,
    return
  }
  func.func @transform_0(%arg0: i32, %arg1: i32) -> (i32, i32, i32) {
    %c0_i32 = arith.constant 0 : i32
    %c0_i32_0 = arith.constant 0 : i32
    return %arg0, %c0_i32, %arg1 : i32, i32, i32
  }
  func.func @transform_1(%arg0: i32, %arg1: i32) -> (i32, i32, i32) {
    %c0_i32 = arith.constant 0 : i32
    %c0_i32_0 = arith.constant 0 : i32
    return %arg0, %c0_i32, %arg1 : i32, i32, i32
  }
  func.func @transform_2(%arg0: i32, %arg1: i32) -> (i32, i32, i32) {
    %c0_i32 = arith.constant 0 : i32
    %c0_i32_0 = arith.constant 0 : i32
    return %arg0, %c0_i32, %arg1 : i32, i32, i32
  }
  func.func @transform_3(%arg0: i32, %arg1: i32) -> (i32, i32, i32) {
    %c0_i32 = arith.constant 0 : i32
    %c0_i32_0 = arith.constant 0 : i32
    %c0_i32_1 = arith.constant 0 : i32
    return %arg0, %c0_i32, %c0_i32_0 : i32, i32, i32
  }
  func.func @transform_4(%arg0: i32, %arg1: i32) -> (i32, i32, i32) {
    %c0_i32 = arith.constant 0 : i32
    %c0_i32_0 = arith.constant 0 : i32
    return %arg0, %c0_i32, %arg1 : i32, i32, i32
  }
}

module attributes {stable_mosaic.version = 11 : i64} {
  func.func @kernel(%arg0: i32, %arg1: i32, %arg2: memref<16x32xf32, #tpu.memory_space<vmem>>, %arg3: memref<1x32xf32, #tpu.memory_space<vmem>>, %arg4: memref<1x32xf32, #tpu.memory_space<vmem>>, %arg5: memref<32x32xf32, #tpu.memory_space<vmem>>, %arg6: memref<32x32xf32, #tpu.memory_space<vmem>>, %arg7: memref<32x32xf32, #tpu.memory_space<vmem>>, %arg8: memref<1x32xf32, #tpu.memory_space<vmem>>, %arg9: memref<1x32xf32, #tpu.memory_space<vmem>>, %arg10: memref<1x32xf32, #tpu.memory_space<vmem>>, %arg11: memref<16x32xf32, #tpu.memory_space<vmem>>, %arg12: memref<16x32xf32, #tpu.memory_space<vmem>>, %arg13: memref<16x32xf32, #tpu.memory_space<vmem>>) attributes {dimension_semantics = [#tpu.dimension_semantics<parallel>, #tpu.dimension_semantics<parallel>], iteration_bounds = array<i64: 1, 1>, scalar_prefetch = 0 : i64, scratch_operands = 0 : i64, tpu.core_type = #tpu.core_type<tc>, window_params = [{transform_indices = @transform_0, window_bounds = array<i64: 16, 32>}, {pipeline_mode = #tpu.pipeline_mode<synchronous>, transform_indices = @transform_1, window_bounds = array<i64: 1, 32>}, {pipeline_mode = #tpu.pipeline_mode<synchronous>, transform_indices = @transform_2, window_bounds = array<i64: 1, 32>}, {transform_indices = @transform_3, window_bounds = array<i64: 32, 32>}, {transform_indices = @transform_4, window_bounds = array<i64: 32, 32>}, {transform_indices = @transform_5, window_bounds = array<i64: 32, 32>}, {transform_indices = @transform_6, window_bounds = array<i64: 1, 32>}, {transform_indices = @transform_7, window_bounds = array<i64: 1, 32>}, {transform_indices = @transform_8, window_bounds = array<i64: 1, 32>}, {transform_indices = @transform_9, window_bounds = array<i64: 16, 32>}, {transform_indices = @transform_10, window_bounds = array<i64: 16, 32>}, {transform_indices = @transform_11, window_bounds = array<i64: 16, 32>}]} {
    %c0 = arith.constant 0 : index
    %c0_0 = arith.constant 0 : index
    %0 = vector.load %arg2[%c0, %c0_0] : memref<16x32xf32, #tpu.memory_space<vmem>>, vector<16x32xf32>
    %cst = arith.constant dense<0.000000e+00> : vector<16xf32>
    %1 = vector.multi_reduction <add>, %0, %cst [1] : vector<16x32xf32> to vector<16xf32>
    %2 = vector.shape_cast %1 : vector<16xf32> to vector<16x1xf32>
    %cst_1 = arith.constant 3.200000e+01 : f32
    %3 = vector.broadcast %cst_1 : f32 to vector<16x1xf32>
    %4 = arith.divf %2, %3 : vector<16x1xf32>
    %5 = vector.broadcast %4 : vector<16x1xf32> to vector<16x32xf32>
    %6 = arith.subf %0, %5 : vector<16x32xf32>
    %7 = arith.mulf %6, %6 : vector<16x32xf32>
    %cst_2 = arith.constant dense<0.000000e+00> : vector<16xf32>
    %8 = vector.multi_reduction <add>, %7, %cst_2 [1] : vector<16x32xf32> to vector<16xf32>
    %9 = vector.shape_cast %8 : vector<16xf32> to vector<16x1xf32>
    %cst_3 = arith.constant 3.100000e+01 : f32
    %10 = vector.broadcast %cst_3 : f32 to vector<16x1xf32>
    %11 = arith.divf %9, %10 : vector<16x1xf32>
    %12 = math.sqrt %11 : vector<16x1xf32>
    %c0_4 = arith.constant 0 : index
    %c0_5 = arith.constant 0 : index
    %13 = vector.load %arg3[%c0_4, %c0_5] : memref<1x32xf32, #tpu.memory_space<vmem>>, vector<1x32xf32>
    %cst_6 = arith.constant 9.99999997E-7 : f32
    %14 = vector.broadcast %cst_6 : f32 to vector<16x1xf32>
    %15 = arith.addf %12, %14 : vector<16x1xf32>
    %cst_7 = arith.constant 1.000000e+00 : f32
    %16 = vector.broadcast %cst_7 : f32 to vector<16x1xf32>
    %17 = arith.divf %16, %15 : vector<16x1xf32>
    %18 = vector.broadcast %17 : vector<16x1xf32> to vector<16x32xf32>
    %19 = arith.mulf %6, %18 : vector<16x32xf32>
    %20 = vector.broadcast %13 : vector<1x32xf32> to vector<16x32xf32>
    %21 = arith.mulf %20, %19 : vector<16x32xf32>
    %c0_8 = arith.constant 0 : index
    %c0_9 = arith.constant 0 : index
    %22 = vector.load %arg4[%c0_8, %c0_9] : memref<1x32xf32, #tpu.memory_space<vmem>>, vector<1x32xf32>
    %23 = vector.broadcast %22 : vector<1x32xf32> to vector<16x32xf32>
    %24 = arith.addf %21, %23 : vector<16x32xf32>
    %c0_10 = arith.constant 0 : index
    %c0_11 = arith.constant 0 : index
    %25 = vector.load %arg5[%c0_10, %c0_11] : memref<32x32xf32, #tpu.memory_space<vmem>>, vector<32x32xf32>
    %cst_12 = arith.constant dense<0.000000e+00> : vector<16x32xf32>
    %26 = tpu.matmul %24, %25, %cst_12 {dimension_numbers = #tpu.dot_dimension_numbers<[1], [0], [0], [1], [0, 0, 1, 1], [], []>} : vector<16x32xf32>, vector<32x32xf32>, vector<16x32xf32> -> vector<16x32xf32>
    %c0_13 = arith.constant 0 : index
    %c0_14 = arith.constant 0 : index
    %27 = vector.load %arg8[%c0_13, %c0_14] : memref<1x32xf32, #tpu.memory_space<vmem>>, vector<1x32xf32>
    %28 = vector.broadcast %27 : vector<1x32xf32> to vector<16x32xf32>
    %29 = arith.addf %26, %28 : vector<16x32xf32>
    %c0_15 = arith.constant 0 : index
    %c0_16 = arith.constant 0 : index
    %30 = vector.load %arg11[%c0_15, %c0_16] : memref<16x32xf32, #tpu.memory_space<vmem>>, vector<16x32xf32>
    tpu.vector_store %arg11[%c0_15, %c0_16], %29 {strides = array<i32>} : memref<16x32xf32, #tpu.memory_space<vmem>>, vector<16x32xf32>,
    %c0_17 = arith.constant 0 : index
    %c0_18 = arith.constant 0 : index
    %31 = vector.load %arg6[%c0_17, %c0_18] : memref<32x32xf32, #tpu.memory_space<vmem>>, vector<32x32xf32>
    %cst_19 = arith.constant dense<0.000000e+00> : vector<16x32xf32>
    %32 = tpu.matmul %24, %31, %cst_19 {dimension_numbers = #tpu.dot_dimension_numbers<[1], [0], [0], [1], [0, 0, 1, 1], [], []>} : vector<16x32xf32>, vector<32x32xf32>, vector<16x32xf32> -> vector<16x32xf32>
    %c0_20 = arith.constant 0 : index
    %c0_21 = arith.constant 0 : index
    %33 = vector.load %arg9[%c0_20, %c0_21] : memref<1x32xf32, #tpu.memory_space<vmem>>, vector<1x32xf32>
    %34 = vector.broadcast %33 : vector<1x32xf32> to vector<16x32xf32>
    %35 = arith.addf %32, %34 : vector<16x32xf32>
    %c0_22 = arith.constant 0 : index
    %c0_23 = arith.constant 0 : index
    %36 = vector.load %arg12[%c0_22, %c0_23] : memref<16x32xf32, #tpu.memory_space<vmem>>, vector<16x32xf32>
    tpu.vector_store %arg12[%c0_22, %c0_23], %35 {strides = array<i32>} : memref<16x32xf32, #tpu.memory_space<vmem>>, vector<16x32xf32>,
    %c0_24 = arith.constant 0 : index
    %c0_25 = arith.constant 0 : index
    %37 = vector.load %arg7[%c0_24, %c0_25] : memref<32x32xf32, #tpu.memory_space<vmem>>, vector<32x32xf32>
    %cst_26 = arith.constant dense<0.000000e+00> : vector<16x32xf32>
    %38 = tpu.matmul %24, %37, %cst_26 {dimension_numbers = #tpu.dot_dimension_numbers<[1], [0], [0], [1], [0, 0, 1, 1], [], []>} : vector<16x32xf32>, vector<32x32xf32>, vector<16x32xf32> -> vector<16x32xf32>
    %c0_27 = arith.constant 0 : index
    %c0_28 = arith.constant 0 : index
    %39 = vector.load %arg10[%c0_27, %c0_28] : memref<1x32xf32, #tpu.memory_space<vmem>>, vector<1x32xf32>
    %40 = vector.broadcast %39 : vector<1x32xf32> to vector<16x32xf32>
    %41 = arith.addf %38, %40 : vector<16x32xf32>
    %c0_29 = arith.constant 0 : index
    %c0_30 = arith.constant 0 : index
    %42 = vector.load %arg13[%c0_29, %c0_30] : memref<16x32xf32, #tpu.memory_space<vmem>>, vector<16x32xf32>
    tpu.vector_store %arg13[%c0_29, %c0_30], %41 {strides = array<i32>} : memref<16x32xf32, #tpu.memory_space<vmem>>, vector<16x32xf32>,
    return
  }
  func.func @transform_0(%arg0: i32, %arg1: i32) -> (i32, i32) {
    %c0_i32 = arith.constant 0 : i32
    %c0_i32_0 = arith.constant 0 : i32
    return %arg0, %c0_i32 : i32, i32
  }
  func.func @transform_1(%arg0: i32, %arg1: i32) -> (i32, i32) {
    %c0_i32 = arith.constant 0 : i32
    %c0_i32_0 = arith.constant 0 : i32
    %c0_i32_1 = arith.constant 0 : i32
    return %c0_i32, %c0_i32_0 : i32, i32
  }
  func.func @transform_2(%arg0: i32, %arg1: i32) -> (i32, i32) {
    %c0_i32 = arith.constant 0 : i32
    %c0_i32_0 = arith.constant 0 : i32
    %c0_i32_1 = arith.constant 0 : i32
    return %c0_i32, %c0_i32_0 : i32, i32
  }
  func.func @transform_3(%arg0: i32, %arg1: i32) -> (i32, i32) {
    %c0_i32 = arith.constant 0 : i32
    %c0_i32_0 = arith.constant 0 : i32
    return %c0_i32, %arg1 : i32, i32
  }
  func.func @transform_4(%arg0: i32, %arg1: i32) -> (i32, i32) {
    %c0_i32 = arith.constant 0 : i32
    %c0_i32_0 = arith.constant 0 : i32
    return %c0_i32, %arg1 : i32, i32
  }
  func.func @transform_5(%arg0: i32, %arg1: i32) -> (i32, i32) {
    %c0_i32 = arith.constant 0 : i32
    %c0_i32_0 = arith.constant 0 : i32
    return %c0_i32, %arg1 : i32, i32
  }
  func.func @transform_6(%arg0: i32, %arg1: i32) -> (i32, i32) {
    %c0_i32 = arith.constant 0 : i32
    %c0_i32_0 = arith.constant 0 : i32
    return %c0_i32, %arg1 : i32, i32
  }
  func.func @transform_7(%arg0: i32, %arg1: i32) -> (i32, i32) {
    %c0_i32 = arith.constant 0 : i32
    %c0_i32_0 = arith.constant 0 : i32
    return %c0_i32, %arg1 : i32, i32
  }
  func.func @transform_8(%arg0: i32, %arg1: i32) -> (i32, i32) {
    %c0_i32 = arith.constant 0 : i32
    %c0_i32_0 = arith.constant 0 : i32
    return %c0_i32, %arg1 : i32, i32
  }
  func.func @transform_9(%arg0: i32, %arg1: i32) -> (i32, i32) {
    %c0_i32 = arith.constant 0 : i32
    return %arg0, %arg1 : i32, i32
  }
  func.func @transform_10(%arg0: i32, %arg1: i32) -> (i32, i32) {
    %c0_i32 = arith.constant 0 : i32
    return %arg0, %arg1 : i32, i32
  }
  func.func @transform_11(%arg0: i32, %arg1: i32) -> (i32, i32) {
    %c0_i32 = arith.constant 0 : i32
    return %arg0, %arg1 : i32, i32
  }
}

module attributes {stable_mosaic.version = 11 : i64} {
  func.func @kernel(%arg0: i32, %arg1: i32, %arg2: memref<16x32xf32, #tpu.memory_space<vmem>>, %arg3: memref<32x32xf32, #tpu.memory_space<vmem>>, %arg4: memref<1x32xf32, #tpu.memory_space<vmem>>, %arg5: memref<16x32xf32, #tpu.memory_space<vmem>>, %arg6: memref<16x32xf32, #tpu.memory_space<vmem>>) attributes {dimension_semantics = [#tpu.dimension_semantics<parallel>, #tpu.dimension_semantics<parallel>], iteration_bounds = array<i64: 1, 1>, scalar_prefetch = 0 : i64, scratch_operands = 0 : i64, tpu.core_type = #tpu.core_type<tc>, window_params = [{transform_indices = @transform_0, window_bounds = array<i64: 16, 32>}, {transform_indices = @transform_1, window_bounds = array<i64: 32, 32>}, {transform_indices = @transform_2, window_bounds = array<i64: 1, 32>}, {transform_indices = @transform_3, window_bounds = array<i64: 16, 32>}, {transform_indices = @transform_4, window_bounds = array<i64: 16, 32>}]} {
    %c0 = arith.constant 0 : index
    %c0_0 = arith.constant 0 : index
    %0 = vector.load %arg2[%c0, %c0_0] : memref<16x32xf32, #tpu.memory_space<vmem>>, vector<16x32xf32>
    %c0_1 = arith.constant 0 : index
    %c0_2 = arith.constant 0 : index
    %1 = vector.load %arg3[%c0_1, %c0_2] : memref<32x32xf32, #tpu.memory_space<vmem>>, vector<32x32xf32>
    %cst = arith.constant dense<0.000000e+00> : vector<16x32xf32>
    %2 = tpu.matmul %0, %1, %cst {dimension_numbers = #tpu.dot_dimension_numbers<[1], [0], [0], [1], [0, 0, 1, 1], [], []>} : vector<16x32xf32>, vector<32x32xf32>, vector<16x32xf32> -> vector<16x32xf32>
    %c0_3 = arith.constant 0 : index
    %c0_4 = arith.constant 0 : index
    %3 = vector.load %arg4[%c0_3, %c0_4] : memref<1x32xf32, #tpu.memory_space<vmem>>, vector<1x32xf32>
    %4 = vector.broadcast %3 : vector<1x32xf32> to vector<16x32xf32>
    %5 = arith.addf %2, %4 : vector<16x32xf32>
    %c0_5 = arith.constant 0 : index
    %c0_6 = arith.constant 0 : index
    %6 = vector.load %arg5[%c0_5, %c0_6] : memref<16x32xf32, #tpu.memory_space<vmem>>, vector<16x32xf32>
    %7 = arith.addf %5, %6 : vector<16x32xf32>
    %c0_7 = arith.constant 0 : index
    %c0_8 = arith.constant 0 : index
    %8 = vector.load %arg6[%c0_7, %c0_8] : memref<16x32xf32, #tpu.memory_space<vmem>>, vector<16x32xf32>
    tpu.vector_store %arg6[%c0_7, %c0_8], %7 {strides = array<i32>} : memref<16x32xf32, #tpu.memory_space<vmem>>, vector<16x32xf32>,
    return
  }
  func.func @transform_0(%arg0: i32, %arg1: i32) -> (i32, i32) {
    %c0_i32 = arith.constant 0 : i32
    %c0_i32_0 = arith.constant 0 : i32
    return %arg0, %c0_i32 : i32, i32
  }
  func.func @transform_1(%arg0: i32, %arg1: i32) -> (i32, i32) {
    %c0_i32 = arith.constant 0 : i32
    %c0_i32_0 = arith.constant 0 : i32
    return %c0_i32, %arg1 : i32, i32
  }
  func.func @transform_2(%arg0: i32, %arg1: i32) -> (i32, i32) {
    %c0_i32 = arith.constant 0 : i32
    %c0_i32_0 = arith.constant 0 : i32
    return %c0_i32, %arg1 : i32, i32
  }
  func.func @transform_3(%arg0: i32, %arg1: i32) -> (i32, i32) {
    %c0_i32 = arith.constant 0 : i32
    return %arg0, %arg1 : i32, i32
  }
  func.func @transform_4(%arg0: i32, %arg1: i32) -> (i32, i32) {
    %c0_i32 = arith.constant 0 : i32
    return %arg0, %arg1 : i32, i32
  }
}

module attributes {stable_mosaic.version = 11 : i64} {
  func.func @kernel(%arg0: i32, %arg1: i32, %arg2: memref<16x32xf32, #tpu.memory_space<vmem>>, %arg3: memref<1x32xf32, #tpu.memory_space<vmem>>, %arg4: memref<1x32xf32, #tpu.memory_space<vmem>>, %arg5: memref<32x32xf32, #tpu.memory_space<vmem>>, %arg6: memref<1x32xf32, #tpu.memory_space<vmem>>, %arg7: memref<16x32xf32, #tpu.memory_space<vmem>>) attributes {dimension_semantics = [#tpu.dimension_semantics<parallel>, #tpu.dimension_semantics<parallel>], iteration_bounds = array<i64: 1, 1>, scalar_prefetch = 0 : i64, scratch_operands = 0 : i64, tpu.core_type = #tpu.core_type<tc>, window_params = [{transform_indices = @transform_0, window_bounds = array<i64: 16, 32>}, {pipeline_mode = #tpu.pipeline_mode<synchronous>, transform_indices = @transform_1, window_bounds = array<i64: 1, 32>}, {pipeline_mode = #tpu.pipeline_mode<synchronous>, transform_indices = @transform_2, window_bounds = array<i64: 1, 32>}, {transform_indices = @transform_3, window_bounds = array<i64: 32, 32>}, {transform_indices = @transform_4, window_bounds = array<i64: 1, 32>}, {transform_indices = @transform_5, window_bounds = array<i64: 16, 32>}]} {
    %c0 = arith.constant 0 : index
    %c0_0 = arith.constant 0 : index
    %0 = vector.load %arg2[%c0, %c0_0] : memref<16x32xf32, #tpu.memory_space<vmem>>, vector<16x32xf32>
    %cst = arith.constant dense<0.000000e+00> : vector<16xf32>
    %1 = vector.multi_reduction <add>, %0, %cst [1] : vector<16x32xf32> to vector<16xf32>
    %2 = vector.shape_cast %1 : vector<16xf32> to vector<16x1xf32>
    %cst_1 = arith.constant 3.200000e+01 : f32
    %3 = vector.broadcast %cst_1 : f32 to vector<16x1xf32>
    %4 = arith.divf %2, %3 : vector<16x1xf32>
    %5 = vector.broadcast %4 : vector<16x1xf32> to vector<16x32xf32>
    %6 = arith.subf %0, %5 : vector<16x32xf32>
    %7 = arith.mulf %6, %6 : vector<16x32xf32>
    %cst_2 = arith.constant dense<0.000000e+00> : vector<16xf32>
    %8 = vector.multi_reduction <add>, %7, %cst_2 [1] : vector<16x32xf32> to vector<16xf32>
    %9 = vector.shape_cast %8 : vector<16xf32> to vector<16x1xf32>
    %cst_3 = arith.constant 3.100000e+01 : f32
    %10 = vector.broadcast %cst_3 : f32 to vector<16x1xf32>
    %11 = arith.divf %9, %10 : vector<16x1xf32>
    %12 = math.sqrt %11 : vector<16x1xf32>
    %c0_4 = arith.constant 0 : index
    %c0_5 = arith.constant 0 : index
    %13 = vector.load %arg3[%c0_4, %c0_5] : memref<1x32xf32, #tpu.memory_space<vmem>>, vector<1x32xf32>
    %cst_6 = arith.constant 9.99999997E-7 : f32
    %14 = vector.broadcast %cst_6 : f32 to vector<16x1xf32>
    %15 = arith.addf %12, %14 : vector<16x1xf32>
    %cst_7 = arith.constant 1.000000e+00 : f32
    %16 = vector.broadcast %cst_7 : f32 to vector<16x1xf32>
    %17 = arith.divf %16, %15 : vector<16x1xf32>
    %18 = vector.broadcast %17 : vector<16x1xf32> to vector<16x32xf32>
    %19 = arith.mulf %6, %18 : vector<16x32xf32>
    %20 = vector.broadcast %13 : vector<1x32xf32> to vector<16x32xf32>
    %21 = arith.mulf %20, %19 : vector<16x32xf32>
    %c0_8 = arith.constant 0 : index
    %c0_9 = arith.constant 0 : index
    %22 = vector.load %arg4[%c0_8, %c0_9] : memref<1x32xf32, #tpu.memory_space<vmem>>, vector<1x32xf32>
    %23 = vector.broadcast %22 : vector<1x32xf32> to vector<16x32xf32>
    %24 = arith.addf %21, %23 : vector<16x32xf32>
    %c0_10 = arith.constant 0 : index
    %c0_11 = arith.constant 0 : index
    %25 = vector.load %arg5[%c0_10, %c0_11] : memref<32x32xf32, #tpu.memory_space<vmem>>, vector<32x32xf32>
    %cst_12 = arith.constant dense<0.000000e+00> : vector<16x32xf32>
    %26 = tpu.matmul %24, %25, %cst_12 {dimension_numbers = #tpu.dot_dimension_numbers<[1], [0], [0], [1], [0, 0, 1, 1], [], []>} : vector<16x32xf32>, vector<32x32xf32>, vector<16x32xf32> -> vector<16x32xf32>
    %c0_13 = arith.constant 0 : index
    %c0_14 = arith.constant 0 : index
    %27 = vector.load %arg6[%c0_13, %c0_14] : memref<1x32xf32, #tpu.memory_space<vmem>>, vector<1x32xf32>
    %28 = vector.broadcast %27 : vector<1x32xf32> to vector<16x32xf32>
    %29 = arith.addf %26, %28 : vector<16x32xf32>
    %c0_15 = arith.constant 0 : index
    %c0_16 = arith.constant 0 : index
    %30 = vector.load %arg7[%c0_15, %c0_16] : memref<16x32xf32, #tpu.memory_space<vmem>>, vector<16x32xf32>
    tpu.vector_store %arg7[%c0_15, %c0_16], %29 {strides = array<i32>} : memref<16x32xf32, #tpu.memory_space<vmem>>, vector<16x32xf32>,
    return
  }
  func.func @transform_0(%arg0: i32, %arg1: i32) -> (i32, i32) {
    %c0_i32 = arith.constant 0 : i32
    %c0_i32_0 = arith.constant 0 : i32
    return %arg0, %c0_i32 : i32, i32
  }
  func.func @transform_1(%arg0: i32, %arg1: i32) -> (i32, i32) {
    %c0_i32 = arith.constant 0 : i32
    %c0_i32_0 = arith.constant 0 : i32
    %c0_i32_1 = arith.constant 0 : i32
    return %c0_i32, %c0_i32_0 : i32, i32
  }
  func.func @transform_2(%arg0: i32, %arg1: i32) -> (i32, i32) {
    %c0_i32 = arith.constant 0 : i32
    %c0_i32_0 = arith.constant 0 : i32
    %c0_i32_1 = arith.constant 0 : i32
    return %c0_i32, %c0_i32_0 : i32, i32
  }
  func.func @transform_3(%arg0: i32, %arg1: i32) -> (i32, i32) {
    %c0_i32 = arith.constant 0 : i32
    %c0_i32_0 = arith.constant 0 : i32
    return %c0_i32, %arg1 : i32, i32
  }
  func.func @transform_4(%arg0: i32, %arg1: i32) -> (i32, i32) {
    %c0_i32 = arith.constant 0 : i32
    %c0_i32_0 = arith.constant 0 : i32
    return %c0_i32, %arg1 : i32, i32
  }
  func.func @transform_5(%arg0: i32, %arg1: i32) -> (i32, i32) {
    %c0_i32 = arith.constant 0 : i32
    return %arg0, %arg1 : i32, i32
  }
}

module attributes {stable_mosaic.version = 11 : i64} {
  func.func @kernel(%arg0: i32, %arg1: i32, %arg2: memref<32x32xf32, #tpu.memory_space<vmem>>, %arg3: memref<32x32xf32, #tpu.memory_space<vmem>>, %arg4: memref<32x32xf32, #tpu.memory_space<vmem>>, %arg5: memref<1x32xf32, #tpu.memory_space<vmem>>, %arg6: memref<1x32xf32, #tpu.memory_space<vmem>>, %arg7: memref<32x32xf32, #tpu.memory_space<vmem>>, %arg8: memref<32x32xf32, #tpu.memory_space<vmem>>) attributes {dimension_semantics = [#tpu.dimension_semantics<parallel>, #tpu.dimension_semantics<parallel>], iteration_bounds = array<i64: 1, 1>, scalar_prefetch = 0 : i64, scratch_operands = 0 : i64, tpu.core_type = #tpu.core_type<tc>, window_params = [{transform_indices = @transform_0, window_bounds = array<i64: 32, 32>}, {transform_indices = @transform_1, window_bounds = array<i64: 32, 32>}, {transform_indices = @transform_2, window_bounds = array<i64: 32, 32>}, {transform_indices = @transform_3, window_bounds = array<i64: 1, 32>}, {transform_indices = @transform_4, window_bounds = array<i64: 1, 32>}, {transform_indices = @transform_5, window_bounds = array<i64: 32, 32>}, {transform_indices = @transform_6, window_bounds = array<i64: 32, 32>}]} {
    %c0 = arith.constant 0 : index
    %c0_0 = arith.constant 0 : index
    %0 = vector.load %arg2[%c0, %c0_0] : memref<32x32xf32, #tpu.memory_space<vmem>>, vector<32x32xf32>
    %c0_1 = arith.constant 0 : index
    %c0_2 = arith.constant 0 : index
    %1 = vector.load %arg3[%c0_1, %c0_2] : memref<32x32xf32, #tpu.memory_space<vmem>>, vector<32x32xf32>
    %cst = arith.constant dense<0.000000e+00> : vector<32x32xf32>
    %2 = tpu.matmul %0, %1, %cst {dimension_numbers = #tpu.dot_dimension_numbers<[1], [0], [0], [1], [0, 0, 1, 1], [], []>} : vector<32x32xf32>, vector<32x32xf32>, vector<32x32xf32> -> vector<32x32xf32>
    %c0_3 = arith.constant 0 : index
    %c0_4 = arith.constant 0 : index
    %3 = vector.load %arg5[%c0_3, %c0_4] : memref<1x32xf32, #tpu.memory_space<vmem>>, vector<1x32xf32>
    %4 = vector.broadcast %3 : vector<1x32xf32> to vector<32x32xf32>
    %5 = arith.addf %2, %4 : vector<32x32xf32>
    %c0_5 = arith.constant 0 : index
    %c0_6 = arith.constant 0 : index
    %6 = vector.load %arg7[%c0_5, %c0_6] : memref<32x32xf32, #tpu.memory_space<vmem>>, vector<32x32xf32>
    tpu.vector_store %arg7[%c0_5, %c0_6], %5 {strides = array<i32>} : memref<32x32xf32, #tpu.memory_space<vmem>>, vector<32x32xf32>,
    %c0_7 = arith.constant 0 : index
    %c0_8 = arith.constant 0 : index
    %7 = vector.load %arg4[%c0_7, %c0_8] : memref<32x32xf32, #tpu.memory_space<vmem>>, vector<32x32xf32>
    %cst_9 = arith.constant dense<0.000000e+00> : vector<32x32xf32>
    %8 = tpu.matmul %0, %7, %cst_9 {dimension_numbers = #tpu.dot_dimension_numbers<[1], [0], [0], [1], [0, 0, 1, 1], [], []>} : vector<32x32xf32>, vector<32x32xf32>, vector<32x32xf32> -> vector<32x32xf32>
    %c0_10 = arith.constant 0 : index
    %c0_11 = arith.constant 0 : index
    %9 = vector.load %arg6[%c0_10, %c0_11] : memref<1x32xf32, #tpu.memory_space<vmem>>, vector<1x32xf32>
    %10 = vector.broadcast %9 : vector<1x32xf32> to vector<32x32xf32>
    %11 = arith.addf %8, %10 : vector<32x32xf32>
    %c0_12 = arith.constant 0 : index
    %c0_13 = arith.constant 0 : index
    %12 = vector.load %arg8[%c0_12, %c0_13] : memref<32x32xf32, #tpu.memory_space<vmem>>, vector<32x32xf32>
    tpu.vector_store %arg8[%c0_12, %c0_13], %11 {strides = array<i32>} : memref<32x32xf32, #tpu.memory_space<vmem>>, vector<32x32xf32>,
    return
  }
  func.func @transform_0(%arg0: i32, %arg1: i32) -> (i32, i32) {
    %c0_i32 = arith.constant 0 : i32
    %c0_i32_0 = arith.constant 0 : i32
    return %arg0, %c0_i32 : i32, i32
  }
  func.func @transform_1(%arg0: i32, %arg1: i32) -> (i32, i32) {
    %c0_i32 = arith.constant 0 : i32
    %c0_i32_0 = arith.constant 0 : i32
    return %c0_i32, %arg1 : i32, i32
  }
  func.func @transform_2(%arg0: i32, %arg1: i32) -> (i32, i32) {
    %c0_i32 = arith.constant 0 : i32
    %c0_i32_0 = arith.constant 0 : i32
    return %c0_i32, %arg1 : i32, i32
  }
  func.func @transform_3(%arg0: i32, %arg1: i32) -> (i32, i32) {
    %c0_i32 = arith.constant 0 : i32
    %c0_i32_0 = arith.constant 0 : i32
    return %c0_i32, %arg1 : i32, i32
  }
  func.func @transform_4(%arg0: i32, %arg1: i32) -> (i32, i32) {
    %c0_i32 = arith.constant 0 : i32
    %c0_i32_0 = arith.constant 0 : i32
    return %c0_i32, %arg1 : i32, i32
  }
  func.func @transform_5(%arg0: i32, %arg1: i32) -> (i32, i32) {
    %c0_i32 = arith.constant 0 : i32
    return %arg0, %arg1 : i32, i32
  }
  func.func @transform_6(%arg0: i32, %arg1: i32) -> (i32, i32) {
    %c0_i32 = arith.constant 0 : i32
    return %arg0, %arg1 : i32, i32
  }
}

module attributes {stable_mosaic.version = 11 : i64} {
  func.func @kernel(%arg0: i32, %arg1: i32, %arg2: memref<1x8x32xf32, #tpu.memory_space<vmem>>, %arg3: memref<1x16x32xf32, #tpu.memory_space<vmem>>, %arg4: memref<1x16x32xf32, #tpu.memory_space<vmem>>, %arg5: memref<1x1x16xi8, #tpu.memory_space<vmem>>, %arg6: memref<1x8x32xf32, #tpu.memory_space<vmem>>) attributes {dimension_semantics = [#tpu.dimension_semantics<parallel>, #tpu.dimension_semantics<parallel>], iteration_bounds = array<i64: 2, 1>, scalar_prefetch = 0 : i64, scratch_operands = 0 : i64, tpu.core_type = #tpu.core_type<tc>, window_params = [{transform_indices = @transform_0, window_bounds = array<i64: 1, 8, 32>}, {transform_indices = @transform_1, window_bounds = array<i64: 1, 16, 32>}, {transform_indices = @transform_2, window_bounds = array<i64: 1, 16, 32>}, {transform_indices = @transform_3, window_bounds = array<i64: 1, 1, 16>}, {transform_indices = @transform_4, window_bounds = array<i64: 1, 8, 32>}]} {
    %c0 = arith.constant 0 : index
    %c0_0 = arith.constant 0 : index
    %c0_1 = arith.constant 0 : index
    %0 = vector.load %arg5[%c0, %c0_0, %c0_1] : memref<1x1x16xi8, #tpu.memory_space<vmem>>, vector<1x1x16xi8>
    %1 = vector.shape_cast %0 : vector<1x1x16xi8> to vector<1x16xi8>
    %2 = arith.extsi %1 : vector<1x16xi8> to vector<1x16xi32>
    %c0_i32 = arith.constant 0 : i32
    %3 = vector.broadcast %c0_i32 : i32 to vector<1x16xi32>
    %4 = arith.cmpi eq, %2, %3 : vector<1x16xi32>
    %c0_2 = arith.constant 0 : index
    %c0_3 = arith.constant 0 : index
    %c0_4 = arith.constant 0 : index
    %5 = vector.load %arg2[%c0_2, %c0_3, %c0_4] : memref<1x8x32xf32, #tpu.memory_space<vmem>>, vector<1x8x8xf32>
    %6 = vector.shape_cast %5 : vector<1x8x8xf32> to vector<8x8xf32>
    %c0_5 = arith.constant 0 : index
    %c0_6 = arith.constant 0 : index
    %c0_7 = arith.constant 0 : index
    %7 = vector.load %arg3[%c0_5, %c0_6, %c0_7] : memref<1x16x32xf32, #tpu.memory_space<vmem>>, vector<1x16x8xf32>
    %8 = vector.shape_cast %7 : vector<1x16x8xf32> to vector<16x8xf32>
    %c0_8 = arith.constant 0 : index
    %c0_9 = arith.constant 0 : index
    %c0_10 = arith.constant 0 : index
    %9 = vector.load %arg4[%c0_8, %c0_9, %c0_10] : memref<1x16x32xf32, #tpu.memory_space<vmem>>, vector<1x16x8xf32>
    %10 = vector.shape_cast %9 : vector<1x16x8xf32> to vector<16x8xf32>
    %cst = arith.constant dense<0.000000e+00> : vector<8x16xf32>
    %11 = tpu.matmul %6, %8, %cst {dimension_numbers = #tpu.dot_dimension_numbers<[1], [1], [0], [0], [0, 0, 1, 0], [], []>} : vector<8x8xf32>, vector<16x8xf32>, vector<8x16xf32> -> vector<8x16xf32>
    %cst_11 = arith.constant 0.353553385 : f32
    %12 = vector.broadcast %cst_11 : f32 to vector<8x16xf32>
    %13 = arith.mulf %11, %12 : vector<8x16xf32>
    %cst_12 = arith.constant -1.000000e+09 : f32
    %14 = vector.shape_cast %4 : vector<1x16xi1> to vector<1x16xi1>
    %15 = vector.broadcast %14 : vector<1x16xi1> to vector<8x16xi1>
    %16 = vector.broadcast %cst_12 : f32 to vector<8x16xf32>
    %17 = arith.select %15, %16, %13 : vector<8x16xi1>, vector<8x16xf32>
    %cst_13 = arith.constant dense<0xFF800000> : vector<8xf32>
    %18 = vector.multi_reduction <maximumf>, %17, %cst_13 [1] : vector<8x16xf32> to vector<8xf32>
    %19 = vector.shape_cast %18 : vector<8xf32> to vector<8x1xf32>
    %20 = vector.broadcast %19 : vector<8x1xf32> to vector<8x16xf32>
    %21 = arith.subf %17, %20 : vector<8x16xf32>
    %22 = math.exp %21 : vector<8x16xf32>
    %cst_14 = arith.constant dense<0.000000e+00> : vector<8xf32>
    %23 = vector.multi_reduction <add>, %22, %cst_14 [1] : vector<8x16xf32> to vector<8xf32>
    %24 = vector.shape_cast %23 : vector<8xf32> to vector<8x1xf32>
    %25 = tpu.reciprocal %24 {approx = true} : vector<8x1xf32> -> vector<8x1xf32>
    %26 = arith.mulf %24, %25 : vector<8x1xf32>
    %cst_15 = arith.constant 2.000000e+00 : f32
    %27 = vector.broadcast %cst_15 : f32 to vector<8x1xf32>
    %28 = arith.subf %27, %26 : vector<8x1xf32>
    %29 = arith.mulf %25, %28 : vector<8x1xf32>
    %30 = vector.broadcast %29 : vector<8x1xf32> to vector<8x16xf32>
    %31 = arith.mulf %22, %30 : vector<8x16xf32>
    %cst_16 = arith.constant dense<0.000000e+00> : vector<8x8xf32>
    %32 = tpu.matmul %31, %10, %cst_16 {dimension_numbers = #tpu.dot_dimension_numbers<[1], [0], [0], [1], [0, 0, 1, 1], [], []>} : vector<8x16xf32>, vector<16x8xf32>, vector<8x8xf32> -> vector<8x8xf32>
    %c0_17 = arith.constant 0 : index
    %c0_18 = arith.constant 0 : index
    %c0_19 = arith.constant 0 : index
    %33 = vector.load %arg6[%c0_17, %c0_18, %c0_19] : memref<1x8x32xf32, #tpu.memory_space<vmem>>, vector<1x8x8xf32>
    %34 = vector.shape_cast %33 : vector<1x8x8xf32> to vector<8x8xf32>
    %35 = vector.shape_cast %32 : vector<8x8xf32> to vector<1x8x8xf32>
    tpu.vector_store %arg6[%c0_17, %c0_18, %c0_19], %35 {strides = array<i32>} : memref<1x8x32xf32, #tpu.memory_space<vmem>>, vector<1x8x8xf32>,
    %c0_20 = arith.constant 0 : index
    %c0_21 = arith.constant 0 : index
    %c8 = arith.constant 8 : index
    %36 = vector.load %arg2[%c0_20, %c0_21, %c8] : memref<1x8x32xf32, #tpu.memory_space<vmem>>, vector<1x8x8xf32>
    %37 = vector.shape_cast %36 : vector<1x8x8xf32> to vector<8x8xf32>
    %c0_22 = arith.constant 0 : index
    %c0_23 = arith.constant 0 : index
    %c8_24 = arith.constant 8 : index
    %38 = vector.load %arg3[%c0_22, %c0_23, %c8_24] : memref<1x16x32xf32, #tpu.memory_space<vmem>>, vector<1x16x8xf32>
    %39 = vector.shape_cast %38 : vector<1x16x8xf32> to vector<16x8xf32>
    %c0_25 = arith.constant 0 : index
    %c0_26 = arith.constant 0 : index
    %c8_27 = arith.constant 8 : index
    %40 = vector.load %arg4[%c0_25, %c0_26, %c8_27] : memref<1x16x32xf32, #tpu.memory_space<vmem>>, vector<1x16x8xf32>
    %41 = vector.shape_cast %40 : vector<1x16x8xf32> to vector<16x8xf32>
    %cst_28 = arith.constant dense<0.000000e+00> : vector<8x16xf32>
    %42 = tpu.matmul %37, %39, %cst_28 {dimension_numbers = #tpu.dot_dimension_numbers<[1], [1], [0], [0], [0, 0, 1, 0], [], []>} : vector<8x8xf32>, vector<16x8xf32>, vector<8x16xf32> -> vector<8x16xf32>
    %cst_29 = arith.constant 0.353553385 : f32
    %43 = vector.broadcast %cst_29 : f32 to vector<8x16xf32>
    %44 = arith.mulf %42, %43 : vector<8x16xf32>
    %cst_30 = arith.constant -1.000000e+09 : f32
    %45 = vector.shape_cast %4 : vector<1x16xi1> to vector<1x16xi1>
    %46 = vector.broadcast %45 : vector<1x16xi1> to vector<8x16xi1>
    %47 = vector.broadcast %cst_30 : f32 to vector<8x16xf32>
    %48 = arith.select %46, %47, %44 : vector<8x16xi1>, vector<8x16xf32>
    %cst_31 = arith.constant dense<0xFF800000> : vector<8xf32>
    %49 = vector.multi_reduction <maximumf>, %48, %cst_31 [1] : vector<8x16xf32> to vector<8xf32>
    %50 = vector.shape_cast %49 : vector<8xf32> to vector<8x1xf32>
    %51 = vector.broadcast %50 : vector<8x1xf32> to vector<8x16xf32>
    %52 = arith.subf %48, %51 : vector<8x16xf32>
    %53 = math.exp %52 : vector<8x16xf32>
    %cst_32 = arith.constant dense<0.000000e+00> : vector<8xf32>
    %54 = vector.multi_reduction <add>, %53, %cst_32 [1] : vector<8x16xf32> to vector<8xf32>
    %55 = vector.shape_cast %54 : vector<8xf32> to vector<8x1xf32>
    %56 = tpu.reciprocal %55 {approx = true} : vector<8x1xf32> -> vector<8x1xf32>
    %57 = arith.mulf %55, %56 : vector<8x1xf32>
    %cst_33 = arith.constant 2.000000e+00 : f32
    %58 = vector.broadcast %cst_33 : f32 to vector<8x1xf32>
    %59 = arith.subf %58, %57 : vector<8x1xf32>
    %60 = arith.mulf %56, %59 : vector<8x1xf32>
    %61 = vector.broadcast %60 : vector<8x1xf32> to vector<8x16xf32>
    %62 = arith.mulf %53, %61 : vector<8x16xf32>
    %cst_34 = arith.constant dense<0.000000e+00> : vector<8x8xf32>
    %63 = tpu.matmul %62, %41, %cst_34 {dimension_numbers = #tpu.dot_dimension_numbers<[1], [0], [0], [1], [0, 0, 1, 1], [], []>} : vector<8x16xf32>, vector<16x8xf32>, vector<8x8xf32> -> vector<8x8xf32>
    %c0_35 = arith.constant 0 : index
    %c0_36 = arith.constant 0 : index
    %c8_37 = arith.constant 8 : index
    %64 = vector.load %arg6[%c0_35, %c0_36, %c8_37] : memref<1x8x32xf32, #tpu.memory_space<vmem>>, vector<1x8x8xf32>
    %65 = vector.shape_cast %64 : vector<1x8x8xf32> to vector<8x8xf32>
    %66 = vector.shape_cast %63 : vector<8x8xf32> to vector<1x8x8xf32>
    tpu.vector_store %arg6[%c0_35, %c0_36, %c8_37], %66 {strides = array<i32>} : memref<1x8x32xf32, #tpu.memory_space<vmem>>, vector<1x8x8xf32>,
    %c0_38 = arith.constant 0 : index
    %c0_39 = arith.constant 0 : index
    %c16 = arith.constant 16 : index
    %67 = vector.load %arg2[%c0_38, %c0_39, %c16] : memref<1x8x32xf32, #tpu.memory_space<vmem>>, vector<1x8x8xf32>
    %68 = vector.shape_cast %67 : vector<1x8x8xf32> to vector<8x8xf32>
    %c0_40 = arith.constant 0 : index
    %c0_41 = arith.constant 0 : index
    %c16_42 = arith.constant 16 : index
    %69 = vector.load %arg3[%c0_40, %c0_41, %c16_42] : memref<1x16x32xf32, #tpu.memory_space<vmem>>, vector<1x16x8xf32>
    %70 = vector.shape_cast %69 : vector<1x16x8xf32> to vector<16x8xf32>
    %c0_43 = arith.constant 0 : index
    %c0_44 = arith.constant 0 : index
    %c16_45 = arith.constant 16 : index
    %71 = vector.load %arg4[%c0_43, %c0_44, %c16_45] : memref<1x16x32xf32, #tpu.memory_space<vmem>>, vector<1x16x8xf32>
    %72 = vector.shape_cast %71 : vector<1x16x8xf32> to vector<16x8xf32>
    %cst_46 = arith.constant dense<0.000000e+00> : vector<8x16xf32>
    %73 = tpu.matmul %68, %70, %cst_46 {dimension_numbers = #tpu.dot_dimension_numbers<[1], [1], [0], [0], [0, 0, 1, 0], [], []>} : vector<8x8xf32>, vector<16x8xf32>, vector<8x16xf32> -> vector<8x16xf32>
    %cst_47 = arith.constant 0.353553385 : f32
    %74 = vector.broadcast %cst_47 : f32 to vector<8x16xf32>
    %75 = arith.mulf %73, %74 : vector<8x16xf32>
    %cst_48 = arith.constant -1.000000e+09 : f32
    %76 = vector.shape_cast %4 : vector<1x16xi1> to vector<1x16xi1>
    %77 = vector.broadcast %76 : vector<1x16xi1> to vector<8x16xi1>
    %78 = vector.broadcast %cst_48 : f32 to vector<8x16xf32>
    %79 = arith.select %77, %78, %75 : vector<8x16xi1>, vector<8x16xf32>
    %cst_49 = arith.constant dense<0xFF800000> : vector<8xf32>
    %80 = vector.multi_reduction <maximumf>, %79, %cst_49 [1] : vector<8x16xf32> to vector<8xf32>
    %81 = vector.shape_cast %80 : vector<8xf32> to vector<8x1xf32>
    %82 = vector.broadcast %81 : vector<8x1xf32> to vector<8x16xf32>
    %83 = arith.subf %79, %82 : vector<8x16xf32>
    %84 = math.exp %83 : vector<8x16xf32>
    %cst_50 = arith.constant dense<0.000000e+00> : vector<8xf32>
    %85 = vector.multi_reduction <add>, %84, %cst_50 [1] : vector<8x16xf32> to vector<8xf32>
    %86 = vector.shape_cast %85 : vector<8xf32> to vector<8x1xf32>
    %87 = tpu.reciprocal %86 {approx = true} : vector<8x1xf32> -> vector<8x1xf32>
    %88 = arith.mulf %86, %87 : vector<8x1xf32>
    %cst_51 = arith.constant 2.000000e+00 : f32
    %89 = vector.broadcast %cst_51 : f32 to vector<8x1xf32>
    %90 = arith.subf %89, %88 : vector<8x1xf32>
    %91 = arith.mulf %87, %90 : vector<8x1xf32>
    %92 = vector.broadcast %91 : vector<8x1xf32> to vector<8x16xf32>
    %93 = arith.mulf %84, %92 : vector<8x16xf32>
    %cst_52 = arith.constant dense<0.000000e+00> : vector<8x8xf32>
    %94 = tpu.matmul %93, %72, %cst_52 {dimension_numbers = #tpu.dot_dimension_numbers<[1], [0], [0], [1], [0, 0, 1, 1], [], []>} : vector<8x16xf32>, vector<16x8xf32>, vector<8x8xf32> -> vector<8x8xf32>
    %c0_53 = arith.constant 0 : index
    %c0_54 = arith.constant 0 : index
    %c16_55 = arith.constant 16 : index
    %95 = vector.load %arg6[%c0_53, %c0_54, %c16_55] : memref<1x8x32xf32, #tpu.memory_space<vmem>>, vector<1x8x8xf32>
    %96 = vector.shape_cast %95 : vector<1x8x8xf32> to vector<8x8xf32>
    %97 = vector.shape_cast %94 : vector<8x8xf32> to vector<1x8x8xf32>
    tpu.vector_store %arg6[%c0_53, %c0_54, %c16_55], %97 {strides = array<i32>} : memref<1x8x32xf32, #tpu.memory_space<vmem>>, vector<1x8x8xf32>,
    %c0_56 = arith.constant 0 : index
    %c0_57 = arith.constant 0 : index
    %c24 = arith.constant 24 : index
    %98 = vector.load %arg2[%c0_56, %c0_57, %c24] : memref<1x8x32xf32, #tpu.memory_space<vmem>>, vector<1x8x8xf32>
    %99 = vector.shape_cast %98 : vector<1x8x8xf32> to vector<8x8xf32>
    %c0_58 = arith.constant 0 : index
    %c0_59 = arith.constant 0 : index
    %c24_60 = arith.constant 24 : index
    %100 = vector.load %arg3[%c0_58, %c0_59, %c24_60] : memref<1x16x32xf32, #tpu.memory_space<vmem>>, vector<1x16x8xf32>
    %101 = vector.shape_cast %100 : vector<1x16x8xf32> to vector<16x8xf32>
    %c0_61 = arith.constant 0 : index
    %c0_62 = arith.constant 0 : index
    %c24_63 = arith.constant 24 : index
    %102 = vector.load %arg4[%c0_61, %c0_62, %c24_63] : memref<1x16x32xf32, #tpu.memory_space<vmem>>, vector<1x16x8xf32>
    %103 = vector.shape_cast %102 : vector<1x16x8xf32> to vector<16x8xf32>
    %cst_64 = arith.constant dense<0.000000e+00> : vector<8x16xf32>
    %104 = tpu.matmul %99, %101, %cst_64 {dimension_numbers = #tpu.dot_dimension_numbers<[1], [1], [0], [0], [0, 0, 1, 0], [], []>} : vector<8x8xf32>, vector<16x8xf32>, vector<8x16xf32> -> vector<8x16xf32>
    %cst_65 = arith.constant 0.353553385 : f32
    %105 = vector.broadcast %cst_65 : f32 to vector<8x16xf32>
    %106 = arith.mulf %104, %105 : vector<8x16xf32>
    %cst_66 = arith.constant -1.000000e+09 : f32
    %107 = vector.shape_cast %4 : vector<1x16xi1> to vector<1x16xi1>
    %108 = vector.broadcast %107 : vector<1x16xi1> to vector<8x16xi1>
    %109 = vector.broadcast %cst_66 : f32 to vector<8x16xf32>
    %110 = arith.select %108, %109, %106 : vector<8x16xi1>, vector<8x16xf32>
    %cst_67 = arith.constant dense<0xFF800000> : vector<8xf32>
    %111 = vector.multi_reduction <maximumf>, %110, %cst_67 [1] : vector<8x16xf32> to vector<8xf32>
    %112 = vector.shape_cast %111 : vector<8xf32> to vector<8x1xf32>
    %113 = vector.broadcast %112 : vector<8x1xf32> to vector<8x16xf32>
    %114 = arith.subf %110, %113 : vector<8x16xf32>
    %115 = math.exp %114 : vector<8x16xf32>
    %cst_68 = arith.constant dense<0.000000e+00> : vector<8xf32>
    %116 = vector.multi_reduction <add>, %115, %cst_68 [1] : vector<8x16xf32> to vector<8xf32>
    %117 = vector.shape_cast %116 : vector<8xf32> to vector<8x1xf32>
    %118 = tpu.reciprocal %117 {approx = true} : vector<8x1xf32> -> vector<8x1xf32>
    %119 = arith.mulf %117, %118 : vector<8x1xf32>
    %cst_69 = arith.constant 2.000000e+00 : f32
    %120 = vector.broadcast %cst_69 : f32 to vector<8x1xf32>
    %121 = arith.subf %120, %119 : vector<8x1xf32>
    %122 = arith.mulf %118, %121 : vector<8x1xf32>
    %123 = vector.broadcast %122 : vector<8x1xf32> to vector<8x16xf32>
    %124 = arith.mulf %115, %123 : vector<8x16xf32>
    %cst_70 = arith.constant dense<0.000000e+00> : vector<8x8xf32>
    %125 = tpu.matmul %124, %103, %cst_70 {dimension_numbers = #tpu.dot_dimension_numbers<[1], [0], [0], [1], [0, 0, 1, 1], [], []>} : vector<8x16xf32>, vector<16x8xf32>, vector<8x8xf32> -> vector<8x8xf32>
    %c0_71 = arith.constant 0 : index
    %c0_72 = arith.constant 0 : index
    %c24_73 = arith.constant 24 : index
    %126 = vector.load %arg6[%c0_71, %c0_72, %c24_73] : memref<1x8x32xf32, #tpu.memory_space<vmem>>, vector<1x8x8xf32>
    %127 = vector.shape_cast %126 : vector<1x8x8xf32> to vector<8x8xf32>
    %128 = vector.shape_cast %125 : vector<8x8xf32> to vector<1x8x8xf32>
    tpu.vector_store %arg6[%c0_71, %c0_72, %c24_73], %128 {strides = array<i32>} : memref<1x8x32xf32, #tpu.memory_space<vmem>>, vector<1x8x8xf32>,
    return
  }
  func.func @transform_0(%arg0: i32, %arg1: i32) -> (i32, i32, i32) {
    %c0_i32 = arith.constant 0 : i32
    %c0_i32_0 = arith.constant 0 : i32
    return %arg0, %c0_i32, %arg1 : i32, i32, i32
  }
  func.func @transform_1(%arg0: i32, %arg1: i32) -> (i32, i32, i32) {
    %c0_i32 = arith.constant 0 : i32
    %c0_i32_0 = arith.constant 0 : i32
    return %arg0, %c0_i32, %arg1 : i32, i32, i32
  }
  func.func @transform_2(%arg0: i32, %arg1: i32) -> (i32, i32, i32) {
    %c0_i32 = arith.constant 0 : i32
    %c0_i32_0 = arith.constant 0 : i32
    return %arg0, %c0_i32, %arg1 : i32, i32, i32
  }
  func.func @transform_3(%arg0: i32, %arg1: i32) -> (i32, i32, i32) {
    %c0_i32 = arith.constant 0 : i32
    %c0_i32_0 = arith.constant 0 : i32
    %c0_i32_1 = arith.constant 0 : i32
    return %arg0, %c0_i32, %c0_i32_0 : i32, i32, i32
  }
  func.func @transform_4(%arg0: i32, %arg1: i32) -> (i32, i32, i32) {
    %c0_i32 = arith.constant 0 : i32
    %c0_i32_0 = arith.constant 0 : i32
    return %arg0, %c0_i32, %arg1 : i32, i32, i32
  }
}

module attributes {stable_mosaic.version = 11 : i64} {
  func.func @_ffn_kernel(%arg0: i32, %arg1: i32, %arg2: memref<16x32xf32, #tpu.memory_space<vmem>>, %arg3: memref<1x32xf32, #tpu.memory_space<vmem>>, %arg4: memref<1x32xf32, #tpu.memory_space<vmem>>, %arg5: memref<32x64xf32, #tpu.memory_space<vmem>>, %arg6: memref<1x64xf32, #tpu.memory_space<vmem>>, %arg7: memref<64x32xf32, #tpu.memory_space<vmem>>, %arg8: memref<1x32xf32, #tpu.memory_space<vmem>>, %arg9: memref<16x32xf32, #tpu.memory_space<vmem>>, %arg10: memref<16x32xf32, #tpu.memory_space<vmem>>, %arg11: memref<16x32xf32, #tpu.memory_space<vmem>>) attributes {dimension_semantics = [#tpu.dimension_semantics<parallel>, #tpu.dimension_semantics<arbitrary>], iteration_bounds = array<i64: 1, 1>, scalar_prefetch = 0 : i64, scratch_operands = 2 : i64, tpu.core_type = #tpu.core_type<tc>, window_params = [{transform_indices = @transform_0, window_bounds = array<i64: 16, 32>}, {pipeline_mode = #tpu.pipeline_mode<synchronous>, transform_indices = @transform_1, window_bounds = array<i64: 1, 32>}, {pipeline_mode = #tpu.pipeline_mode<synchronous>, transform_indices = @transform_2, window_bounds = array<i64: 1, 32>}, {transform_indices = @transform_3, window_bounds = array<i64: 32, 64>}, {transform_indices = @transform_4, window_bounds = array<i64: 1, 64>}, {transform_indices = @transform_5, window_bounds = array<i64: 64, 32>}, {pipeline_mode = #tpu.pipeline_mode<synchronous>, transform_indices = @transform_6, window_bounds = array<i64: 1, 32>}, {transform_indices = @transform_7, window_bounds = array<i64: 16, 32>}]} {
    %c0_i32 = arith.constant 0 : i32
    %0 = arith.cmpi eq, %arg1, %c0_i32 : i32
    %1 = arith.extui %0 : i1 to i32
    %c0_i32_0 = arith.constant 0 : i32
    %2 = arith.cmpi ne, %1, %c0_i32_0 : i32
    scf.if %2 {
      %c0_16 = arith.constant 0 : index
      %c0_17 = arith.constant 0 : index
      %19 = vector.load %arg2[%c0_16, %c0_17] : memref<16x32xf32, #tpu.memory_space<vmem>>, vector<16x32xf32>
      %cst_18 = arith.constant dense<0.000000e+00> : vector<16xf32>
      %20 = vector.multi_reduction <add>, %19, %cst_18 [1] : vector<16x32xf32> to vector<16xf32>
      %21 = vector.shape_cast %20 : vector<16xf32> to vector<16x1xf32>
      %cst_19 = arith.constant 3.200000e+01 : f32
      %22 = vector.broadcast %cst_19 : f32 to vector<16x1xf32>
      %23 = arith.divf %21, %22 : vector<16x1xf32>
      %24 = vector.broadcast %23 : vector<16x1xf32> to vector<16x32xf32>
      %25 = arith.subf %19, %24 : vector<16x32xf32>
      %26 = arith.mulf %25, %25 : vector<16x32xf32>
      %cst_20 = arith.constant dense<0.000000e+00> : vector<16xf32>
      %27 = vector.multi_reduction <add>, %26, %cst_20 [1] : vector<16x32xf32> to vector<16xf32>
      %28 = vector.shape_cast %27 : vector<16xf32> to vector<16x1xf32>
      %cst_21 = arith.constant 3.100000e+01 : f32
      %29 = vector.broadcast %cst_21 : f32 to vector<16x1xf32>
      %30 = arith.divf %28, %29 : vector<16x1xf32>
      %31 = math.sqrt %30 : vector<16x1xf32>
      %c0_22 = arith.constant 0 : index
      %c0_23 = arith.constant 0 : index
      %32 = vector.load %arg3[%c0_22, %c0_23] : memref<1x32xf32, #tpu.memory_space<vmem>>, vector<1x32xf32>
      %cst_24 = arith.constant 9.99999997E-7 : f32
      %33 = vector.broadcast %cst_24 : f32 to vector<16x1xf32>
      %34 = arith.addf %31, %33 : vector<16x1xf32>
      %cst_25 = arith.constant 1.000000e+00 : f32
      %35 = vector.broadcast %cst_25 : f32 to vector<16x1xf32>
      %36 = arith.divf %35, %34 : vector<16x1xf32>
      %37 = vector.broadcast %36 : vector<16x1xf32> to vector<16x32xf32>
      %38 = arith.mulf %25, %37 : vector<16x32xf32>
      %39 = vector.broadcast %32 : vector<1x32xf32> to vector<16x32xf32>
      %40 = arith.mulf %39, %38 : vector<16x32xf32>
      %c0_26 = arith.constant 0 : index
      %c0_27 = arith.constant 0 : index
      %41 = vector.load %arg4[%c0_26, %c0_27] : memref<1x32xf32, #tpu.memory_space<vmem>>, vector<1x32xf32>
      %42 = vector.broadcast %41 : vector<1x32xf32> to vector<16x32xf32>
      %43 = arith.addf %40, %42 : vector<16x32xf32>
      %c0_28 = arith.constant 0 : index
      %c0_29 = arith.constant 0 : index
      %44 = vector.load %arg10[%c0_28, %c0_29] : memref<16x32xf32, #tpu.memory_space<vmem>>, vector<16x32xf32>
      tpu.vector_store %arg10[%c0_28, %c0_29], %43 {strides = array<i32>} : memref<16x32xf32, #tpu.memory_space<vmem>>, vector<16x32xf32>,
      %cst_30 = arith.constant 0.000000e+00 : f32
      %45 = vector.broadcast %cst_30 : f32 to vector<16x32xf32>
      %c0_31 = arith.constant 0 : index
      %c0_32 = arith.constant 0 : index
      %46 = vector.load %arg11[%c0_31, %c0_32] : memref<16x32xf32, #tpu.memory_space<vmem>>, vector<16x32xf32>
      tpu.vector_store %arg11[%c0_31, %c0_32], %45 {strides = array<i32>} : memref<16x32xf32, #tpu.memory_space<vmem>>, vector<16x32xf32>,
    } else {
    }
    %c0 = arith.constant 0 : index
    %c0_1 = arith.constant 0 : index
    %3 = vector.load %arg10[%c0, %c0_1] : memref<16x32xf32, #tpu.memory_space<vmem>>, vector<16x32xf32>
    %c0_2 = arith.constant 0 : index
    %c0_3 = arith.constant 0 : index
    %4 = vector.load %arg5[%c0_2, %c0_3] : memref<32x64xf32, #tpu.memory_space<vmem>>, vector<32x64xf32>
    %cst = arith.constant dense<0.000000e+00> : vector<16x64xf32>
    %5 = tpu.matmul %3, %4, %cst {dimension_numbers = #tpu.dot_dimension_numbers<[1], [0], [0], [1], [0, 0, 1, 1], [], []>} : vector<16x32xf32>, vector<32x64xf32>, vector<16x64xf32> -> vector<16x64xf32>
    %c0_4 = arith.constant 0 : index
    %c0_5 = arith.constant 0 : index
    %6 = vector.load %arg6[%c0_4, %c0_5] : memref<1x64xf32, #tpu.memory_space<vmem>>, vector<1x64xf32>
    %7 = vector.broadcast %6 : vector<1x64xf32> to vector<16x64xf32>
    %8 = arith.addf %5, %7 : vector<16x64xf32>
    %cst_6 = arith.constant 0.000000e+00 : f32
    %9 = vector.broadcast %cst_6 : f32 to vector<16x64xf32>
    %10 = arith.maximumf %8, %9 : vector<16x64xf32>
    %c0_7 = arith.constant 0 : index
    %c0_8 = arith.constant 0 : index
    %11 = vector.load %arg11[%c0_7, %c0_8] : memref<16x32xf32, #tpu.memory_space<vmem>>, vector<16x32xf32>
    %c0_9 = arith.constant 0 : index
    %c0_10 = arith.constant 0 : index
    %12 = vector.load %arg7[%c0_9, %c0_10] : memref<64x32xf32, #tpu.memory_space<vmem>>, vector<64x32xf32>
    %cst_11 = arith.constant dense<0.000000e+00> : vector<16x32xf32>
    %13 = tpu.matmul %10, %12, %cst_11 {dimension_numbers = #tpu.dot_dimension_numbers<[1], [0], [0], [1], [0, 0, 1, 1], [], []>} : vector<16x64xf32>, vector<64x32xf32>, vector<16x32xf32> -> vector<16x32xf32>
    %14 = arith.addf %11, %13 : vector<16x32xf32>
    %c0_12 = arith.constant 0 : index
    %c0_13 = arith.constant 0 : index
    %15 = vector.load %arg11[%c0_12, %c0_13] : memref<16x32xf32, #tpu.memory_space<vmem>>, vector<16x32xf32>
    tpu.vector_store %arg11[%c0_12, %c0_13], %14 {strides = array<i32>} : memref<16x32xf32, #tpu.memory_space<vmem>>, vector<16x32xf32>,
    %c0_i32_14 = arith.constant 0 : i32
    %16 = arith.cmpi eq, %arg1, %c0_i32_14 : i32
    %17 = arith.extui %16 : i1 to i32
    %c0_i32_15 = arith.constant 0 : i32
    %18 = arith.cmpi ne, %17, %c0_i32_15 : i32
    scf.if %18 {
      %c0_16 = arith.constant 0 : index
      %c0_17 = arith.constant 0 : index
      %19 = vector.load %arg11[%c0_16, %c0_17] : memref<16x32xf32, #tpu.memory_space<vmem>>, vector<16x32xf32>
      %c0_18 = arith.constant 0 : index
      %c0_19 = arith.constant 0 : index
      %20 = vector.load %arg8[%c0_18, %c0_19] : memref<1x32xf32, #tpu.memory_space<vmem>>, vector<1x32xf32>
      %21 = vector.broadcast %20 : vector<1x32xf32> to vector<16x32xf32>
      %22 = arith.addf %19, %21 : vector<16x32xf32>
      %c0_20 = arith.constant 0 : index
      %c0_21 = arith.constant 0 : index
      %23 = vector.load %arg2[%c0_20, %c0_21] : memref<16x32xf32, #tpu.memory_space<vmem>>, vector<16x32xf32>
      %24 = arith.addf %22, %23 : vector<16x32xf32>
      %c0_22 = arith.constant 0 : index
      %c0_23 = arith.constant 0 : index
      %25 = vector.load %arg9[%c0_22, %c0_23] : memref<16x32xf32, #tpu.memory_space<vmem>>, vector<16x32xf32>
      tpu.vector_store %arg9[%c0_22, %c0_23], %24 {strides = array<i32>} : memref<16x32xf32, #tpu.memory_space<vmem>>, vector<16x32xf32>,
    } else {
    }
    return
  }
  func.func @transform_0(%arg0: i32, %arg1: i32) -> (i32, i32) {
    %c0_i32 = arith.constant 0 : i32
    %c0_i32_0 = arith.constant 0 : i32
    return %arg0, %c0_i32 : i32, i32
  }
  func.func @transform_1(%arg0: i32, %arg1: i32) -> (i32, i32) {
    %c0_i32 = arith.constant 0 : i32
    %c0_i32_0 = arith.constant 0 : i32
    %c0_i32_1 = arith.constant 0 : i32
    return %c0_i32, %c0_i32_0 : i32, i32
  }
  func.func @transform_2(%arg0: i32, %arg1: i32) -> (i32, i32) {
    %c0_i32 = arith.constant 0 : i32
    %c0_i32_0 = arith.constant 0 : i32
    %c0_i32_1 = arith.constant 0 : i32
    return %c0_i32, %c0_i32_0 : i32, i32
  }
  func.func @transform_3(%arg0: i32, %arg1: i32) -> (i32, i32) {
    %c0_i32 = arith.constant 0 : i32
    %c0_i32_0 = arith.constant 0 : i32
    return %c0_i32, %arg1 : i32, i32
  }
  func.func @transform_4(%arg0: i32, %arg1: i32) -> (i32, i32) {
    %c0_i32 = arith.constant 0 : i32
    %c0_i32_0 = arith.constant 0 : i32
    return %c0_i32, %arg1 : i32, i32
  }
  func.func @transform_5(%arg0: i32, %arg1: i32) -> (i32, i32) {
    %c0_i32 = arith.constant 0 : i32
    %c0_i32_0 = arith.constant 0 : i32
    return %arg1, %c0_i32 : i32, i32
  }
  func.func @transform_6(%arg0: i32, %arg1: i32) -> (i32, i32) {
    %c0_i32 = arith.constant 0 : i32
    %c0_i32_0 = arith.constant 0 : i32
    %c0_i32_1 = arith.constant 0 : i32
    return %c0_i32, %c0_i32_0 : i32, i32
  }
  func.func @transform_7(%arg0: i32, %arg1: i32) -> (i32, i32) {
    %c0_i32 = arith.constant 0 : i32
    %c0_i32_0 = arith.constant 0 : i32
    return %arg0, %c0_i32 : i32, i32
  }
}

</mosaic_0001>

<llo_original>
// kernel: decoder_layer_forward.10
$region0: #{decoder_layer_forward.10}
  #allocation0 [shape = 'u32[]', space=smem, size = 0x4, offset = 0x4, fixed_abs, tag = 'smem constant byte address 0x4 - core index']
  #allocation1 [shape = 'u32[72,128]{1,0:T(1,128)}', space=vmem, size = 0x9000, scoped, tag = 'internal scratch']
  %s0 = inlined_call_operand.vmem [shape: f32[16,32], index: 0, kind: input, shape index: {}]
  %s1 = inlined_call_operand.hbm [shape: f32[32,32], index: 1, kind: input, shape index: {}]
  %s2 = inlined_call_operand.vmem [shape: f32[1,32], index: 2, kind: input, shape index: {}]
  %s3 = inlined_call_operand.vmem [shape: f32[16,32], index: 3, kind: input, shape index: {}]
  %s4 = inlined_call_operand.vmem [shape: f32[16,32], index: 4, kind: output, shape index: {}]
  %s5 = sld [smem:[#allocation0]]
  $region30: #{decoder_layer_forward.10} parent=0
    _
  %s7 = ssub.s32 1, %s5
  %s8 = scalar_select 0, %s7, %s5
  $region1: #{decoder_layer_forward.10} parent=0
    #allocation2 [shape = 'u8[16384]{0}', space=vmem, size = 0x4000, scoped, tag = 'input window, operand 1, single buffered']
    #allocation3 [shape = 's32[1]{0}', space=sflag, size = 0x4, scoped, tag = 'scoped memory for decoder_layer_forward.10']
    %9 = vsyncpa [#allocation3], 0
    // Predicated region
    $region2: #{decoder_layer_forward.10} parent=1 // pred_check
      _
    $region3: #{decoder_layer_forward.10} parent=1 // pred_check_branch
      %11 = sbr.rel (0) target = $region5
    $region4: #{decoder_layer_forward.10} parent=1 // pred_region
      _
    $region5: #{decoder_layer_forward.10} parent=1 // pred_fallthru
      _
    // Predicated region
    $region6: #{decoder_layer_forward.10} parent=1 // pred_check
      _
    $region7: #{decoder_layer_forward.10} parent=1 // pred_check_branch
      %13 = sbr.rel (0) target = $region9
    $region8: #{decoder_layer_forward.10} parent=1 // pred_region
      %15 = vsyncadd [#allocation3], 0
      %s16 = sshll.u32 %s1, 4
      %s17 = int_to_ptr.hbm [resolvable:$true] %s16
      %s18 = sshll.u32 [#allocation2], 4
      %s19 = int_to_ptr.vmem [resolvable:$true] %s18
      %24 = dma.hbm_to_vmem [thread:$0]  %s17, 512, %s19, [#allocation3], 128, 128, 8
    $region9: #{decoder_layer_forward.10} parent=1 // pred_fallthru
      _
    // Predicated region
    $region10: #{decoder_layer_forward.10} parent=1 // pred_check
      _
    $region11: #{decoder_layer_forward.10} parent=1 // pred_check_branch
      %26 = sbr.rel (0) target = $region13
    $region12: #{decoder_layer_forward.10} parent=1 // pred_region
      _
    $region13: #{decoder_layer_forward.10} parent=1 // pred_fallthru
      _
    // Predicated region
    $region14: #{decoder_layer_forward.10} parent=1 // pred_check
      _
    $region15: #{decoder_layer_forward.10} parent=1 // pred_check_branch
      %28 = sbr.rel (0) target = $region17
    $region16: #{decoder_layer_forward.10} parent=1 // pred_region
      _
    $region17: #{decoder_layer_forward.10} parent=1 // pred_fallthru
      _
    // Predicated region
    $region18: #{decoder_layer_forward.10} parent=1 // pred_check
      _
    $region19: #{decoder_layer_forward.10} parent=1 // pred_check_branch
      %30 = sbr.rel (0) target = $region21
    $region20: #{decoder_layer_forward.10} parent=1 // pred_region
      %32 = dma.done [#allocation3], 512
    $region21: #{decoder_layer_forward.10} parent=1 // pred_fallthru
      _
    %v33 = vld [vmem:[%s0] sm:$0xff]
    %v34 = vld [vmem:[%s0 + $0x8] sm:$0xff]
    %v35 = vld [vmem:[#allocation2] sm:$0xff]
    %v36 = vld [vmem:[#allocation2 + $0x8] sm:$0xff]
    %v37 = vld [vmem:[#allocation2 + $0x10] sm:$0xff]
    %v38 = vld [vmem:[#allocation2 + $0x18] sm:$0xff]
    %v39 = vld [vmem:[%s2] sm:$0x1]
    %v41 = vperm.slane %v39, 0
    %vm43 = vcmask 261120
    %v45 = vsel %vm43, %v33, 0
    %v48 = vsel %vm43, %v34, 0
    %50 = vmatpush.msra.mxu0 0.0
    %51 = vmatpush.msra.mxu0 0.0
    %52 = vmatpush.msra.mxu0 0.0
    %53 = vmatpush.msra.mxu0 0.0
    %54 = vmatpush.msra.mxu0 0.0
    %55 = vmatpush.msra.mxu0 0.0
    %56 = vmatpush.msra.mxu0 0.0
    %57 = vmatpush.msra.mxu0 0.0
    %58 = vmatpush.msra.mxu0 0.0
    %59 = vmatpush.msra.mxu0 0.0
    %60 = vmatpush.msra.mxu0 0.0
    %61 = vmatpush.msra.mxu0 0.0
    %62 = vmatpush.msra.mxu0 %v38
    %63 = vmatpush.msra.mxu0 %v37
    %64 = vmatpush.msra.mxu0 %v36
    %65 = vmatpush.msra.mxu0 %v35
    %66 = vmatmul.f32.gmra.mxu0 %v45
    %v67 = vpop.f32.mrf.mxu0
    %v68 = vadd.f32 %v41, %v67
    %69 = vmatmul.f32.gmra.mxu0 %v48
    %v70 = vpop.f32.mrf.mxu0
    %v71 = vadd.f32 %v41, %v70
    %72 = vdwg.mxu0
    %v73 = vld [vmem:[%s3] sm:$0xff]
    %v74 = vld [vmem:[%s3 + $0x8] sm:$0xff]
    %v75 = vadd.f32 %v68, %v73
    %v76 = vadd.f32 %v71, %v74
    %77 = vst.msk [vmem:[%s4] sm:$0xff] %vm43, %v75
    %78 = vst.msk [vmem:[%s4 + $0x8] sm:$0xff] %vm43, %v76
    // Predicated region
    $region22: #{decoder_layer_forward.10} parent=1 // pred_check
      _
    $region23: #{decoder_layer_forward.10} parent=1 // pred_check_branch
      %80 = sbr.rel (0) target = $region25
    $region24: #{decoder_layer_forward.10} parent=1 // pred_region
      _
    $region25: #{decoder_layer_forward.10} parent=1 // pred_fallthru
      _
    // Predicated region
    $region26: #{decoder_layer_forward.10} parent=1 // pred_check
      _
    $region27: #{decoder_layer_forward.10} parent=1 // pred_check_branch
      %82 = sbr.rel (0) target = $region29
    $region28: #{decoder_layer_forward.10} parent=1 // pred_region
      _
    $region29: #{decoder_layer_forward.10} parent=1 // pred_fallthru
      _
    %83 = vsyncpa [#allocation3], 1

// kernel: decoder_layer_forward.8
$region0: #{decoder_layer_forward.8}
  #allocation0 [shape = 'u32[]', space=smem, size = 0x4, offset = 0x4, fixed_abs, tag = 'smem constant byte address 0x4 - core index']
  #allocation1 [shape = 'u32[72,128]{1,0:T(1,128)}', space=vmem, size = 0x9000, scoped, tag = 'internal scratch']
  %s0 = inlined_call_operand.vmem [shape: f32[16,32], index: 0, kind: input, shape index: {}]
  %s1 = inlined_call_operand.vmem [shape: f32[1,32], index: 1, kind: input, shape index: {}]
  %s2 = inlined_call_operand.vmem [shape: f32[1,32], index: 2, kind: input, shape index: {}]
  %s3 = inlined_call_operand.hbm [shape: f32[32,32], index: 3, kind: input, shape index: {}]
  %s4 = inlined_call_operand.hbm [shape: f32[32,32], index: 4, kind: input, shape index: {}]
  %s5 = inlined_call_operand.hbm [shape: f32[32,32], index: 5, kind: input, shape index: {}]
  %s6 = inlined_call_operand.vmem [shape: f32[1,32], index: 6, kind: input, shape index: {}]
  %s7 = inlined_call_operand.vmem [shape: f32[1,32], index: 7, kind: input, shape index: {}]
  %s8 = inlined_call_operand.vmem [shape: f32[1,32], index: 8, kind: input, shape index: {}]
  %s9 = inlined_call_operand.vmem [shape: f32[16,32], index: 9, kind: output, shape index: {0}]
  %s10 = inlined_call_operand.vmem [shape: f32[16,32], index: 10, kind: output, shape index: {1}]
  %s11 = inlined_call_operand.vmem [shape: f32[16,32], index: 11, kind: output, shape index: {2}]
  %12 = xla_tuple %s9, %s10, %s11
  %s13 = sld [smem:[#allocation0]]
  $region74: #{decoder_layer_forward.8} parent=0
    _
  %s15 = ssub.s32 1, %s13
  %s16 = scalar_select 0, %s15, %s13
  $region1: #{decoder_layer_forward.8} parent=0
    #allocation2 [shape = 'u8[16384]{0}', space=vmem, size = 0x4000, scoped, tag = 'input window, operand 3, single buffered']
    #allocation3 [shape = 's32[1]{0}', space=sflag, size = 0x4, scoped, tag = 'scoped memory for decoder_layer_forward.8']
    #allocation4 [shape = 'u8[16384]{0}', space=vmem, size = 0x4000, scoped, tag = 'input window, operand 4, single buffered']
    #allocation5 [shape = 's32[1]{0}', space=sflag, size = 0x4, scoped, tag = 'scoped memory for decoder_layer_forward.8']
    #allocation6 [shape = 'u8[16384]{0}', space=vmem, size = 0x4000, scoped, tag = 'input window, operand 5, single buffered']
    %17 = vsyncpa [#allocation3], 0
    %18 = vsyncpa [#allocation5], 0
    // Predicated region
    $region2: #{decoder_layer_forward.8} parent=1 // pred_check
      _
    $region3: #{decoder_layer_forward.8} parent=1 // pred_check_branch
      %20 = sbr.rel (0) target = $region5
    $region4: #{decoder_layer_forward.8} parent=1 // pred_region
      _
    $region5: #{decoder_layer_forward.8} parent=1 // pred_fallthru
      _
    // Predicated region
    $region6: #{decoder_layer_forward.8} parent=1 // pred_check
      _
    $region7: #{decoder_layer_forward.8} parent=1 // pred_check_branch
      %22 = sbr.rel (0) target = $region9
    $region8: #{decoder_layer_forward.8} parent=1 // pred_region
      _
    $region9: #{decoder_layer_forward.8} parent=1 // pred_fallthru
      _
    // Predicated region
    $region10: #{decoder_layer_forward.8} parent=1 // pred_check
      _
    $region11: #{decoder_layer_forward.8} parent=1 // pred_check_branch
      %24 = sbr.rel (0) target = $region13
    $region12: #{decoder_layer_forward.8} parent=1 // pred_region
      _
    $region13: #{decoder_layer_forward.8} parent=1 // pred_fallthru
      _
    // Predicated region
    $region14: #{decoder_layer_forward.8} parent=1 // pred_check
      _
    $region15: #{decoder_layer_forward.8} parent=1 // pred_check_branch
      %26 = sbr.rel (0) target = $region17
    $region16: #{decoder_layer_forward.8} parent=1 // pred_region
      %28 = vsyncadd [#allocation3], 0
      %s29 = sshll.u32 %s3, 4
      %s30 = int_to_ptr.hbm [resolvable:$true] %s29
      %s31 = sshll.u32 [#allocation2], 4
      %s32 = int_to_ptr.vmem [resolvable:$true] %s31
      %37 = dma.hbm_to_vmem [thread:$0]  %s30, 512, %s32, [#allocation3], 128, 128, 8
    $region17: #{decoder_layer_forward.8} parent=1 // pred_fallthru
      _
    // Predicated region
    $region18: #{decoder_layer_forward.8} parent=1 // pred_check
      _
    $region19: #{decoder_layer_forward.8} parent=1 // pred_check_branch
      %39 = sbr.rel (0) target = $region21
    $region20: #{decoder_layer_forward.8} parent=1 // pred_region
      %41 = vsyncadd [#allocation5], 0
      %s42 = sshll.u32 %s4, 4
      %s43 = int_to_ptr.hbm [resolvable:$true] %s42
      %s44 = sshll.u32 [#allocation4], 4
      %s45 = int_to_ptr.vmem [resolvable:$true] %s44
      %50 = dma.hbm_to_vmem [thread:$0]  %s43, 512, %s45, [#allocation5], 128, 128, 8
    $region21: #{decoder_layer_forward.8} parent=1 // pred_fallthru
      _
    // Predicated region
    $region22: #{decoder_layer_forward.8} parent=1 // pred_check
      _
    $region23: #{decoder_layer_forward.8} parent=1 // pred_check_branch
      %52 = sbr.rel (0) target = $region25
    $region24: #{decoder_layer_forward.8} parent=1 // pred_region
      %54 = vsyncadd [#allocation5], 0
      %s55 = sshll.u32 %s5, 4
      %s56 = int_to_ptr.hbm [resolvable:$true] %s55
      %s57 = sshll.u32 [#allocation6], 4
      %s58 = int_to_ptr.vmem [resolvable:$true] %s57
      %63 = dma.hbm_to_vmem [thread:$0]  %s56, 512, %s58, [#allocation5], 128, 128, 8
    $region25: #{decoder_layer_forward.8} parent=1 // pred_fallthru
      _
    // Predicated region
    $region26: #{decoder_layer_forward.8} parent=1 // pred_check
      _
    $region27: #{decoder_layer_forward.8} parent=1 // pred_check_branch
      %65 = sbr.rel (0) target = $region29
    $region28: #{decoder_layer_forward.8} parent=1 // pred_region
      _
    $region29: #{decoder_layer_forward.8} parent=1 // pred_fallthru
      _
    // Predicated region
    $region30: #{decoder_layer_forward.8} parent=1 // pred_check
      _
    $region31: #{decoder_layer_forward.8} parent=1 // pred_check_branch
      %67 = sbr.rel (0) target = $region33
    $region32: #{decoder_layer_forward.8} parent=1 // pred_region
      _
    $region33: #{decoder_layer_forward.8} parent=1 // pred_fallthru
      _
    // Predicated region
    $region34: #{decoder_layer_forward.8} parent=1 // pred_check
      _
    $region35: #{decoder_layer_forward.8} parent=1 // pred_check_branch
      %69 = sbr.rel (0) target = $region37
    $region36: #{decoder_layer_forward.8} parent=1 // pred_region
      _
    $region37: #{decoder_layer_forward.8} parent=1 // pred_fallthru
      _
    // Predicated region
    $region38: #{decoder_layer_forward.8} parent=1 // pred_check
      _
    $region39: #{decoder_layer_forward.8} parent=1 // pred_check_branch
      %71 = sbr.rel (0) target = $region41
    $region40: #{decoder_layer_forward.8} parent=1 // pred_region
      %73 = dma.done [#allocation3], 512
    $region41: #{decoder_layer_forward.8} parent=1 // pred_fallthru
      _
    // Predicated region
    $region42: #{decoder_layer_forward.8} parent=1 // pred_check
      _
    $region43: #{decoder_layer_forward.8} parent=1 // pred_check_branch
      %75 = sbr.rel (0) target = $region45
    $region44: #{decoder_layer_forward.8} parent=1 // pred_region
      %77 = dma.done [#allocation5], 512
    $region45: #{decoder_layer_forward.8} parent=1 // pred_fallthru
      _
    // Predicated region
    $region46: #{decoder_layer_forward.8} parent=1 // pred_check
      _
    $region47: #{decoder_layer_forward.8} parent=1 // pred_check_branch
      %79 = sbr.rel (0) target = $region49
    $region48: #{decoder_layer_forward.8} parent=1 // pred_region
      %81 = dma.done [#allocation5], 512
    $region49: #{decoder_layer_forward.8} parent=1 // pred_fallthru
      _
    %v82 = vld [vmem:[%s0] sm:$0xff]
    %v83 = vld [vmem:[%s0 + $0x8] sm:$0xff]
    %vm84 = vcmask 261120
    %v85 = vsel %vm84, %v82, 0.0
    %86 = vadd.xlane.f32.xlu0 %v85
    %v87 = vpop.xlane.xlu0 %86
    %v88 = vsel %vm84, %v83, 0.0
    %89 = vadd.xlane.f32.xlu0 %v88
    %v90 = vpop.xlane.xlu0 %89
    %v91 = vrcp.pop 32.0
    %v92 = vmul.f32 32.0, %v91
    %v93 = vsub.f32 1.0, %v92
    %v94 = vmul.f32 %v91, %v93
    %v95 = vadd.f32 %v91, %v94
    %vm96 = vweird.f32 %v91
    %v97 = vsel %vm96, %v91, %v95
    %v98 = vmul.f32 %v87, %v97
    %v99 = vmul.f32 %v90, %v97
    %v100 = vsub.f32 %v82, %v98
    %v101 = vsub.f32 %v83, %v99
    %v102 = vmul.f32 %v100, %v100
    %v103 = vmul.f32 %v101, %v101
    %v104 = vsel %vm84, %v102, 0.0
    %105 = vadd.xlane.f32.xlu0 %v104
    %v106 = vpop.xlane.xlu0 %105
    %v107 = vsel %vm84, %v103, 0.0
    %108 = vadd.xlane.f32.xlu0 %v107
    %v109 = vpop.xlane.xlu0 %108
    %v110 = vrcp.pop 31.0
    %v111 = vmul.f32 31.0, %v110
    %v112 = vsub.f32 1.0, %v111
    %v113 = vmul.f32 %v110, %v112
    %v114 = vadd.f32 %v110, %v113
    %vm115 = vweird.f32 %v110
    %v116 = vsel %vm115, %v110, %v114
    %v117 = vmul.f32 %v106, %v116
    %v118 = vmul.f32 %v109, %v116
    %v119 = vrsqrt.pop %v117
    %v120 = vmul.f32 %v119, %v117
    %v121 = vmul.f32 %v120, %v119
    %v122 = vmul.f32 0.5, %v121
    %v123 = vsub.f32 1.5, %v122
    %v124 = vmul.f32 %v119, %v123
    %v125 = vmul.f32 %v117, %v124
    %vm126 = vcmp.eq.f32.partialorder %v117, inf
    %v127 = vsel %vm126, %v117, %v125
    %vm128 = vcmp.eq.f32.partialorder %v117, 0.0
    %v129 = vand.u32 %v117, 2147483648
    %v130 = vsel %vm128, %v129, %v127
    %v131 = vrsqrt.pop %v118
    %v132 = vmul.f32 %v131, %v118
    %v133 = vmul.f32 %v132, %v131
    %v134 = vmul.f32 0.5, %v133
    %v135 = vsub.f32 1.5, %v134
    %v136 = vmul.f32 %v131, %v135
    %v137 = vmul.f32 %v118, %v136
    %vm138 = vcmp.eq.f32.partialorder %v118, inf
    %v139 = vsel %vm138, %v118, %v137
    %vm140 = vcmp.eq.f32.partialorder %v118, 0.0
    %v141 = vand.u32 %v118, 2147483648
    %v142 = vsel %vm140, %v141, %v139
    %v143 = vld [vmem:[%s1] sm:$0x1]
    %v144 = vadd.f32 %v130, 1e-06
    %v145 = vadd.f32 %v142, 1e-06
    %v146 = vrcp.pop %v144
    %v147 = vmul.f32 %v144, %v146
    %v148 = vsub.f32 1.0, %v147
    %v149 = vmul.f32 %v146, %v148
    %v150 = vadd.f32 %v146, %v149
    %vm151 = vweird.f32 %v144
    %vm152 = vweird.f32 %v146
    %vm153 = vmor %vm151, %vm152
    %v154 = vsel %vm153, %v146, %v150
    %v155 = vand.u32 2147483647, %v144
    %vm156 = vcmp.eq.f32.partialorder %v155, 8.507059e+37
    %v157 = vand.u32 %v144, 2147483648
    %v158 = vor.u32 1.1754944e-38, %v157
    %v159 = vsel %vm156, %v158, %v154
    %v160 = vmul.f32 1.0, %v159
    %v161 = vrcp.pop %v145
    %v162 = vmul.f32 %v145, %v161
    %v163 = vsub.f32 1.0, %v162
    %v164 = vmul.f32 %v161, %v163
    %v165 = vadd.f32 %v161, %v164
    %vm166 = vweird.f32 %v145
    %vm167 = vweird.f32 %v161
    %vm168 = vmor %vm166, %vm167
    %v169 = vsel %vm168, %v161, %v165
    %v170 = vand.u32 2147483647, %v145
    %vm171 = vcmp.eq.f32.partialorder %v170, 8.507059e+37
    %v172 = vand.u32 %v145, 2147483648
    %v173 = vor.u32 1.1754944e-38, %v172
    %v174 = vsel %vm171, %v173, %v169
    %v175 = vmul.f32 1.0, %v174
    %v176 = vmul.f32 %v100, %v160
    %v177 = vmul.f32 %v101, %v175
    %v179 = vperm.slane %v143, 0
    %v181 = vmul.f32 %v179, %v176
    %v182 = vmul.f32 %v179, %v177
    %v183 = vld [vmem:[%s2] sm:$0x1]
    %v185 = vperm.slane %v183, 0
    %v187 = vadd.f32 %v181, %v185
    %v188 = vadd.f32 %v182, %v185
    %v189 = vld [vmem:[#allocation2] sm:$0xff]
    %v190 = vld [vmem:[#allocation2 + $0x8] sm:$0xff]
    %v191 = vld [vmem:[#allocation2 + $0x10] sm:$0xff]
    %v192 = vld [vmem:[#allocation2 + $0x18] sm:$0xff]
    %v193 = vld [vmem:[%s6] sm:$0x1]
    %v195 = vperm.slane %v193, 0
    %v198 = vsel %vm84, %v187, 0
    %v201 = vsel %vm84, %v188, 0
    %203 = vmatpush.msra.mxu0 0.0
    %204 = vmatpush.msra.mxu0 0.0
    %205 = vmatpush.msra.mxu0 0.0
    %206 = vmatpush.msra.mxu0 0.0
    %207 = vmatpush.msra.mxu0 0.0
    %208 = vmatpush.msra.mxu0 0.0
    %209 = vmatpush.msra.mxu0 0.0
    %210 = vmatpush.msra.mxu0 0.0
    %211 = vmatpush.msra.mxu0 0.0
    %212 = vmatpush.msra.mxu0 0.0
    %213 = vmatpush.msra.mxu0 0.0
    %214 = vmatpush.msra.mxu0 0.0
    %215 = vmatpush.msra.mxu0 %v192
    %216 = vmatpush.msra.mxu0 %v191
    %217 = vmatpush.msra.mxu0 %v190
    %218 = vmatpush.msra.mxu0 %v189
    %219 = vmatmul.f32.gmra.mxu0 %v198
    %v220 = vpop.f32.mrf.mxu0
    %v221 = vadd.f32 %v195, %v220
    %222 = vmatmul.f32.gmra.mxu0 %v201
    %v223 = vpop.f32.mrf.mxu0
    %v224 = vadd.f32 %v195, %v223
    %225 = vdwg.mxu0
    %226 = vst.msk [vmem:[%s9] sm:$0xff] %vm84, %v221
    %227 = vst.msk [vmem:[%s9 + $0x8] sm:$0xff] %vm84, %v224
    %v228 = vld [vmem:[#allocation4] sm:$0xff]
    %v229 = vld [vmem:[#allocation4 + $0x8] sm:$0xff]
    %v230 = vld [vmem:[#allocation4 + $0x10] sm:$0xff]
    %v231 = vld [vmem:[#allocation4 + $0x18] sm:$0xff]
    %v232 = vld [vmem:[%s7] sm:$0x1]
    %v234 = vperm.slane %v232, 0
    %236 = vmatpush.msra.mxu0 0.0
    %237 = vmatpush.msra.mxu0 0.0
    %238 = vmatpush.msra.mxu0 0.0
    %239 = vmatpush.msra.mxu0 0.0
    %240 = vmatpush.msra.mxu0 0.0
    %241 = vmatpush.msra.mxu0 0.0
    %242 = vmatpush.msra.mxu0 0.0
    %243 = vmatpush.msra.mxu0 0.0
    %244 = vmatpush.msra.mxu0 0.0
    %245 = vmatpush.msra.mxu0 0.0
    %246 = vmatpush.msra.mxu0 0.0
    %247 = vmatpush.msra.mxu0 0.0
    %248 = vmatpush.msra.mxu0 %v231
    %249 = vmatpush.msra.mxu0 %v230
    %250 = vmatpush.msra.mxu0 %v229
    %251 = vmatpush.msra.mxu0 %v228
    %252 = vmatmul.f32.gmra.mxu0 %v198
    %v253 = vpop.f32.mrf.mxu0
    %v254 = vadd.f32 %v234, %v253
    %255 = vmatmul.f32.gmra.mxu0 %v201
    %v256 = vpop.f32.mrf.mxu0
    %v257 = vadd.f32 %v234, %v256
    %258 = vdwg.mxu0
    %259 = vst.msk [vmem:[%s10] sm:$0xff] %vm84, %v254
    %260 = vst.msk [vmem:[%s10 + $0x8] sm:$0xff] %vm84, %v257
    %v261 = vld [vmem:[#allocation6] sm:$0xff]
    %v262 = vld [vmem:[#allocation6 + $0x8] sm:$0xff]
    %v263 = vld [vmem:[#allocation6 + $0x10] sm:$0xff]
    %v264 = vld [vmem:[#allocation6 + $0x18] sm:$0xff]
    %v265 = vld [vmem:[%s8] sm:$0x1]
    %v267 = vperm.slane %v265, 0
    %269 = vmatpush.msra.mxu0 0.0
    %270 = vmatpush.msra.mxu0 0.0
    %271 = vmatpush.msra.mxu0 0.0
    %272 = vmatpush.msra.mxu0 0.0
    %273 = vmatpush.msra.mxu0 0.0
    %274 = vmatpush.msra.mxu0 0.0
    %275 = vmatpush.msra.mxu0 0.0
    %276 = vmatpush.msra.mxu0 0.0
    %277 = vmatpush.msra.mxu0 0.0
    %278 = vmatpush.msra.mxu0 0.0
    %279 = vmatpush.msra.mxu0 0.0
    %280 = vmatpush.msra.mxu0 0.0
    %281 = vmatpush.msra.mxu0 %v264
    %282 = vmatpush.msra.mxu0 %v263
    %283 = vmatpush.msra.mxu0 %v262
    %284 = vmatpush.msra.mxu0 %v261
    %285 = vmatmul.f32.gmra.mxu0 %v198
    %v286 = vpop.f32.mrf.mxu0
    %v287 = vadd.f32 %v267, %v286
    %288 = vmatmul.f32.gmra.mxu0 %v201
    %v289 = vpop.f32.mrf.mxu0
    %v290 = vadd.f32 %v267, %v289
    %291 = vdwg.mxu0
    %292 = vst.msk [vmem:[%s11] sm:$0xff] %vm84, %v287
    %293 = vst.msk [vmem:[%s11 + $0x8] sm:$0xff] %vm84, %v290
    // Predicated region
    $region50: #{decoder_layer_forward.8} parent=1 // pred_check
      _
    $region51: #{decoder_layer_forward.8} parent=1 // pred_check_branch
      %295 = sbr.rel (0) target = $region53
    $region52: #{decoder_layer_forward.8} parent=1 // pred_region
      _
    $region53: #{decoder_layer_forward.8} parent=1 // pred_fallthru
      _
    // Predicated region
    $region54: #{decoder_layer_forward.8} parent=1 // pred_check
      _
    $region55: #{decoder_layer_forward.8} parent=1 // pred_check_branch
      %297 = sbr.rel (0) target = $region57
    $region56: #{decoder_layer_forward.8} parent=1 // pred_region
      _
    $region57: #{decoder_layer_forward.8} parent=1 // pred_fallthru
      _
    // Predicated region
    $region58: #{decoder_layer_forward.8} parent=1 // pred_check
      _
    $region59: #{decoder_layer_forward.8} parent=1 // pred_check_branch
      %299 = sbr.rel (0) target = $region61
    $region60: #{decoder_layer_forward.8} parent=1 // pred_region
      _
    $region61: #{decoder_layer_forward.8} parent=1 // pred_fallthru
      _
    // Predicated region
    $region62: #{decoder_layer_forward.8} parent=1 // pred_check
      _
    $region63: #{decoder_layer_forward.8} parent=1 // pred_check_branch
      %301 = sbr.rel (0) target = $region65
    $region64: #{decoder_layer_forward.8} parent=1 // pred_region
      _
    $region65: #{decoder_layer_forward.8} parent=1 // pred_fallthru
      _
    // Predicated region
    $region66: #{decoder_layer_forward.8} parent=1 // pred_check
      _
    $region67: #{decoder_layer_forward.8} parent=1 // pred_check_branch
      %303 = sbr.rel (0) target = $region69
    $region68: #{decoder_layer_forward.8} parent=1 // pred_region
      _
    $region69: #{decoder_layer_forward.8} parent=1 // pred_fallthru
      _
    // Predicated region
    $region70: #{decoder_layer_forward.8} parent=1 // pred_check
      _
    $region71: #{decoder_layer_forward.8} parent=1 // pred_check_branch
      %305 = sbr.rel (0) target = $region73
    $region72: #{decoder_layer_forward.8} parent=1 // pred_region
      _
    $region73: #{decoder_layer_forward.8} parent=1 // pred_fallthru
      _
    %306 = vsyncpa [#allocation3], 1
    %307 = vsyncpa [#allocation5], 1

// kernel: decoder_layer_forward.9
$region0: #{decoder_layer_forward.9}
  #allocation0 [shape = 'u32[]', space=smem, size = 0x4, offset = 0x4, fixed_abs, tag = 'smem constant byte address 0x4 - core index']
  #allocation1 [shape = 'u32[72,128]{1,0:T(1,128)}', space=vmem, size = 0x9000, scoped, tag = 'internal scratch']
  %s0 = inlined_call_operand.vmem [shape: f32[2,8,32], index: 0, kind: input, shape index: {}]
  %s1 = inlined_call_operand.vmem [shape: f32[2,8,32], index: 1, kind: input, shape index: {}]
  %s2 = inlined_call_operand.vmem [shape: f32[2,8,32], index: 2, kind: input, shape index: {}]
  %s3 = inlined_call_operand.vmem [shape: s8[2,8,8], index: 3, kind: input, shape index: {}]
  %s4 = inlined_call_operand.vmem [shape: f32[2,8,32], index: 4, kind: output, shape index: {}]
  %s5 = sld [smem:[#allocation0]]
  $region49: #{decoder_layer_forward.9} parent=0
    _
  %s7 = ssub.s32 1, %s5
  %s8 = scalar_select 0, %s7, %s5
  loop: start=0, step=1, limit=4
  $region2: #{decoder_layer_forward.9} parent=0 // loop_pre_header
    _
  $region3: #{decoder_layer_forward.9} parent=0 // loop_header
    %s10 = sphi 0, %s14
    %p11 = scmp.ge.s32.totalorder %s10, 4
    %s17 = sphi 0, %s29
    %s18 = sphi 0, %s25
    %s19 = sphi 0, %s17
    %s20 = sphi 0, %s18
    %s21 = sphi 0, %s19
    %s22 = sphi 0, %s20
    %s34 = sphi 0, %s36
    %s37 = sphi 0, %s34
    %s38 = sphi 0, %s37
    %s54 = sphi 0, %s38
    %s62 = sphi 0, %s64
    %s65 = sphi 0, %s62
    %s66 = sphi 0, %s65
    %s82 = sphi 0, %s66
    %s90 = sphi 0, %s92
    %s93 = sphi 0, %s90
    %s94 = sphi 0, %s93
    %s110 = sphi 0, %s94
    %s116 = sphi 0, %s118
    %s119 = sphi 0, %s116
    %s120 = sphi 0, %s119
    %s136 = sphi 0, %s120
    %s144 = sphi 0, %s146
    %s147 = sphi 0, %s144
    %s148 = sphi 0, %s147
    %s164 = sphi 0, %s148
  $region4: #{decoder_layer_forward.9} parent=0 // loop_header_branch
    %13 = sbr.rel (%p11) target = $region8
  $region5: #{decoder_layer_forward.9} parent=0 // loop_body
    %s15 = ssub.s32 %s10, 1
    %s16 = ssub.s32 %s10, 2
    %s23 = sadd.s32 1, %s18
    %p24 = scmp.ge.s32.totalorder %s23, 1
    %s25 = scalar_select %p24, 0, %s23
    %s26 = sadd.s32 1, %s17
    %s27 = scalar_select %p24, %s26, %s17
    %p28 = scmp.ge.s32.totalorder %s27, 2
    %s29 = scalar_select %p28, 0, %s27
    %s30 = ssub.s32 %s17, %s29
    %s31 = ssub.s32 %s18, %s25
    %s32 = sor.u32 %s30, %s31
    %p33 = scmp.eq.s32.totalorder %s32, 0
    %s35 = sadd.s32 %s34, 1
    %s36 = scalar_select %p33, %s34, %s35
    %p39 = pneg %p33
    %p40 = scmp.eq.s32.totalorder %s10, 1
    %p41 = por %p39, %p40
    %p42 = scmp.ne.s32.totalorder %s34, %s37
    %p43 = scmp.eq.s32.totalorder %s10, 0
    %p44 = por %p42, %p43
    %p45 = scmp.ne.s32.totalorder %s34, %s37
    %p46 = scmp.eq.s32.totalorder %s15, 1
    %p47 = por %p45, %p46
    %p48 = scmp.ne.s32.totalorder %s37, %s38
    %p49 = scmp.eq.s32.totalorder %s15, 0
    %p50 = por %p48, %p49
    %p51 = scmp.ne.s32.totalorder %s37, %s38
    %p52 = scmp.eq.s32.totalorder %s16, 1
    %p53 = por %p51, %p52
    %p55 = scmp.ne.s32.totalorder %s38, %s54
    %p56 = scmp.eq.s32.totalorder %s16, 0
    %p57 = por %p55, %p56
    %s58 = ssub.s32 %s17, %s29
    %s59 = ssub.s32 %s18, %s25
    %s60 = sor.u32 %s58, %s59
    %p61 = scmp.eq.s32.totalorder %s60, 0
    %s63 = sadd.s32 %s62, 1
    %s64 = scalar_select %p61, %s62, %s63
    %p67 = pneg %p61
    %p68 = scmp.eq.s32.totalorder %s10, 1
    %p69 = por %p67, %p68
    %p70 = scmp.ne.s32.totalorder %s62, %s65
    %p71 = scmp.eq.s32.totalorder %s10, 0
    %p72 = por %p70, %p71
    %p73 = scmp.ne.s32.totalorder %s62, %s65
    %p74 = scmp.eq.s32.totalorder %s15, 1
    %p75 = por %p73, %p74
    %p76 = scmp.ne.s32.totalorder %s65, %s66
    %p77 = scmp.eq.s32.totalorder %s15, 0
    %p78 = por %p76, %p77
    %p79 = scmp.ne.s32.totalorder %s65, %s66
    %p80 = scmp.eq.s32.totalorder %s16, 1
    %p81 = por %p79, %p80
    %p83 = scmp.ne.s32.totalorder %s66, %s82
    %p84 = scmp.eq.s32.totalorder %s16, 0
    %p85 = por %p83, %p84
    %s86 = ssub.s32 %s17, %s29
    %s87 = ssub.s32 %s18, %s25
    %s88 = sor.u32 %s86, %s87
    %p89 = scmp.eq.s32.totalorder %s88, 0
    %s91 = sadd.s32 %s90, 1
    %s92 = scalar_select %p89, %s90, %s91
    %p95 = pneg %p89
    %p96 = scmp.eq.s32.totalorder %s10, 1
    %p97 = por %p95, %p96
    %p98 = scmp.ne.s32.totalorder %s90, %s93
    %p99 = scmp.eq.s32.totalorder %s10, 0
    %p100 = por %p98, %p99
    %p101 = scmp.ne.s32.totalorder %s90, %s93
    %p102 = scmp.eq.s32.totalorder %s15, 1
    %p103 = por %p101, %p102
    %p104 = scmp.ne.s32.totalorder %s93, %s94
    %p105 = scmp.eq.s32.totalorder %s15, 0
    %p106 = por %p104, %p105
    %p107 = scmp.ne.s32.totalorder %s93, %s94
    %p108 = scmp.eq.s32.totalorder %s16, 1
    %p109 = por %p107, %p108
    %p111 = scmp.ne.s32.totalorder %s94, %s110
    %p112 = scmp.eq.s32.totalorder %s16, 0
    %p113 = por %p111, %p112
    %s114 = ssub.s32 %s17, %s29
    %p115 = scmp.eq.s32.totalorder %s114, 0
    %s117 = sadd.s32 %s116, 1
    %s118 = scalar_select %p115, %s116, %s117
    %p121 = pneg %p115
    %p122 = scmp.eq.s32.totalorder %s10, 1
    %p123 = por %p121, %p122
    %p124 = scmp.ne.s32.totalorder %s116, %s119
    %p125 = scmp.eq.s32.totalorder %s10, 0
    %p126 = por %p124, %p125
    %p127 = scmp.ne.s32.totalorder %s116, %s119
    %p128 = scmp.eq.s32.totalorder %s15, 1
    %p129 = por %p127, %p128
    %p130 = scmp.ne.s32.totalorder %s119, %s120
    %p131 = scmp.eq.s32.totalorder %s15, 0
    %p132 = por %p130, %p131
    %p133 = scmp.ne.s32.totalorder %s119, %s120
    %p134 = scmp.eq.s32.totalorder %s16, 1
    %p135 = por %p133, %p134
    %p137 = scmp.ne.s32.totalorder %s120, %s136
    %p138 = scmp.eq.s32.totalorder %s16, 0
    %p139 = por %p137, %p138
    %s140 = ssub.s32 %s17, %s29
    %s141 = ssub.s32 %s18, %s25
    %s142 = sor.u32 %s140, %s141
    %p143 = scmp.eq.s32.totalorder %s142, 0
    %s145 = sadd.s32 %s144, 1
    %s146 = scalar_select %p143, %s144, %s145
    %p149 = pneg %p143
    %p150 = scmp.eq.s32.totalorder %s10, 1
    %p151 = por %p149, %p150
    %p152 = scmp.ne.s32.totalorder %s144, %s147
    %p153 = scmp.eq.s32.totalorder %s10, 0
    %p154 = por %p152, %p153
    %p155 = scmp.ne.s32.totalorder %s144, %s147
    %p156 = scmp.eq.s32.totalorder %s15, 1
    %p157 = por %p155, %p156
    %p158 = scmp.ne.s32.totalorder %s147, %s148
    %p159 = scmp.eq.s32.totalorder %s15, 0
    %p160 = por %p158, %p159
    %p161 = scmp.ne.s32.totalorder %s147, %s148
    %p162 = scmp.eq.s32.totalorder %s16, 1
    %p163 = por %p161, %p162
    %p165 = scmp.ne.s32.totalorder %s148, %s164
    %p166 = scmp.eq.s32.totalorder %s16, 0
    %p167 = por %p165, %p166
    %p168 = scmp.le.s32.totalorder 1, %s10
    %p169 = scmp.lt.s32.totalorder %s10, 3
    %p170 = pnand %p168, %p169
    %p171 = pneg %p170
    // Predicated region
    $region9: #{decoder_layer_forward.9} parent=5 // pred_check
      _
    $region10: #{decoder_layer_forward.9} parent=5 // pred_check_branch
      %173 = sbr.rel (%p170) target = $region12
    $region11: #{decoder_layer_forward.9} parent=5 // pred_region
      %s174 = ssub.s32 %s10, 1
    $region12: #{decoder_layer_forward.9} parent=5 // pred_fallthru
      _
    %p175 = scmp.lt.s32.totalorder %s10, 2
    // Predicated region
    $region13: #{decoder_layer_forward.9} parent=5 // pred_check
      %p176 = pneg %p175
    $region14: #{decoder_layer_forward.9} parent=5 // pred_check_branch
      %178 = sbr.rel (%p176) target = $region16
    $region15: #{decoder_layer_forward.9} parent=5 // pred_region
      // Predicated region
      $region17: #{decoder_layer_forward.9} parent=15 // pred_check
        %p179 = pneg %p44
      $region18: #{decoder_layer_forward.9} parent=15 // pred_check_branch
        %181 = sbr.rel (%p179) target = $region20
      $region19: #{decoder_layer_forward.9} parent=15 // pred_region
        %p182 = scmp.lt.s32.totalorder %s17, 1
        %s183 = scalar_select %p182, %s17, 1
        %p184 = scmp.lt.s32.totalorder %s18, 0
        %s185 = scalar_select %p184, %s18, 0
        %s186 = sadd.s32 %s185, %s183
        %s187 = smul.addr %s186, 8
        %s188 = scalar_lea.vmem %s0, %s187
      $region20: #{decoder_layer_forward.9} parent=15 // pred_fallthru
        _
      // Predicated region
      $region21: #{decoder_layer_forward.9} parent=15 // pred_check
        %p189 = pneg %p72
      $region22: #{decoder_layer_forward.9} parent=15 // pred_check_branch
        %191 = sbr.rel (%p189) target = $region24
      $region23: #{decoder_layer_forward.9} parent=15 // pred_region
        %p192 = scmp.lt.s32.totalorder %s17, 1
        %s193 = scalar_select %p192, %s17, 1
        %p194 = scmp.lt.s32.totalorder %s18, 0
        %s195 = scalar_select %p194, %s18, 0
        %s196 = sadd.s32 %s195, %s193
        %s197 = smul.addr %s196, 8
        %s198 = scalar_lea.vmem %s1, %s197
      $region24: #{decoder_layer_forward.9} parent=15 // pred_fallthru
        _
      // Predicated region
      $region25: #{decoder_layer_forward.9} parent=15 // pred_check
        %p199 = pneg %p100
      $region26: #{decoder_layer_forward.9} parent=15 // pred_check_branch
        %201 = sbr.rel (%p199) target = $region28
      $region27: #{decoder_layer_forward.9} parent=15 // pred_region
        %p202 = scmp.lt.s32.totalorder %s17, 1
        %s203 = scalar_select %p202, %s17, 1
        %p204 = scmp.lt.s32.totalorder %s18, 0
        %s205 = scalar_select %p204, %s18, 0
        %s206 = sadd.s32 %s205, %s203
        %s207 = smul.addr %s206, 8
        %s208 = scalar_lea.vmem %s2, %s207
      $region28: #{decoder_layer_forward.9} parent=15 // pred_fallthru
        _
      // Predicated region
      $region29: #{decoder_layer_forward.9} parent=15 // pred_check
        %p209 = pneg %p126
      $region30: #{decoder_layer_forward.9} parent=15 // pred_check_branch
        %211 = sbr.rel (%p209) target = $region32
      $region31: #{decoder_layer_forward.9} parent=15 // pred_region
        %p212 = scmp.lt.s32.totalorder %s17, 1
        %s213 = scalar_select %p212, %s17, 1
        %s214 = smul.addr %s213, 2
        %s215 = scalar_lea.vmem %s3, %s214
      $region32: #{decoder_layer_forward.9} parent=15 // pred_fallthru
        _
    $region16: #{decoder_layer_forward.9} parent=5 // pred_fallthru
      _
    %p216 = scmp.le.s32.totalorder 1, %s10
    %p217 = scmp.lt.s32.totalorder %s10, 3
    %p218 = pnand %p216, %p217
    %p219 = pneg %p218
    // Predicated region
    $region33: #{decoder_layer_forward.9} parent=5 // pred_check
      _
    $region34: #{decoder_layer_forward.9} parent=5 // pred_check_branch
      %221 = sbr.rel (%p218) target = $region36
    $region35: #{decoder_layer_forward.9} parent=5 // pred_region
      %s222 = ssub.s32 %s10, 1
      %p223 = scmp.lt.s32.totalorder %s19, 1
      %s224 = scalar_select %p223, %s19, 1
      %p225 = scmp.lt.s32.totalorder %s20, 0
      %s226 = scalar_select %p225, %s20, 0
      %s227 = sadd.s32 %s226, %s224
      %s228 = smul.addr %s227, 8
      %s229 = scalar_lea.vmem %s0, %s228
      %p230 = pneg %p50
      %p231 = pneg %p47
      %p232 = scmp.lt.s32.totalorder %s19, 1
      %s233 = scalar_select %p232, %s19, 1
      %p234 = scmp.lt.s32.totalorder %s20, 0
      %s235 = scalar_select %p234, %s20, 0
      %s236 = sadd.s32 %s235, %s233
      %s237 = smul.addr %s236, 8
      %s238 = scalar_lea.vmem %s1, %s237
      %p239 = pneg %p78
      %p240 = pneg %p75
      %p241 = scmp.lt.s32.totalorder %s19, 1
      %s242 = scalar_select %p241, %s19, 1
      %p243 = scmp.lt.s32.totalorder %s20, 0
      %s244 = scalar_select %p243, %s20, 0
      %s245 = sadd.s32 %s244, %s242
      %s246 = smul.addr %s245, 8
      %s247 = scalar_lea.vmem %s2, %s246
      %p248 = pneg %p106
      %p249 = pneg %p103
      %p250 = scmp.lt.s32.totalorder %s19, 1
      %s251 = scalar_select %p250, %s19, 1
      %s252 = smul.addr %s251, 2
      %s253 = scalar_lea.vmem %s3, %s252
      %p254 = pneg %p132
      %p255 = pneg %p129
      %p256 = pneg %p160
      %p257 = pneg %p157
      %p258 = scmp.lt.s32.totalorder %s19, 1
      %s259 = scalar_select %p258, %s19, 1
      %p260 = scmp.lt.s32.totalorder %s20, 0
      %s261 = scalar_select %p260, %s20, 0
      %s262 = sadd.s32 %s261, %s259
      %s263 = smul.addr %s262, 8
      %s264 = scalar_lea.vmem %s4, %s263
      %p265 = scmp.lt.s32.totalorder %s19, 1
      %s266 = scalar_select %p265, %s19, 1
      %p267 = scmp.lt.s32.totalorder %s20, 0
      %s268 = scalar_select %p267, %s20, 0
      %s269 = sadd.s32 %s268, %s266
      %s270 = smul.addr %s269, 8
      %s271 = scalar_lea.vmem %s0, %s270
      %p272 = scmp.lt.s32.totalorder %s19, 1
      %s273 = scalar_select %p272, %s19, 1
      %p274 = scmp.lt.s32.totalorder %s20, 0
      %s275 = scalar_select %p274, %s20, 0
      %s276 = sadd.s32 %s275, %s273
      %s277 = smul.addr %s276, 8
      %s278 = scalar_lea.vmem %s1, %s277
      %p279 = scmp.lt.s32.totalorder %s19, 1
      %s280 = scalar_select %p279, %s19, 1
      %p281 = scmp.lt.s32.totalorder %s20, 0
      %s282 = scalar_select %p281, %s20, 0
      %s283 = sadd.s32 %s282, %s280
      %s284 = smul.addr %s283, 8
      %s285 = scalar_lea.vmem %s2, %s284
      %p286 = scmp.lt.s32.totalorder %s19, 1
      %s287 = scalar_select %p286, %s19, 1
      %s288 = smul.addr %s287, 2
      %s289 = scalar_lea.vmem %s3, %s288
      %p290 = scmp.lt.s32.totalorder %s19, 1
      %s291 = scalar_select %p290, %s19, 1
      %p292 = scmp.lt.s32.totalorder %s20, 0
      %s293 = scalar_select %p292, %s20, 0
      %s294 = sadd.s32 %s293, %s291
      %s295 = smul.addr %s294, 8
      %s296 = scalar_lea.vmem %s4, %s295
      %v297 = vld [vmem:[%s289] sm:$0x3]
      %v298 = vunpack.c.0.s8 %v297
      %vm299 = vcmp.eq.s32.totalorder %v298, 0
      %v300 = vld [vmem:[%s271] sm:$0xff]
      %v301 = vld [vmem:[%s278] sm:$0xff]
      %v302 = vld [vmem:[%s285] sm:$0xff]
      %vm303 = vcmask 64512
      %v305 = vsel %vm303, %v300, 0
      %v308 = vsel %vm303, %v301, 0
      %310 = vmatpush.xpose.msra.mxu0 0.0
      %311 = vmatpush.xpose.msra.mxu0 0.0
      %312 = vmatpush.xpose.msra.mxu0 0.0
      %313 = vmatpush.xpose.msra.mxu0 0.0
      %314 = vmatpush.xpose.msra.mxu0 0.0
      %315 = vmatpush.xpose.msra.mxu0 0.0
      %316 = vmatpush.xpose.msra.mxu0 0.0
      %317 = vmatpush.xpose.msra.mxu0 0.0
      %318 = vmatpush.xpose.msra.mxu0 0.0
      %319 = vmatpush.xpose.msra.mxu0 0.0
      %320 = vmatpush.xpose.msra.mxu0 0.0
      %321 = vmatpush.xpose.msra.mxu0 0.0
      %322 = vmatpush.xpose.msra.mxu0 0.0
      %323 = vmatpush.xpose.msra.mxu0 0.0
      %324 = vmatpush.xpose.msra.mxu0 0.0
      %325 = vmatpush.xpose.msra.mxu0 %v308
      %326 = vmatmul.f32.gmra.mxu0 %v305
      %v327 = vpop.f32.mrf.mxu0
      %v328 = vadd.f32 0.0, %v327
      %329 = vdwg.mxu0
      %v330 = vmul.f32 %v328, 0.35355338
      %v331 = vsel %vm299, -1e+09, %v330
      %v332 = vsel %vm303, %v331, -inf
      %333 = vmax.xlane.f32.xlu0 %v332
      %v334 = vpop.xlane.xlu0 %333
      %v335 = vsub.f32 %v331, %v334
      %v336 = vmul.f32 %v335, 1.442695
      %v337 = vpow.pop %v336
      %v338 = vsel %vm303, %v337, 0.0
      %339 = vadd.xlane.f32.xlu0 %v338
      %v340 = vpop.xlane.xlu0 %339
      %v341 = vrcp.pop %v340
      %v342 = vmul.f32 %v340, %v341
      %v343 = vsub.f32 2.0, %v342
      %v344 = vmul.f32 %v341, %v343
      %v345 = vmul.f32 %v337, %v344
      %v347 = vsel %vm303, %v345, 0
      %349 = vmatpush.msra.mxu0 0.0
      %350 = vmatpush.msra.mxu0 0.0
      %351 = vmatpush.msra.mxu0 0.0
      %352 = vmatpush.msra.mxu0 0.0
      %353 = vmatpush.msra.mxu0 0.0
      %354 = vmatpush.msra.mxu0 0.0
      %355 = vmatpush.msra.mxu0 0.0
      %356 = vmatpush.msra.mxu0 0.0
      %357 = vmatpush.msra.mxu0 0.0
      %358 = vmatpush.msra.mxu0 0.0
      %359 = vmatpush.msra.mxu0 0.0
      %360 = vmatpush.msra.mxu0 0.0
      %361 = vmatpush.msra.mxu0 0.0
      %362 = vmatpush.msra.mxu0 0.0
      %363 = vmatpush.msra.mxu0 0.0
      %364 = vmatpush.msra.mxu0 %v302
      %365 = vmatmul.f32.gmra.mxu0 %v347
      %v366 = vpop.f32.mrf.mxu0
      %v367 = vadd.f32 0.0, %v366
      %368 = vdwg.mxu0
      %369 = vst.msk [vmem:[%s296] sm:$0xff] %vm303, %v367
      %v370 = vld [vmem:[%s271] sm:$0xff]
      %v371 = vld [vmem:[%s278] sm:$0xff]
      %v372 = vld [vmem:[%s285] sm:$0xff]
      %374 = vrot.lane.b32.xlu0 %v370, 120
      %v375 = vpop.permute.xlu0 %374
      %377 = vrot.lane.b32.xlu0 %v371, 120
      %v378 = vpop.permute.xlu0 %377
      %v379 = vsel %vm303, %v375, 0
      %v381 = vsel %vm303, %v378, 0
      %383 = vmatpush.xpose.msra.mxu0 0.0
      %384 = vmatpush.xpose.msra.mxu0 0.0
      %385 = vmatpush.xpose.msra.mxu0 0.0
      %386 = vmatpush.xpose.msra.mxu0 0.0
      %387 = vmatpush.xpose.msra.mxu0 0.0
      %388 = vmatpush.xpose.msra.mxu0 0.0
      %389 = vmatpush.xpose.msra.mxu0 0.0
      %390 = vmatpush.xpose.msra.mxu0 0.0
      %391 = vmatpush.xpose.msra.mxu0 0.0
      %392 = vmatpush.xpose.msra.mxu0 0.0
      %393 = vmatpush.xpose.msra.mxu0 0.0
      %394 = vmatpush.xpose.msra.mxu0 0.0
      %395 = vmatpush.xpose.msra.mxu0 0.0
      %396 = vmatpush.xpose.msra.mxu0 0.0
      %397 = vmatpush.xpose.msra.mxu0 0.0
      %398 = vmatpush.xpose.msra.mxu0 %v381
      %399 = vmatmul.f32.gmra.mxu0 %v379
      %v400 = vpop.f32.mrf.mxu0
      %v401 = vadd.f32 0.0, %v400
      %402 = vdwg.mxu0
      %v403 = vmul.f32 %v401, 0.35355338
      %v404 = vsel %vm299, -1e+09, %v403
      %v405 = vsel %vm303, %v404, -inf
      %406 = vmax.xlane.f32.xlu0 %v405
      %v407 = vpop.xlane.xlu0 %406
      %v408 = vsub.f32 %v404, %v407
      %v409 = vmul.f32 %v408, 1.442695
      %v410 = vpow.pop %v409
      %v411 = vsel %vm303, %v410, 0.0
      %412 = vadd.xlane.f32.xlu0 %v411
      %v413 = vpop.xlane.xlu0 %412
      %v414 = vrcp.pop %v413
      %v415 = vmul.f32 %v413, %v414
      %v416 = vsub.f32 2.0, %v415
      %v417 = vmul.f32 %v414, %v416
      %v418 = vmul.f32 %v410, %v417
      %420 = vrot.lane.b32.xlu0 %v372, 120
      %v421 = vpop.permute.xlu0 %420
      %v424 = vsel %vm303, %v418, 0
      %426 = vmatpush.msra.mxu0 0.0
      %427 = vmatpush.msra.mxu0 0.0
      %428 = vmatpush.msra.mxu0 0.0
      %429 = vmatpush.msra.mxu0 0.0
      %430 = vmatpush.msra.mxu0 0.0
      %431 = vmatpush.msra.mxu0 0.0
      %432 = vmatpush.msra.mxu0 0.0
      %433 = vmatpush.msra.mxu0 0.0
      %434 = vmatpush.msra.mxu0 0.0
      %435 = vmatpush.msra.mxu0 0.0
      %436 = vmatpush.msra.mxu0 0.0
      %437 = vmatpush.msra.mxu0 0.0
      %438 = vmatpush.msra.mxu0 0.0
      %439 = vmatpush.msra.mxu0 0.0
      %440 = vmatpush.msra.mxu0 0.0
      %441 = vmatpush.msra.mxu0 %v421
      %442 = vmatmul.f32.gmra.mxu0 %v424
      %v443 = vpop.f32.mrf.mxu0
      %v444 = vadd.f32 0.0, %v443
      %445 = vdwg.mxu0
      %447 = vrot.lane.b32.xlu0 %v444, 8
      %v448 = vpop.permute.xlu0 %447
      %vm450 = vcmask 130112
      %451 = vst.msk [vmem:[%s296] sm:$0xff] %vm450, %v448
      %v452 = vld [vmem:[%s271] sm:$0xff]
      %v453 = vld [vmem:[%s278] sm:$0xff]
      %v454 = vld [vmem:[%s285] sm:$0xff]
      %456 = vrot.lane.b32.xlu0 %v452, 112
      %v457 = vpop.permute.xlu0 %456
      %459 = vrot.lane.b32.xlu0 %v453, 112
      %v460 = vpop.permute.xlu0 %459
      %v461 = vsel %vm303, %v457, 0
      %v463 = vsel %vm303, %v460, 0
      %465 = vmatpush.xpose.msra.mxu0 0.0
      %466 = vmatpush.xpose.msra.mxu0 0.0
      %467 = vmatpush.xpose.msra.mxu0 0.0
      %468 = vmatpush.xpose.msra.mxu0 0.0
      %469 = vmatpush.xpose.msra.mxu0 0.0
      %470 = vmatpush.xpose.msra.mxu0 0.0
      %471 = vmatpush.xpose.msra.mxu0 0.0
      %472 = vmatpush.xpose.msra.mxu0 0.0
      %473 = vmatpush.xpose.msra.mxu0 0.0
      %474 = vmatpush.xpose.msra.mxu0 0.0
      %475 = vmatpush.xpose.msra.mxu0 0.0
      %476 = vmatpush.xpose.msra.mxu0 0.0
      %477 = vmatpush.xpose.msra.mxu0 0.0
      %478 = vmatpush.xpose.msra.mxu0 0.0
      %479 = vmatpush.xpose.msra.mxu0 0.0
      %480 = vmatpush.xpose.msra.mxu0 %v463
      %481 = vmatmul.f32.gmra.mxu0 %v461
      %v482 = vpop.f32.mrf.mxu0
      %v483 = vadd.f32 0.0, %v482
      %484 = vdwg.mxu0
      %v485 = vmul.f32 %v483, 0.35355338
      %v486 = vsel %vm299, -1e+09, %v485
      %v487 = vsel %vm303, %v486, -inf
      %488 = vmax.xlane.f32.xlu0 %v487
      %v489 = vpop.xlane.xlu0 %488
      %v490 = vsub.f32 %v486, %v489
      %v491 = vmul.f32 %v490, 1.442695
      %v492 = vpow.pop %v491
      %v493 = vsel %vm303, %v492, 0.0
      %494 = vadd.xlane.f32.xlu0 %v493
      %v495 = vpop.xlane.xlu0 %494
      %v496 = vrcp.pop %v495
      %v497 = vmul.f32 %v495, %v496
      %v498 = vsub.f32 2.0, %v497
      %v499 = vmul.f32 %v496, %v498
      %v500 = vmul.f32 %v492, %v499
      %502 = vrot.lane.b32.xlu0 %v454, 112
      %v503 = vpop.permute.xlu0 %502
      %v506 = vsel %vm303, %v500, 0
      %508 = vmatpush.msra.mxu0 0.0
      %509 = vmatpush.msra.mxu0 0.0
      %510 = vmatpush.msra.mxu0 0.0
      %511 = vmatpush.msra.mxu0 0.0
      %512 = vmatpush.msra.mxu0 0.0
      %513 = vmatpush.msra.mxu0 0.0
      %514 = vmatpush.msra.mxu0 0.0
      %515 = vmatpush.msra.mxu0 0.0
      %516 = vmatpush.msra.mxu0 0.0
      %517 = vmatpush.msra.mxu0 0.0
      %518 = vmatpush.msra.mxu0 0.0
      %519 = vmatpush.msra.mxu0 0.0
      %520 = vmatpush.msra.mxu0 0.0
      %521 = vmatpush.msra.mxu0 0.0
      %522 = vmatpush.msra.mxu0 0.0
      %523 = vmatpush.msra.mxu0 %v503
      %524 = vmatmul.f32.gmra.mxu0 %v506
      %v525 = vpop.f32.mrf.mxu0
      %v526 = vadd.f32 0.0, %v525
      %527 = vdwg.mxu0
      %529 = vrot.lane.b32.xlu0 %v526, 16
      %v530 = vpop.permute.xlu0 %529
      %vm532 = vcmask 195712
      %533 = vst.msk [vmem:[%s296] sm:$0xff] %vm532, %v530
      %v534 = vld [vmem:[%s271] sm:$0xff]
      %v535 = vld [vmem:[%s278] sm:$0xff]
      %v536 = vld [vmem:[%s285] sm:$0xff]
      %538 = vrot.lane.b32.xlu0 %v534, 104
      %v539 = vpop.permute.xlu0 %538
      %541 = vrot.lane.b32.xlu0 %v535, 104
      %v542 = vpop.permute.xlu0 %541
      %v543 = vsel %vm303, %v539, 0
      %v545 = vsel %vm303, %v542, 0
      %547 = vmatpush.xpose.msra.mxu0 0.0
      %548 = vmatpush.xpose.msra.mxu0 0.0
      %549 = vmatpush.xpose.msra.mxu0 0.0
      %550 = vmatpush.xpose.msra.mxu0 0.0
      %551 = vmatpush.xpose.msra.mxu0 0.0
      %552 = vmatpush.xpose.msra.mxu0 0.0
      %553 = vmatpush.xpose.msra.mxu0 0.0
      %554 = vmatpush.xpose.msra.mxu0 0.0
      %555 = vmatpush.xpose.msra.mxu0 0.0
      %556 = vmatpush.xpose.msra.mxu0 0.0
      %557 = vmatpush.xpose.msra.mxu0 0.0
      %558 = vmatpush.xpose.msra.mxu0 0.0
      %559 = vmatpush.xpose.msra.mxu0 0.0
      %560 = vmatpush.xpose.msra.mxu0 0.0
      %561 = vmatpush.xpose.msra.mxu0 0.0
      %562 = vmatpush.xpose.msra.mxu0 %v545
      %563 = vmatmul.f32.gmra.mxu0 %v543
      %v564 = vpop.f32.mrf.mxu0
      %v565 = vadd.f32 0.0, %v564
      %566 = vdwg.mxu0
      %v567 = vmul.f32 %v565, 0.35355338
      %v568 = vsel %vm299, -1e+09, %v567
      %v569 = vsel %vm303, %v568, -inf
      %570 = vmax.xlane.f32.xlu0 %v569
      %v571 = vpop.xlane.xlu0 %570
      %v572 = vsub.f32 %v568, %v571
      %v573 = vmul.f32 %v572, 1.442695
      %v574 = vpow.pop %v573
      %v575 = vsel %vm303, %v574, 0.0
      %576 = vadd.xlane.f32.xlu0 %v575
      %v577 = vpop.xlane.xlu0 %576
      %v578 = vrcp.pop %v577
      %v579 = vmul.f32 %v577, %v578
      %v580 = vsub.f32 2.0, %v579
      %v581 = vmul.f32 %v578, %v580
      %v582 = vmul.f32 %v574, %v581
      %584 = vrot.lane.b32.xlu0 %v536, 104
      %v585 = vpop.permute.xlu0 %584
      %v588 = vsel %vm303, %v582, 0
      %590 = vmatpush.msra.mxu0 0.0
      %591 = vmatpush.msra.mxu0 0.0
      %592 = vmatpush.msra.mxu0 0.0
      %593 = vmatpush.msra.mxu0 0.0
      %594 = vmatpush.msra.mxu0 0.0
      %595 = vmatpush.msra.mxu0 0.0
      %596 = vmatpush.msra.mxu0 0.0
      %597 = vmatpush.msra.mxu0 0.0
      %598 = vmatpush.msra.mxu0 0.0
      %599 = vmatpush.msra.mxu0 0.0
      %600 = vmatpush.msra.mxu0 0.0
      %601 = vmatpush.msra.mxu0 0.0
      %602 = vmatpush.msra.mxu0 0.0
      %603 = vmatpush.msra.mxu0 0.0
      %604 = vmatpush.msra.mxu0 0.0
      %605 = vmatpush.msra.mxu0 %v585
      %606 = vmatmul.f32.gmra.mxu0 %v588
      %v607 = vpop.f32.mrf.mxu0
      %v608 = vadd.f32 0.0, %v607
      %609 = vdwg.mxu0
      %611 = vrot.lane.b32.xlu0 %v608, 24
      %v612 = vpop.permute.xlu0 %611
      %vm614 = vcmask 261312
      %615 = vst.msk [vmem:[%s296] sm:$0xff] %vm614, %v612
      %p616 = scmp.lt.s32.totalorder %s19, 1
      %s617 = scalar_select %p616, %s19, 1
      %p618 = scmp.lt.s32.totalorder %s20, 0
      %s619 = scalar_select %p618, %s20, 0
      %s620 = sadd.s32 %s619, %s617
      %s621 = smul.addr %s620, 8
      %s622 = scalar_lea.vmem %s4, %s621
      // Predicated region
      $region37: #{decoder_layer_forward.9} parent=35 // pred_check
        %p623 = pneg %p157
      $region38: #{decoder_layer_forward.9} parent=35 // pred_check_branch
        %625 = sbr.rel (%p623) target = $region40
      $region39: #{decoder_layer_forward.9} parent=35 // pred_region
        _
      $region40: #{decoder_layer_forward.9} parent=35 // pred_fallthru
        _
    $region36: #{decoder_layer_forward.9} parent=5 // pred_fallthru
      _
    %p626 = scmp.le.s32.totalorder 2, %s10
    // Predicated region
    $region41: #{decoder_layer_forward.9} parent=5 // pred_check
      %p627 = pneg %p626
    $region42: #{decoder_layer_forward.9} parent=5 // pred_check_branch
      %629 = sbr.rel (%p627) target = $region44
    $region43: #{decoder_layer_forward.9} parent=5 // pred_region
      %s630 = ssub.s32 %s10, 2
      // Predicated region
      $region45: #{decoder_layer_forward.9} parent=43 // pred_check
        %p631 = pneg %p163
      $region46: #{decoder_layer_forward.9} parent=43 // pred_check_branch
        %633 = sbr.rel (%p631) target = $region48
      $region47: #{decoder_layer_forward.9} parent=43 // pred_region
        %p634 = scmp.lt.s32.totalorder %s21, 1
        %s635 = scalar_select %p634, %s21, 1
        %p636 = scmp.lt.s32.totalorder %s22, 0
        %s637 = scalar_select %p636, %s22, 0
        %s638 = sadd.s32 %s637, %s635
        %s639 = smul.addr %s638, 8
        %s640 = scalar_lea.vmem %s4, %s639
      $region48: #{decoder_layer_forward.9} parent=43 // pred_fallthru
        _
    $region44: #{decoder_layer_forward.9} parent=5 // pred_fallthru
      _
  $region6: #{decoder_layer_forward.9} parent=0 // loop_footer
    %s14 = sadd.s32 1, %s10
  $region7: #{decoder_layer_forward.9} parent=0 // loop_footer_branch
    %9 = sbr.rel target = $region3
  $region8: #{decoder_layer_forward.9} parent=0 // loop_exit
    _

// kernel: decoder_layer_forward.11
$region0: #{decoder_layer_forward.11}
  #allocation0 [shape = 'u32[]', space=smem, size = 0x4, offset = 0x4, fixed_abs, tag = 'smem constant byte address 0x4 - core index']
  #allocation1 [shape = 'u32[72,128]{1,0:T(1,128)}', space=vmem, size = 0x9000, scoped, tag = 'internal scratch']
  %s0 = inlined_call_operand.vmem [shape: f32[16,32], index: 0, kind: input, shape index: {}]
  %s1 = inlined_call_operand.vmem [shape: f32[1,32], index: 1, kind: input, shape index: {}]
  %s2 = inlined_call_operand.vmem [shape: f32[1,32], index: 2, kind: input, shape index: {}]
  %s3 = inlined_call_operand.hbm [shape: f32[32,32], index: 3, kind: input, shape index: {}]
  %s4 = inlined_call_operand.vmem [shape: f32[1,32], index: 4, kind: input, shape index: {}]
  %s5 = inlined_call_operand.vmem [shape: f32[16,32], index: 5, kind: output, shape index: {}]
  %s6 = sld [smem:[#allocation0]]
  $region34: #{decoder_layer_forward.11} parent=0
    _
  %s8 = ssub.s32 1, %s6
  %s9 = scalar_select 0, %s8, %s6
  $region1: #{decoder_layer_forward.11} parent=0
    #allocation2 [shape = 'u8[16384]{0}', space=vmem, size = 0x4000, scoped, tag = 'input window, operand 3, single buffered']
    #allocation3 [shape = 's32[1]{0}', space=sflag, size = 0x4, scoped, tag = 'scoped memory for decoder_layer_forward.11']
    %10 = vsyncpa [#allocation3], 0
    // Predicated region
    $region2: #{decoder_layer_forward.11} parent=1 // pred_check
      _
    $region3: #{decoder_layer_forward.11} parent=1 // pred_check_branch
      %12 = sbr.rel (0) target = $region5
    $region4: #{decoder_layer_forward.11} parent=1 // pred_region
      _
    $region5: #{decoder_layer_forward.11} parent=1 // pred_fallthru
      _
    // Predicated region
    $region6: #{decoder_layer_forward.11} parent=1 // pred_check
      _
    $region7: #{decoder_layer_forward.11} parent=1 // pred_check_branch
      %14 = sbr.rel (0) target = $region9
    $region8: #{decoder_layer_forward.11} parent=1 // pred_region
      _
    $region9: #{decoder_layer_forward.11} parent=1 // pred_fallthru
      _
    // Predicated region
    $region10: #{decoder_layer_forward.11} parent=1 // pred_check
      _
    $region11: #{decoder_layer_forward.11} parent=1 // pred_check_branch
      %16 = sbr.rel (0) target = $region13
    $region12: #{decoder_layer_forward.11} parent=1 // pred_region
      _
    $region13: #{decoder_layer_forward.11} parent=1 // pred_fallthru
      _
    // Predicated region
    $region14: #{decoder_layer_forward.11} parent=1 // pred_check
      _
    $region15: #{decoder_layer_forward.11} parent=1 // pred_check_branch
      %18 = sbr.rel (0) target = $region17
    $region16: #{decoder_layer_forward.11} parent=1 // pred_region
      %20 = vsyncadd [#allocation3], 0
      %s21 = sshll.u32 %s3, 4
      %s22 = int_to_ptr.hbm [resolvable:$true] %s21
      %s23 = sshll.u32 [#allocation2], 4
      %s24 = int_to_ptr.vmem [resolvable:$true] %s23
      %29 = dma.hbm_to_vmem [thread:$0]  %s22, 512, %s24, [#allocation3], 128, 128, 8
    $region17: #{decoder_layer_forward.11} parent=1 // pred_fallthru
      _
    // Predicated region
    $region18: #{decoder_layer_forward.11} parent=1 // pred_check
      _
    $region19: #{decoder_layer_forward.11} parent=1 // pred_check_branch
      %31 = sbr.rel (0) target = $region21
    $region20: #{decoder_layer_forward.11} parent=1 // pred_region
      _
    $region21: #{decoder_layer_forward.11} parent=1 // pred_fallthru
      _
    // Predicated region
    $region22: #{decoder_layer_forward.11} parent=1 // pred_check
      _
    $region23: #{decoder_layer_forward.11} parent=1 // pred_check_branch
      %33 = sbr.rel (0) target = $region25
    $region24: #{decoder_layer_forward.11} parent=1 // pred_region
      %35 = dma.done [#allocation3], 512
    $region25: #{decoder_layer_forward.11} parent=1 // pred_fallthru
      _
    %v36 = vld [vmem:[%s0] sm:$0xff]
    %v37 = vld [vmem:[%s0 + $0x8] sm:$0xff]
    %vm38 = vcmask 261120
    %v39 = vsel %vm38, %v36, 0.0
    %40 = vadd.xlane.f32.xlu0 %v39
    %v41 = vpop.xlane.xlu0 %40
    %v42 = vsel %vm38, %v37, 0.0
    %43 = vadd.xlane.f32.xlu0 %v42
    %v44 = vpop.xlane.xlu0 %43
    %v45 = vrcp.pop 32.0
    %v46 = vmul.f32 32.0, %v45
    %v47 = vsub.f32 1.0, %v46
    %v48 = vmul.f32 %v45, %v47
    %v49 = vadd.f32 %v45, %v48
    %vm50 = vweird.f32 %v45
    %v51 = vsel %vm50, %v45, %v49
    %v52 = vmul.f32 %v41, %v51
    %v53 = vmul.f32 %v44, %v51
    %v54 = vsub.f32 %v36, %v52
    %v55 = vsub.f32 %v37, %v53
    %v56 = vmul.f32 %v54, %v54
    %v57 = vmul.f32 %v55, %v55
    %v58 = vsel %vm38, %v56, 0.0
    %59 = vadd.xlane.f32.xlu0 %v58
    %v60 = vpop.xlane.xlu0 %59
    %v61 = vsel %vm38, %v57, 0.0
    %62 = vadd.xlane.f32.xlu0 %v61
    %v63 = vpop.xlane.xlu0 %62
    %v64 = vrcp.pop 31.0
    %v65 = vmul.f32 31.0, %v64
    %v66 = vsub.f32 1.0, %v65
    %v67 = vmul.f32 %v64, %v66
    %v68 = vadd.f32 %v64, %v67
    %vm69 = vweird.f32 %v64
    %v70 = vsel %vm69, %v64, %v68
    %v71 = vmul.f32 %v60, %v70
    %v72 = vmul.f32 %v63, %v70
    %v73 = vrsqrt.pop %v71
    %v74 = vmul.f32 %v73, %v71
    %v75 = vmul.f32 %v74, %v73
    %v76 = vmul.f32 0.5, %v75
    %v77 = vsub.f32 1.5, %v76
    %v78 = vmul.f32 %v73, %v77
    %v79 = vmul.f32 %v71, %v78
    %vm80 = vcmp.eq.f32.partialorder %v71, inf
    %v81 = vsel %vm80, %v71, %v79
    %vm82 = vcmp.eq.f32.partialorder %v71, 0.0
    %v83 = vand.u32 %v71, 2147483648
    %v84 = vsel %vm82, %v83, %v81
    %v85 = vrsqrt.pop %v72
    %v86 = vmul.f32 %v85, %v72
    %v87 = vmul.f32 %v86, %v85
    %v88 = vmul.f32 0.5, %v87
    %v89 = vsub.f32 1.5, %v88
    %v90 = vmul.f32 %v85, %v89
    %v91 = vmul.f32 %v72, %v90
    %vm92 = vcmp.eq.f32.partialorder %v72, inf
    %v93 = vsel %vm92, %v72, %v91
    %vm94 = vcmp.eq.f32.partialorder %v72, 0.0
    %v95 = vand.u32 %v72, 2147483648
    %v96 = vsel %vm94, %v95, %v93
    %v97 = vld [vmem:[%s1] sm:$0x1]
    %v98 = vadd.f32 %v84, 1e-06
    %v99 = vadd.f32 %v96, 1e-06
    %v100 = vrcp.pop %v98
    %v101 = vmul.f32 %v98, %v100
    %v102 = vsub.f32 1.0, %v101
    %v103 = vmul.f32 %v100, %v102
    %v104 = vadd.f32 %v100, %v103
    %vm105 = vweird.f32 %v98
    %vm106 = vweird.f32 %v100
    %vm107 = vmor %vm105, %vm106
    %v108 = vsel %vm107, %v100, %v104
    %v109 = vand.u32 2147483647, %v98
    %vm110 = vcmp.eq.f32.partialorder %v109, 8.507059e+37
    %v111 = vand.u32 %v98, 2147483648
    %v112 = vor.u32 1.1754944e-38, %v111
    %v113 = vsel %vm110, %v112, %v108
    %v114 = vmul.f32 1.0, %v113
    %v115 = vrcp.pop %v99
    %v116 = vmul.f32 %v99, %v115
    %v117 = vsub.f32 1.0, %v116
    %v118 = vmul.f32 %v115, %v117
    %v119 = vadd.f32 %v115, %v118
    %vm120 = vweird.f32 %v99
    %vm121 = vweird.f32 %v115
    %vm122 = vmor %vm120, %vm121
    %v123 = vsel %vm122, %v115, %v119
    %v124 = vand.u32 2147483647, %v99
    %vm125 = vcmp.eq.f32.partialorder %v124, 8.507059e+37
    %v126 = vand.u32 %v99, 2147483648
    %v127 = vor.u32 1.1754944e-38, %v126
    %v128 = vsel %vm125, %v127, %v123
    %v129 = vmul.f32 1.0, %v128
    %v130 = vmul.f32 %v54, %v114
    %v131 = vmul.f32 %v55, %v129
    %v133 = vperm.slane %v97, 0
    %v135 = vmul.f32 %v133, %v130
    %v136 = vmul.f32 %v133, %v131
    %v137 = vld [vmem:[%s2] sm:$0x1]
    %v139 = vperm.slane %v137, 0
    %v141 = vadd.f32 %v135, %v139
    %v142 = vadd.f32 %v136, %v139
    %v143 = vld [vmem:[#allocation2] sm:$0xff]
    %v144 = vld [vmem:[#allocation2 + $0x8] sm:$0xff]
    %v145 = vld [vmem:[#allocation2 + $0x10] sm:$0xff]
    %v146 = vld [vmem:[#allocation2 + $0x18] sm:$0xff]
    %v147 = vld [vmem:[%s4] sm:$0x1]
    %v149 = vperm.slane %v147, 0
    %v152 = vsel %vm38, %v141, 0
    %v155 = vsel %vm38, %v142, 0
    %157 = vmatpush.msra.mxu0 0.0
    %158 = vmatpush.msra.mxu0 0.0
    %159 = vmatpush.msra.mxu0 0.0
    %160 = vmatpush.msra.mxu0 0.0
    %161 = vmatpush.msra.mxu0 0.0
    %162 = vmatpush.msra.mxu0 0.0
    %163 = vmatpush.msra.mxu0 0.0
    %164 = vmatpush.msra.mxu0 0.0
    %165 = vmatpush.msra.mxu0 0.0
    %166 = vmatpush.msra.mxu0 0.0
    %167 = vmatpush.msra.mxu0 0.0
    %168 = vmatpush.msra.mxu0 0.0
    %169 = vmatpush.msra.mxu0 %v146
    %170 = vmatpush.msra.mxu0 %v145
    %171 = vmatpush.msra.mxu0 %v144
    %172 = vmatpush.msra.mxu0 %v143
    %173 = vmatmul.f32.gmra.mxu0 %v152
    %v174 = vpop.f32.mrf.mxu0
    %v175 = vadd.f32 %v149, %v174
    %176 = vmatmul.f32.gmra.mxu0 %v155
    %v177 = vpop.f32.mrf.mxu0
    %v178 = vadd.f32 %v149, %v177
    %179 = vdwg.mxu0
    %180 = vst.msk [vmem:[%s5] sm:$0xff] %vm38, %v175
    %181 = vst.msk [vmem:[%s5 + $0x8] sm:$0xff] %vm38, %v178
    // Predicated region
    $region26: #{decoder_layer_forward.11} parent=1 // pred_check
      _
    $region27: #{decoder_layer_forward.11} parent=1 // pred_check_branch
      %183 = sbr.rel (0) target = $region29
    $region28: #{decoder_layer_forward.11} parent=1 // pred_region
      _
    $region29: #{decoder_layer_forward.11} parent=1 // pred_fallthru
      _
    // Predicated region
    $region30: #{decoder_layer_forward.11} parent=1 // pred_check
      _
    $region31: #{decoder_layer_forward.11} parent=1 // pred_check_branch
      %185 = sbr.rel (0) target = $region33
    $region32: #{decoder_layer_forward.11} parent=1 // pred_region
      _
    $region33: #{decoder_layer_forward.11} parent=1 // pred_fallthru
      _
    %186 = vsyncpa [#allocation3], 1

// kernel: decoder_layer_forward.12
$region0: #{decoder_layer_forward.12}
  #allocation0 [shape = 'u32[]', space=smem, size = 0x4, offset = 0x4, fixed_abs, tag = 'smem constant byte address 0x4 - core index']
  #allocation1 [shape = 'u32[72,128]{1,0:T(1,128)}', space=vmem, size = 0x9000, scoped, tag = 'internal scratch']
  %s0 = inlined_call_operand.hbm [shape: f32[32,32], index: 0, kind: input, shape index: {}]
  %s1 = inlined_call_operand.hbm [shape: f32[32,32], index: 1, kind: input, shape index: {}]
  %s2 = inlined_call_operand.hbm [shape: f32[32,32], index: 2, kind: input, shape index: {}]
  %s3 = inlined_call_operand.vmem [shape: f32[1,32], index: 3, kind: input, shape index: {}]
  %s4 = inlined_call_operand.vmem [shape: f32[1,32], index: 4, kind: input, shape index: {}]
  %s5 = inlined_call_operand.vmem [shape: f32[32,32], index: 5, kind: output, shape index: {0}]
  %s6 = inlined_call_operand.vmem [shape: f32[32,32], index: 6, kind: output, shape index: {1}]
  %7 = xla_tuple %s5, %s6
  %s8 = sld [smem:[#allocation0]]
  $region50: #{decoder_layer_forward.12} parent=0
    _
  %s10 = ssub.s32 1, %s8
  %s11 = scalar_select 0, %s10, %s8
  $region1: #{decoder_layer_forward.12} parent=0
    #allocation2 [shape = 'u8[16384]{0}', space=vmem, size = 0x4000, scoped, tag = 'input window, operand 0, single buffered']
    #allocation3 [shape = 's32[1]{0}', space=sflag, size = 0x4, scoped, tag = 'scoped memory for decoder_layer_forward.12']
    #allocation4 [shape = 'u8[16384]{0}', space=vmem, size = 0x4000, scoped, tag = 'input window, operand 1, single buffered']
    #allocation5 [shape = 's32[1]{0}', space=sflag, size = 0x4, scoped, tag = 'scoped memory for decoder_layer_forward.12']
    #allocation6 [shape = 'u8[16384]{0}', space=vmem, size = 0x4000, scoped, tag = 'input window, operand 2, single buffered']
    %12 = vsyncpa [#allocation3], 0
    %13 = vsyncpa [#allocation5], 0
    // Predicated region
    $region2: #{decoder_layer_forward.12} parent=1 // pred_check
      _
    $region3: #{decoder_layer_forward.12} parent=1 // pred_check_branch
      %15 = sbr.rel (0) target = $region5
    $region4: #{decoder_layer_forward.12} parent=1 // pred_region
      %17 = vsyncadd [#allocation3], 0
      %s18 = sshll.u32 %s0, 4
      %s19 = int_to_ptr.hbm [resolvable:$true] %s18
      %s20 = sshll.u32 [#allocation2], 4
      %s21 = int_to_ptr.vmem [resolvable:$true] %s20
      %26 = dma.hbm_to_vmem [thread:$0]  %s19, 512, %s21, [#allocation3], 128, 128, 8
    $region5: #{decoder_layer_forward.12} parent=1 // pred_fallthru
      _
    // Predicated region
    $region6: #{decoder_layer_forward.12} parent=1 // pred_check
      _
    $region7: #{decoder_layer_forward.12} parent=1 // pred_check_branch
      %28 = sbr.rel (0) target = $region9
    $region8: #{decoder_layer_forward.12} parent=1 // pred_region
      %30 = vsyncadd [#allocation5], 0
      %s31 = sshll.u32 %s1, 4
      %s32 = int_to_ptr.hbm [resolvable:$true] %s31
      %s33 = sshll.u32 [#allocation4], 4
      %s34 = int_to_ptr.vmem [resolvable:$true] %s33
      %39 = dma.hbm_to_vmem [thread:$0]  %s32, 512, %s34, [#allocation5], 128, 128, 8
    $region9: #{decoder_layer_forward.12} parent=1 // pred_fallthru
      _
    // Predicated region
    $region10: #{decoder_layer_forward.12} parent=1 // pred_check
      _
    $region11: #{decoder_layer_forward.12} parent=1 // pred_check_branch
      %41 = sbr.rel (0) target = $region13
    $region12: #{decoder_layer_forward.12} parent=1 // pred_region
      %43 = vsyncadd [#allocation5], 0
      %s44 = sshll.u32 %s2, 4
      %s45 = int_to_ptr.hbm [resolvable:$true] %s44
      %s46 = sshll.u32 [#allocation6], 4
      %s47 = int_to_ptr.vmem [resolvable:$true] %s46
      %52 = dma.hbm_to_vmem [thread:$0]  %s45, 512, %s47, [#allocation5], 128, 128, 8
    $region13: #{decoder_layer_forward.12} parent=1 // pred_fallthru
      _
    // Predicated region
    $region14: #{decoder_layer_forward.12} parent=1 // pred_check
      _
    $region15: #{decoder_layer_forward.12} parent=1 // pred_check_branch
      %54 = sbr.rel (0) target = $region17
    $region16: #{decoder_layer_forward.12} parent=1 // pred_region
      _
    $region17: #{decoder_layer_forward.12} parent=1 // pred_fallthru
      _
    // Predicated region
    $region18: #{decoder_layer_forward.12} parent=1 // pred_check
      _
    $region19: #{decoder_layer_forward.12} parent=1 // pred_check_branch
      %56 = sbr.rel (0) target = $region21
    $region20: #{decoder_layer_forward.12} parent=1 // pred_region
      _
    $region21: #{decoder_layer_forward.12} parent=1 // pred_fallthru
      _
    // Predicated region
    $region22: #{decoder_layer_forward.12} parent=1 // pred_check
      _
    $region23: #{decoder_layer_forward.12} parent=1 // pred_check_branch
      %58 = sbr.rel (0) target = $region25
    $region24: #{decoder_layer_forward.12} parent=1 // pred_region
      %60 = dma.done [#allocation3], 512
    $region25: #{decoder_layer_forward.12} parent=1 // pred_fallthru
      _
    // Predicated region
    $region26: #{decoder_layer_forward.12} parent=1 // pred_check
      _
    $region27: #{decoder_layer_forward.12} parent=1 // pred_check_branch
      %62 = sbr.rel (0) target = $region29
    $region28: #{decoder_layer_forward.12} parent=1 // pred_region
      %64 = dma.done [#allocation5], 512
    $region29: #{decoder_layer_forward.12} parent=1 // pred_fallthru
      _
    // Predicated region
    $region30: #{decoder_layer_forward.12} parent=1 // pred_check
      _
    $region31: #{decoder_layer_forward.12} parent=1 // pred_check_branch
      %66 = sbr.rel (0) target = $region33
    $region32: #{decoder_layer_forward.12} parent=1 // pred_region
      %68 = dma.done [#allocation5], 512
    $region33: #{decoder_layer_forward.12} parent=1 // pred_fallthru
      _
    %v69 = vld [vmem:[#allocation2] sm:$0xff]
    %v70 = vld [vmem:[#allocation2 + $0x8] sm:$0xff]
    %v71 = vld [vmem:[#allocation2 + $0x10] sm:$0xff]
    %v72 = vld [vmem:[#allocation2 + $0x18] sm:$0xff]
    %v73 = vld [vmem:[#allocation4] sm:$0xff]
    %v74 = vld [vmem:[#allocation4 + $0x8] sm:$0xff]
    %v75 = vld [vmem:[#allocation4 + $0x10] sm:$0xff]
    %v76 = vld [vmem:[#allocation4 + $0x18] sm:$0xff]
    %v77 = vld [vmem:[%s3] sm:$0x1]
    %v79 = vperm.slane %v77, 0
    %vm81 = vcmask 261120
    %v83 = vsel %vm81, %v69, 0
    %v86 = vsel %vm81, %v70, 0
    %v89 = vsel %vm81, %v71, 0
    %v92 = vsel %vm81, %v72, 0
    %94 = vmatpush.msra.mxu0 0.0
    %95 = vmatpush.msra.mxu0 0.0
    %96 = vmatpush.msra.mxu0 0.0
    %97 = vmatpush.msra.mxu0 0.0
    %98 = vmatpush.msra.mxu0 0.0
    %99 = vmatpush.msra.mxu0 0.0
    %100 = vmatpush.msra.mxu0 0.0
    %101 = vmatpush.msra.mxu0 0.0
    %102 = vmatpush.msra.mxu0 0.0
    %103 = vmatpush.msra.mxu0 0.0
    %104 = vmatpush.msra.mxu0 0.0
    %105 = vmatpush.msra.mxu0 0.0
    %106 = vmatpush.msra.mxu0 %v76
    %107 = vmatpush.msra.mxu0 %v75
    %108 = vmatpush.msra.mxu0 %v74
    %109 = vmatpush.msra.mxu0 %v73
    %110 = vmatmul.f32.gmra.mxu0 %v83
    %v111 = vpop.f32.mrf.mxu0
    %v112 = vadd.f32 %v79, %v111
    %113 = vmatmul.f32.gmra.mxu0 %v86
    %v114 = vpop.f32.mrf.mxu0
    %v115 = vadd.f32 %v79, %v114
    %116 = vmatmul.f32.gmra.mxu0 %v89
    %v117 = vpop.f32.mrf.mxu0
    %v118 = vadd.f32 %v79, %v117
    %119 = vmatmul.f32.gmra.mxu0 %v92
    %v120 = vpop.f32.mrf.mxu0
    %v121 = vadd.f32 %v79, %v120
    %122 = vdwg.mxu0
    %123 = vst.msk [vmem:[%s5] sm:$0xff] %vm81, %v112
    %124 = vst.msk [vmem:[%s5 + $0x8] sm:$0xff] %vm81, %v115
    %125 = vst.msk [vmem:[%s5 + $0x10] sm:$0xff] %vm81, %v118
    %126 = vst.msk [vmem:[%s5 + $0x18] sm:$0xff] %vm81, %v121
    %v127 = vld [vmem:[#allocation6] sm:$0xff]
    %v128 = vld [vmem:[#allocation6 + $0x8] sm:$0xff]
    %v129 = vld [vmem:[#allocation6 + $0x10] sm:$0xff]
    %v130 = vld [vmem:[#allocation6 + $0x18] sm:$0xff]
    %v131 = vld [vmem:[%s4] sm:$0x1]
    %v133 = vperm.slane %v131, 0
    %135 = vmatpush.msra.mxu0 0.0
    %136 = vmatpush.msra.mxu0 0.0
    %137 = vmatpush.msra.mxu0 0.0
    %138 = vmatpush.msra.mxu0 0.0
    %139 = vmatpush.msra.mxu0 0.0
    %140 = vmatpush.msra.mxu0 0.0
    %141 = vmatpush.msra.mxu0 0.0
    %142 = vmatpush.msra.mxu0 0.0
    %143 = vmatpush.msra.mxu0 0.0
    %144 = vmatpush.msra.mxu0 0.0
    %145 = vmatpush.msra.mxu0 0.0
    %146 = vmatpush.msra.mxu0 0.0
    %147 = vmatpush.msra.mxu0 %v130
    %148 = vmatpush.msra.mxu0 %v129
    %149 = vmatpush.msra.mxu0 %v128
    %150 = vmatpush.msra.mxu0 %v127
    %151 = vmatmul.f32.gmra.mxu0 %v83
    %v152 = vpop.f32.mrf.mxu0
    %v153 = vadd.f32 %v133, %v152
    %154 = vmatmul.f32.gmra.mxu0 %v86
    %v155 = vpop.f32.mrf.mxu0
    %v156 = vadd.f32 %v133, %v155
    %157 = vmatmul.f32.gmra.mxu0 %v89
    %v158 = vpop.f32.mrf.mxu0
    %v159 = vadd.f32 %v133, %v158
    %160 = vmatmul.f32.gmra.mxu0 %v92
    %v161 = vpop.f32.mrf.mxu0
    %v162 = vadd.f32 %v133, %v161
    %163 = vdwg.mxu0
    %164 = vst.msk [vmem:[%s6] sm:$0xff] %vm81, %v153
    %165 = vst.msk [vmem:[%s6 + $0x8] sm:$0xff] %vm81, %v156
    %166 = vst.msk [vmem:[%s6 + $0x10] sm:$0xff] %vm81, %v159
    %167 = vst.msk [vmem:[%s6 + $0x18] sm:$0xff] %vm81, %v162
    // Predicated region
    $region34: #{decoder_layer_forward.12} parent=1 // pred_check
      _
    $region35: #{decoder_layer_forward.12} parent=1 // pred_check_branch
      %169 = sbr.rel (0) target = $region37
    $region36: #{decoder_layer_forward.12} parent=1 // pred_region
      _
    $region37: #{decoder_layer_forward.12} parent=1 // pred_fallthru
      _
    // Predicated region
    $region38: #{decoder_layer_forward.12} parent=1 // pred_check
      _
    $region39: #{decoder_layer_forward.12} parent=1 // pred_check_branch
      %171 = sbr.rel (0) target = $region41
    $region40: #{decoder_layer_forward.12} parent=1 // pred_region
      _
    $region41: #{decoder_layer_forward.12} parent=1 // pred_fallthru
      _
    // Predicated region
    $region42: #{decoder_layer_forward.12} parent=1 // pred_check
      _
    $region43: #{decoder_layer_forward.12} parent=1 // pred_check_branch
      %173 = sbr.rel (0) target = $region45
    $region44: #{decoder_layer_forward.12} parent=1 // pred_region
      _
    $region45: #{decoder_layer_forward.12} parent=1 // pred_fallthru
      _
    // Predicated region
    $region46: #{decoder_layer_forward.12} parent=1 // pred_check
      _
    $region47: #{decoder_layer_forward.12} parent=1 // pred_check_branch
      %175 = sbr.rel (0) target = $region49
    $region48: #{decoder_layer_forward.12} parent=1 // pred_region
      _
    $region49: #{decoder_layer_forward.12} parent=1 // pred_fallthru
      _
    %176 = vsyncpa [#allocation3], 1
    %177 = vsyncpa [#allocation5], 1

// kernel: decoder_layer_forward.13
$region0: #{decoder_layer_forward.13}
  #allocation0 [shape = 'u32[]', space=smem, size = 0x4, offset = 0x4, fixed_abs, tag = 'smem constant byte address 0x4 - core index']
  #allocation1 [shape = 'u32[72,128]{1,0:T(1,128)}', space=vmem, size = 0x9000, scoped, tag = 'internal scratch']
  %s0 = inlined_call_operand.vmem [shape: f32[2,8,32], index: 0, kind: input, shape index: {}]
  %s1 = inlined_call_operand.vmem [shape: f32[2,16,32], index: 1, kind: input, shape index: {}]
  %s2 = inlined_call_operand.vmem [shape: f32[2,16,32], index: 2, kind: input, shape index: {}]
  %s3 = inlined_call_operand.vmem [shape: s8[2,1,16], index: 3, kind: input, shape index: {}]
  %s4 = inlined_call_operand.vmem [shape: f32[2,8,32], index: 4, kind: output, shape index: {}]
  %s5 = sld [smem:[#allocation0]]
  $region49: #{decoder_layer_forward.13} parent=0
    _
  %s7 = ssub.s32 1, %s5
  %s8 = scalar_select 0, %s7, %s5
  loop: start=0, step=1, limit=4
  $region2: #{decoder_layer_forward.13} parent=0 // loop_pre_header
    _
  $region3: #{decoder_layer_forward.13} parent=0 // loop_header
    %s10 = sphi 0, %s14
    %p11 = scmp.ge.s32.totalorder %s10, 4
    %s17 = sphi 0, %s29
    %s18 = sphi 0, %s25
    %s19 = sphi 0, %s17
    %s20 = sphi 0, %s18
    %s21 = sphi 0, %s19
    %s22 = sphi 0, %s20
    %s34 = sphi 0, %s36
    %s37 = sphi 0, %s34
    %s38 = sphi 0, %s37
    %s54 = sphi 0, %s38
    %s62 = sphi 0, %s64
    %s65 = sphi 0, %s62
    %s66 = sphi 0, %s65
    %s82 = sphi 0, %s66
    %s90 = sphi 0, %s92
    %s93 = sphi 0, %s90
    %s94 = sphi 0, %s93
    %s110 = sphi 0, %s94
    %s116 = sphi 0, %s118
    %s119 = sphi 0, %s116
    %s120 = sphi 0, %s119
    %s136 = sphi 0, %s120
    %s144 = sphi 0, %s146
    %s147 = sphi 0, %s144
    %s148 = sphi 0, %s147
    %s164 = sphi 0, %s148
  $region4: #{decoder_layer_forward.13} parent=0 // loop_header_branch
    %13 = sbr.rel (%p11) target = $region8
  $region5: #{decoder_layer_forward.13} parent=0 // loop_body
    %s15 = ssub.s32 %s10, 1
    %s16 = ssub.s32 %s10, 2
    %s23 = sadd.s32 1, %s18
    %p24 = scmp.ge.s32.totalorder %s23, 1
    %s25 = scalar_select %p24, 0, %s23
    %s26 = sadd.s32 1, %s17
    %s27 = scalar_select %p24, %s26, %s17
    %p28 = scmp.ge.s32.totalorder %s27, 2
    %s29 = scalar_select %p28, 0, %s27
    %s30 = ssub.s32 %s17, %s29
    %s31 = ssub.s32 %s18, %s25
    %s32 = sor.u32 %s30, %s31
    %p33 = scmp.eq.s32.totalorder %s32, 0
    %s35 = sadd.s32 %s34, 1
    %s36 = scalar_select %p33, %s34, %s35
    %p39 = pneg %p33
    %p40 = scmp.eq.s32.totalorder %s10, 1
    %p41 = por %p39, %p40
    %p42 = scmp.ne.s32.totalorder %s34, %s37
    %p43 = scmp.eq.s32.totalorder %s10, 0
    %p44 = por %p42, %p43
    %p45 = scmp.ne.s32.totalorder %s34, %s37
    %p46 = scmp.eq.s32.totalorder %s15, 1
    %p47 = por %p45, %p46
    %p48 = scmp.ne.s32.totalorder %s37, %s38
    %p49 = scmp.eq.s32.totalorder %s15, 0
    %p50 = por %p48, %p49
    %p51 = scmp.ne.s32.totalorder %s37, %s38
    %p52 = scmp.eq.s32.totalorder %s16, 1
    %p53 = por %p51, %p52
    %p55 = scmp.ne.s32.totalorder %s38, %s54
    %p56 = scmp.eq.s32.totalorder %s16, 0
    %p57 = por %p55, %p56
    %s58 = ssub.s32 %s17, %s29
    %s59 = ssub.s32 %s18, %s25
    %s60 = sor.u32 %s58, %s59
    %p61 = scmp.eq.s32.totalorder %s60, 0
    %s63 = sadd.s32 %s62, 1
    %s64 = scalar_select %p61, %s62, %s63
    %p67 = pneg %p61
    %p68 = scmp.eq.s32.totalorder %s10, 1
    %p69 = por %p67, %p68
    %p70 = scmp.ne.s32.totalorder %s62, %s65
    %p71 = scmp.eq.s32.totalorder %s10, 0
    %p72 = por %p70, %p71
    %p73 = scmp.ne.s32.totalorder %s62, %s65
    %p74 = scmp.eq.s32.totalorder %s15, 1
    %p75 = por %p73, %p74
    %p76 = scmp.ne.s32.totalorder %s65, %s66
    %p77 = scmp.eq.s32.totalorder %s15, 0
    %p78 = por %p76, %p77
    %p79 = scmp.ne.s32.totalorder %s65, %s66
    %p80 = scmp.eq.s32.totalorder %s16, 1
    %p81 = por %p79, %p80
    %p83 = scmp.ne.s32.totalorder %s66, %s82
    %p84 = scmp.eq.s32.totalorder %s16, 0
    %p85 = por %p83, %p84
    %s86 = ssub.s32 %s17, %s29
    %s87 = ssub.s32 %s18, %s25
    %s88 = sor.u32 %s86, %s87
    %p89 = scmp.eq.s32.totalorder %s88, 0
    %s91 = sadd.s32 %s90, 1
    %s92 = scalar_select %p89, %s90, %s91
    %p95 = pneg %p89
    %p96 = scmp.eq.s32.totalorder %s10, 1
    %p97 = por %p95, %p96
    %p98 = scmp.ne.s32.totalorder %s90, %s93
    %p99 = scmp.eq.s32.totalorder %s10, 0
    %p100 = por %p98, %p99
    %p101 = scmp.ne.s32.totalorder %s90, %s93
    %p102 = scmp.eq.s32.totalorder %s15, 1
    %p103 = por %p101, %p102
    %p104 = scmp.ne.s32.totalorder %s93, %s94
    %p105 = scmp.eq.s32.totalorder %s15, 0
    %p106 = por %p104, %p105
    %p107 = scmp.ne.s32.totalorder %s93, %s94
    %p108 = scmp.eq.s32.totalorder %s16, 1
    %p109 = por %p107, %p108
    %p111 = scmp.ne.s32.totalorder %s94, %s110
    %p112 = scmp.eq.s32.totalorder %s16, 0
    %p113 = por %p111, %p112
    %s114 = ssub.s32 %s17, %s29
    %p115 = scmp.eq.s32.totalorder %s114, 0
    %s117 = sadd.s32 %s116, 1
    %s118 = scalar_select %p115, %s116, %s117
    %p121 = pneg %p115
    %p122 = scmp.eq.s32.totalorder %s10, 1
    %p123 = por %p121, %p122
    %p124 = scmp.ne.s32.totalorder %s116, %s119
    %p125 = scmp.eq.s32.totalorder %s10, 0
    %p126 = por %p124, %p125
    %p127 = scmp.ne.s32.totalorder %s116, %s119
    %p128 = scmp.eq.s32.totalorder %s15, 1
    %p129 = por %p127, %p128
    %p130 = scmp.ne.s32.totalorder %s119, %s120
    %p131 = scmp.eq.s32.totalorder %s15, 0
    %p132 = por %p130, %p131
    %p133 = scmp.ne.s32.totalorder %s119, %s120
    %p134 = scmp.eq.s32.totalorder %s16, 1
    %p135 = por %p133, %p134
    %p137 = scmp.ne.s32.totalorder %s120, %s136
    %p138 = scmp.eq.s32.totalorder %s16, 0
    %p139 = por %p137, %p138
    %s140 = ssub.s32 %s17, %s29
    %s141 = ssub.s32 %s18, %s25
    %s142 = sor.u32 %s140, %s141
    %p143 = scmp.eq.s32.totalorder %s142, 0
    %s145 = sadd.s32 %s144, 1
    %s146 = scalar_select %p143, %s144, %s145
    %p149 = pneg %p143
    %p150 = scmp.eq.s32.totalorder %s10, 1
    %p151 = por %p149, %p150
    %p152 = scmp.ne.s32.totalorder %s144, %s147
    %p153 = scmp.eq.s32.totalorder %s10, 0
    %p154 = por %p152, %p153
    %p155 = scmp.ne.s32.totalorder %s144, %s147
    %p156 = scmp.eq.s32.totalorder %s15, 1
    %p157 = por %p155, %p156
    %p158 = scmp.ne.s32.totalorder %s147, %s148
    %p159 = scmp.eq.s32.totalorder %s15, 0
    %p160 = por %p158, %p159
    %p161 = scmp.ne.s32.totalorder %s147, %s148
    %p162 = scmp.eq.s32.totalorder %s16, 1
    %p163 = por %p161, %p162
    %p165 = scmp.ne.s32.totalorder %s148, %s164
    %p166 = scmp.eq.s32.totalorder %s16, 0
    %p167 = por %p165, %p166
    %p168 = scmp.le.s32.totalorder 1, %s10
    %p169 = scmp.lt.s32.totalorder %s10, 3
    %p170 = pnand %p168, %p169
    %p171 = pneg %p170
    // Predicated region
    $region9: #{decoder_layer_forward.13} parent=5 // pred_check
      _
    $region10: #{decoder_layer_forward.13} parent=5 // pred_check_branch
      %173 = sbr.rel (%p170) target = $region12
    $region11: #{decoder_layer_forward.13} parent=5 // pred_region
      %s174 = ssub.s32 %s10, 1
    $region12: #{decoder_layer_forward.13} parent=5 // pred_fallthru
      _
    %p175 = scmp.lt.s32.totalorder %s10, 2
    // Predicated region
    $region13: #{decoder_layer_forward.13} parent=5 // pred_check
      %p176 = pneg %p175
    $region14: #{decoder_layer_forward.13} parent=5 // pred_check_branch
      %178 = sbr.rel (%p176) target = $region16
    $region15: #{decoder_layer_forward.13} parent=5 // pred_region
      // Predicated region
      $region17: #{decoder_layer_forward.13} parent=15 // pred_check
        %p179 = pneg %p44
      $region18: #{decoder_layer_forward.13} parent=15 // pred_check_branch
        %181 = sbr.rel (%p179) target = $region20
      $region19: #{decoder_layer_forward.13} parent=15 // pred_region
        %p182 = scmp.lt.s32.totalorder %s17, 1
        %s183 = scalar_select %p182, %s17, 1
        %p184 = scmp.lt.s32.totalorder %s18, 0
        %s185 = scalar_select %p184, %s18, 0
        %s186 = sadd.s32 %s185, %s183
        %s187 = smul.addr %s186, 8
        %s188 = scalar_lea.vmem %s0, %s187
      $region20: #{decoder_layer_forward.13} parent=15 // pred_fallthru
        _
      // Predicated region
      $region21: #{decoder_layer_forward.13} parent=15 // pred_check
        %p189 = pneg %p72
      $region22: #{decoder_layer_forward.13} parent=15 // pred_check_branch
        %191 = sbr.rel (%p189) target = $region24
      $region23: #{decoder_layer_forward.13} parent=15 // pred_region
        %p192 = scmp.lt.s32.totalorder %s17, 1
        %s193 = scalar_select %p192, %s17, 1
        %p194 = scmp.lt.s32.totalorder %s18, 0
        %s195 = scalar_select %p194, %s18, 0
        %s196 = smul.addr %s193, 2
        %s197 = sadd.s32 %s195, %s196
        %s198 = smul.addr %s197, 8
        %s199 = scalar_lea.vmem %s1, %s198
      $region24: #{decoder_layer_forward.13} parent=15 // pred_fallthru
        _
      // Predicated region
      $region25: #{decoder_layer_forward.13} parent=15 // pred_check
        %p200 = pneg %p100
      $region26: #{decoder_layer_forward.13} parent=15 // pred_check_branch
        %202 = sbr.rel (%p200) target = $region28
      $region27: #{decoder_layer_forward.13} parent=15 // pred_region
        %p203 = scmp.lt.s32.totalorder %s17, 1
        %s204 = scalar_select %p203, %s17, 1
        %p205 = scmp.lt.s32.totalorder %s18, 0
        %s206 = scalar_select %p205, %s18, 0
        %s207 = smul.addr %s204, 2
        %s208 = sadd.s32 %s206, %s207
        %s209 = smul.addr %s208, 8
        %s210 = scalar_lea.vmem %s2, %s209
      $region28: #{decoder_layer_forward.13} parent=15 // pred_fallthru
        _
      // Predicated region
      $region29: #{decoder_layer_forward.13} parent=15 // pred_check
        %p211 = pneg %p126
      $region30: #{decoder_layer_forward.13} parent=15 // pred_check_branch
        %213 = sbr.rel (%p211) target = $region32
      $region31: #{decoder_layer_forward.13} parent=15 // pred_region
        %p214 = scmp.lt.s32.totalorder %s17, 1
        %s215 = scalar_select %p214, %s17, 1
        %s216 = scalar_lea.vmem %s3, %s215
      $region32: #{decoder_layer_forward.13} parent=15 // pred_fallthru
        _
    $region16: #{decoder_layer_forward.13} parent=5 // pred_fallthru
      _
    %p217 = scmp.le.s32.totalorder 1, %s10
    %p218 = scmp.lt.s32.totalorder %s10, 3
    %p219 = pnand %p217, %p218
    %p220 = pneg %p219
    // Predicated region
    $region33: #{decoder_layer_forward.13} parent=5 // pred_check
      _
    $region34: #{decoder_layer_forward.13} parent=5 // pred_check_branch
      %222 = sbr.rel (%p219) target = $region36
    $region35: #{decoder_layer_forward.13} parent=5 // pred_region
      %s223 = ssub.s32 %s10, 1
      %p224 = scmp.lt.s32.totalorder %s19, 1
      %s225 = scalar_select %p224, %s19, 1
      %p226 = scmp.lt.s32.totalorder %s20, 0
      %s227 = scalar_select %p226, %s20, 0
      %s228 = sadd.s32 %s227, %s225
      %s229 = smul.addr %s228, 8
      %s230 = scalar_lea.vmem %s0, %s229
      %p231 = pneg %p50
      %p232 = pneg %p47
      %p233 = scmp.lt.s32.totalorder %s19, 1
      %s234 = scalar_select %p233, %s19, 1
      %p235 = scmp.lt.s32.totalorder %s20, 0
      %s236 = scalar_select %p235, %s20, 0
      %s237 = smul.addr %s234, 2
      %s238 = sadd.s32 %s236, %s237
      %s239 = smul.addr %s238, 8
      %s240 = scalar_lea.vmem %s1, %s239
      %p241 = pneg %p78
      %p242 = pneg %p75
      %p243 = scmp.lt.s32.totalorder %s19, 1
      %s244 = scalar_select %p243, %s19, 1
      %p245 = scmp.lt.s32.totalorder %s20, 0
      %s246 = scalar_select %p245, %s20, 0
      %s247 = smul.addr %s244, 2
      %s248 = sadd.s32 %s246, %s247
      %s249 = smul.addr %s248, 8
      %s250 = scalar_lea.vmem %s2, %s249
      %p251 = pneg %p106
      %p252 = pneg %p103
      %p253 = scmp.lt.s32.totalorder %s19, 1
      %s254 = scalar_select %p253, %s19, 1
      %s255 = scalar_lea.vmem %s3, %s254
      %p256 = pneg %p132
      %p257 = pneg %p129
      %p258 = pneg %p160
      %p259 = pneg %p157
      %p260 = scmp.lt.s32.totalorder %s19, 1
      %s261 = scalar_select %p260, %s19, 1
      %p262 = scmp.lt.s32.totalorder %s20, 0
      %s263 = scalar_select %p262, %s20, 0
      %s264 = sadd.s32 %s263, %s261
      %s265 = smul.addr %s264, 8
      %s266 = scalar_lea.vmem %s4, %s265
      %p267 = scmp.lt.s32.totalorder %s19, 1
      %s268 = scalar_select %p267, %s19, 1
      %p269 = scmp.lt.s32.totalorder %s20, 0
      %s270 = scalar_select %p269, %s20, 0
      %s271 = sadd.s32 %s270, %s268
      %s272 = smul.addr %s271, 8
      %s273 = scalar_lea.vmem %s0, %s272
      %p274 = scmp.lt.s32.totalorder %s19, 1
      %s275 = scalar_select %p274, %s19, 1
      %p276 = scmp.lt.s32.totalorder %s20, 0
      %s277 = scalar_select %p276, %s20, 0
      %s278 = smul.addr %s275, 2
      %s279 = sadd.s32 %s277, %s278
      %s280 = smul.addr %s279, 8
      %s281 = scalar_lea.vmem %s1, %s280
      %p282 = scmp.lt.s32.totalorder %s19, 1
      %s283 = scalar_select %p282, %s19, 1
      %p284 = scmp.lt.s32.totalorder %s20, 0
      %s285 = scalar_select %p284, %s20, 0
      %s286 = smul.addr %s283, 2
      %s287 = sadd.s32 %s285, %s286
      %s288 = smul.addr %s287, 8
      %s289 = scalar_lea.vmem %s2, %s288
      %p290 = scmp.lt.s32.totalorder %s19, 1
      %s291 = scalar_select %p290, %s19, 1
      %s292 = scalar_lea.vmem %s3, %s291
      %p293 = scmp.lt.s32.totalorder %s19, 1
      %s294 = scalar_select %p293, %s19, 1
      %p295 = scmp.lt.s32.totalorder %s20, 0
      %s296 = scalar_select %p295, %s20, 0
      %s297 = sadd.s32 %s296, %s294
      %s298 = smul.addr %s297, 8
      %s299 = scalar_lea.vmem %s4, %s298
      %v300 = vld [vmem:[%s292] sm:$0x1]
      %v301 = vunpack.c.0.s8 %v300
      %vm302 = vcmp.eq.s32.totalorder %v301, 0
      %v303 = vld [vmem:[%s273] sm:$0xff]
      %v304 = vld [vmem:[%s281] sm:$0xff]
      %v305 = vld [vmem:[%s281 + $0x8] sm:$0xff]
      %v306 = vld [vmem:[%s289] sm:$0xff]
      %v307 = vld [vmem:[%s289 + $0x8] sm:$0xff]
      %vm308 = vcmask 64512
      %v310 = vsel %vm308, %v303, 0
      %v313 = vsel %vm308, %v304, 0
      %v316 = vsel %vm308, %v305, 0
      %318 = vmatpush.xpose.msra.mxu0 0.0
      %319 = vmatpush.xpose.msra.mxu0 0.0
      %320 = vmatpush.xpose.msra.mxu0 0.0
      %321 = vmatpush.xpose.msra.mxu0 0.0
      %322 = vmatpush.xpose.msra.mxu0 0.0
      %323 = vmatpush.xpose.msra.mxu0 0.0
      %324 = vmatpush.xpose.msra.mxu0 0.0
      %325 = vmatpush.xpose.msra.mxu0 0.0
      %326 = vmatpush.xpose.msra.mxu0 0.0
      %327 = vmatpush.xpose.msra.mxu0 0.0
      %328 = vmatpush.xpose.msra.mxu0 0.0
      %329 = vmatpush.xpose.msra.mxu0 0.0
      %330 = vmatpush.xpose.msra.mxu0 0.0
      %331 = vmatpush.xpose.msra.mxu0 0.0
      %332 = vmatpush.xpose.msra.mxu0 %v316
      %333 = vmatpush.xpose.msra.mxu0 %v313
      %334 = vmatmul.f32.gmra.mxu0 %v310
      %v335 = vpop.f32.mrf.mxu0
      %v336 = vadd.f32 0.0, %v335
      %337 = vdwg.mxu0
      %v338 = vmul.f32 %v336, 0.35355338
      %v339 = vsel %vm302, 1, 0
      %v340 = vperm.slane %v339, 0
      %vm341 = vcmp.eq.s32.totalorder %v340, 1
      %v342 = vsel %vm341, -1e+09, %v338
      %vm343 = vcmask 130048
      %v344 = vsel %vm343, %v342, -inf
      %345 = vmax.xlane.f32.xlu0 %v344
      %v346 = vpop.xlane.xlu0 %345
      %v347 = vsub.f32 %v342, %v346
      %v348 = vmul.f32 %v347, 1.442695
      %v349 = vpow.pop %v348
      %v350 = vsel %vm343, %v349, 0.0
      %351 = vadd.xlane.f32.xlu0 %v350
      %v352 = vpop.xlane.xlu0 %351
      %v353 = vrcp.pop %v352
      %v354 = vmul.f32 %v352, %v353
      %v355 = vsub.f32 2.0, %v354
      %v356 = vmul.f32 %v353, %v355
      %v357 = vmul.f32 %v349, %v356
      %v359 = vsel %vm343, %v357, 0
      %361 = vmatpush.msra.mxu0 0.0
      %362 = vmatpush.msra.mxu0 0.0
      %363 = vmatpush.msra.mxu0 0.0
      %364 = vmatpush.msra.mxu0 0.0
      %365 = vmatpush.msra.mxu0 0.0
      %366 = vmatpush.msra.mxu0 0.0
      %367 = vmatpush.msra.mxu0 0.0
      %368 = vmatpush.msra.mxu0 0.0
      %369 = vmatpush.msra.mxu0 0.0
      %370 = vmatpush.msra.mxu0 0.0
      %371 = vmatpush.msra.mxu0 0.0
      %372 = vmatpush.msra.mxu0 0.0
      %373 = vmatpush.msra.mxu0 0.0
      %374 = vmatpush.msra.mxu0 0.0
      %375 = vmatpush.msra.mxu0 %v307
      %376 = vmatpush.msra.mxu0 %v306
      %377 = vmatmul.f32.gmra.mxu0 %v359
      %v378 = vpop.f32.mrf.mxu0
      %v379 = vadd.f32 0.0, %v378
      %380 = vdwg.mxu0
      %381 = vst.msk [vmem:[%s299] sm:$0xff] %vm308, %v379
      %v382 = vld [vmem:[%s273] sm:$0xff]
      %v383 = vld [vmem:[%s281] sm:$0xff]
      %v384 = vld [vmem:[%s281 + $0x8] sm:$0xff]
      %v385 = vld [vmem:[%s289] sm:$0xff]
      %v386 = vld [vmem:[%s289 + $0x8] sm:$0xff]
      %388 = vrot.lane.b32.xlu0 %v382, 120
      %v389 = vpop.permute.xlu0 %388
      %392 = vrot.lane.b32.xlu0 %v383, 120
      %v393 = vpop.permute.xlu0 %392
      %394 = vrot.lane.b32.xlu0 %v384, 120
      %v395 = vpop.permute.xlu0 %394
      %v396 = vsel %vm308, %v389, 0
      %v398 = vsel %vm308, %v393, 0
      %v400 = vsel %vm308, %v395, 0
      %402 = vmatpush.xpose.msra.mxu0 0.0
      %403 = vmatpush.xpose.msra.mxu0 0.0
      %404 = vmatpush.xpose.msra.mxu0 0.0
      %405 = vmatpush.xpose.msra.mxu0 0.0
      %406 = vmatpush.xpose.msra.mxu0 0.0
      %407 = vmatpush.xpose.msra.mxu0 0.0
      %408 = vmatpush.xpose.msra.mxu0 0.0
      %409 = vmatpush.xpose.msra.mxu0 0.0
      %410 = vmatpush.xpose.msra.mxu0 0.0
      %411 = vmatpush.xpose.msra.mxu0 0.0
      %412 = vmatpush.xpose.msra.mxu0 0.0
      %413 = vmatpush.xpose.msra.mxu0 0.0
      %414 = vmatpush.xpose.msra.mxu0 0.0
      %415 = vmatpush.xpose.msra.mxu0 0.0
      %416 = vmatpush.xpose.msra.mxu0 %v400
      %417 = vmatpush.xpose.msra.mxu0 %v398
      %418 = vmatmul.f32.gmra.mxu0 %v396
      %v419 = vpop.f32.mrf.mxu0
      %v420 = vadd.f32 0.0, %v419
      %421 = vdwg.mxu0
      %v422 = vmul.f32 %v420, 0.35355338
      %v423 = vsel %vm341, -1e+09, %v422
      %v424 = vsel %vm343, %v423, -inf
      %425 = vmax.xlane.f32.xlu0 %v424
      %v426 = vpop.xlane.xlu0 %425
      %v427 = vsub.f32 %v423, %v426
      %v428 = vmul.f32 %v427, 1.442695
      %v429 = vpow.pop %v428
      %v430 = vsel %vm343, %v429, 0.0
      %431 = vadd.xlane.f32.xlu0 %v430
      %v432 = vpop.xlane.xlu0 %431
      %v433 = vrcp.pop %v432
      %v434 = vmul.f32 %v432, %v433
      %v435 = vsub.f32 2.0, %v434
      %v436 = vmul.f32 %v433, %v435
      %v437 = vmul.f32 %v429, %v436
      %440 = vrot.lane.b32.xlu0 %v385, 120
      %v441 = vpop.permute.xlu0 %440
      %442 = vrot.lane.b32.xlu0 %v386, 120
      %v443 = vpop.permute.xlu0 %442
      %v447 = vsel %vm343, %v437, 0
      %449 = vmatpush.msra.mxu0 0.0
      %450 = vmatpush.msra.mxu0 0.0
      %451 = vmatpush.msra.mxu0 0.0
      %452 = vmatpush.msra.mxu0 0.0
      %453 = vmatpush.msra.mxu0 0.0
      %454 = vmatpush.msra.mxu0 0.0
      %455 = vmatpush.msra.mxu0 0.0
      %456 = vmatpush.msra.mxu0 0.0
      %457 = vmatpush.msra.mxu0 0.0
      %458 = vmatpush.msra.mxu0 0.0
      %459 = vmatpush.msra.mxu0 0.0
      %460 = vmatpush.msra.mxu0 0.0
      %461 = vmatpush.msra.mxu0 0.0
      %462 = vmatpush.msra.mxu0 0.0
      %463 = vmatpush.msra.mxu0 %v443
      %464 = vmatpush.msra.mxu0 %v441
      %465 = vmatmul.f32.gmra.mxu0 %v447
      %v466 = vpop.f32.mrf.mxu0
      %v467 = vadd.f32 0.0, %v466
      %468 = vdwg.mxu0
      %470 = vrot.lane.b32.xlu0 %v467, 8
      %v471 = vpop.permute.xlu0 %470
      %vm473 = vcmask 130112
      %474 = vst.msk [vmem:[%s299] sm:$0xff] %vm473, %v471
      %v475 = vld [vmem:[%s273] sm:$0xff]
      %v476 = vld [vmem:[%s281] sm:$0xff]
      %v477 = vld [vmem:[%s281 + $0x8] sm:$0xff]
      %v478 = vld [vmem:[%s289] sm:$0xff]
      %v479 = vld [vmem:[%s289 + $0x8] sm:$0xff]
      %481 = vrot.lane.b32.xlu0 %v475, 112
      %v482 = vpop.permute.xlu0 %481
      %485 = vrot.lane.b32.xlu0 %v476, 112
      %v486 = vpop.permute.xlu0 %485
      %487 = vrot.lane.b32.xlu0 %v477, 112
      %v488 = vpop.permute.xlu0 %487
      %v489 = vsel %vm308, %v482, 0
      %v491 = vsel %vm308, %v486, 0
      %v493 = vsel %vm308, %v488, 0
      %495 = vmatpush.xpose.msra.mxu0 0.0
      %496 = vmatpush.xpose.msra.mxu0 0.0
      %497 = vmatpush.xpose.msra.mxu0 0.0
      %498 = vmatpush.xpose.msra.mxu0 0.0
      %499 = vmatpush.xpose.msra.mxu0 0.0
      %500 = vmatpush.xpose.msra.mxu0 0.0
      %501 = vmatpush.xpose.msra.mxu0 0.0
      %502 = vmatpush.xpose.msra.mxu0 0.0
      %503 = vmatpush.xpose.msra.mxu0 0.0
      %504 = vmatpush.xpose.msra.mxu0 0.0
      %505 = vmatpush.xpose.msra.mxu0 0.0
      %506 = vmatpush.xpose.msra.mxu0 0.0
      %507 = vmatpush.xpose.msra.mxu0 0.0
      %508 = vmatpush.xpose.msra.mxu0 0.0
      %509 = vmatpush.xpose.msra.mxu0 %v493
      %510 = vmatpush.xpose.msra.mxu0 %v491
      %511 = vmatmul.f32.gmra.mxu0 %v489
      %v512 = vpop.f32.mrf.mxu0
      %v513 = vadd.f32 0.0, %v512
      %514 = vdwg.mxu0
      %v515 = vmul.f32 %v513, 0.35355338
      %v516 = vsel %vm341, -1e+09, %v515
      %v517 = vsel %vm343, %v516, -inf
      %518 = vmax.xlane.f32.xlu0 %v517
      %v519 = vpop.xlane.xlu0 %518
      %v520 = vsub.f32 %v516, %v519
      %v521 = vmul.f32 %v520, 1.442695
      %v522 = vpow.pop %v521
      %v523 = vsel %vm343, %v522, 0.0
      %524 = vadd.xlane.f32.xlu0 %v523
      %v525 = vpop.xlane.xlu0 %524
      %v526 = vrcp.pop %v525
      %v527 = vmul.f32 %v525, %v526
      %v528 = vsub.f32 2.0, %v527
      %v529 = vmul.f32 %v526, %v528
      %v530 = vmul.f32 %v522, %v529
      %533 = vrot.lane.b32.xlu0 %v478, 112
      %v534 = vpop.permute.xlu0 %533
      %535 = vrot.lane.b32.xlu0 %v479, 112
      %v536 = vpop.permute.xlu0 %535
      %v540 = vsel %vm343, %v530, 0
      %542 = vmatpush.msra.mxu0 0.0
      %543 = vmatpush.msra.mxu0 0.0
      %544 = vmatpush.msra.mxu0 0.0
      %545 = vmatpush.msra.mxu0 0.0
      %546 = vmatpush.msra.mxu0 0.0
      %547 = vmatpush.msra.mxu0 0.0
      %548 = vmatpush.msra.mxu0 0.0
      %549 = vmatpush.msra.mxu0 0.0
      %550 = vmatpush.msra.mxu0 0.0
      %551 = vmatpush.msra.mxu0 0.0
      %552 = vmatpush.msra.mxu0 0.0
      %553 = vmatpush.msra.mxu0 0.0
      %554 = vmatpush.msra.mxu0 0.0
      %555 = vmatpush.msra.mxu0 0.0
      %556 = vmatpush.msra.mxu0 %v536
      %557 = vmatpush.msra.mxu0 %v534
      %558 = vmatmul.f32.gmra.mxu0 %v540
      %v559 = vpop.f32.mrf.mxu0
      %v560 = vadd.f32 0.0, %v559
      %561 = vdwg.mxu0
      %563 = vrot.lane.b32.xlu0 %v560, 16
      %v564 = vpop.permute.xlu0 %563
      %vm566 = vcmask 195712
      %567 = vst.msk [vmem:[%s299] sm:$0xff] %vm566, %v564
      %v568 = vld [vmem:[%s273] sm:$0xff]
      %v569 = vld [vmem:[%s281] sm:$0xff]
      %v570 = vld [vmem:[%s281 + $0x8] sm:$0xff]
      %v571 = vld [vmem:[%s289] sm:$0xff]
      %v572 = vld [vmem:[%s289 + $0x8] sm:$0xff]
      %574 = vrot.lane.b32.xlu0 %v568, 104
      %v575 = vpop.permute.xlu0 %574
      %578 = vrot.lane.b32.xlu0 %v569, 104
      %v579 = vpop.permute.xlu0 %578
      %580 = vrot.lane.b32.xlu0 %v570, 104
      %v581 = vpop.permute.xlu0 %580
      %v582 = vsel %vm308, %v575, 0
      %v584 = vsel %vm308, %v579, 0
      %v586 = vsel %vm308, %v581, 0
      %588 = vmatpush.xpose.msra.mxu0 0.0
      %589 = vmatpush.xpose.msra.mxu0 0.0
      %590 = vmatpush.xpose.msra.mxu0 0.0
      %591 = vmatpush.xpose.msra.mxu0 0.0
      %592 = vmatpush.xpose.msra.mxu0 0.0
      %593 = vmatpush.xpose.msra.mxu0 0.0
      %594 = vmatpush.xpose.msra.mxu0 0.0
      %595 = vmatpush.xpose.msra.mxu0 0.0
      %596 = vmatpush.xpose.msra.mxu0 0.0
      %597 = vmatpush.xpose.msra.mxu0 0.0
      %598 = vmatpush.xpose.msra.mxu0 0.0
      %599 = vmatpush.xpose.msra.mxu0 0.0
      %600 = vmatpush.xpose.msra.mxu0 0.0
      %601 = vmatpush.xpose.msra.mxu0 0.0
      %602 = vmatpush.xpose.msra.mxu0 %v586
      %603 = vmatpush.xpose.msra.mxu0 %v584
      %604 = vmatmul.f32.gmra.mxu0 %v582
      %v605 = vpop.f32.mrf.mxu0
      %v606 = vadd.f32 0.0, %v605
      %607 = vdwg.mxu0
      %v608 = vmul.f32 %v606, 0.35355338
      %v609 = vsel %vm341, -1e+09, %v608
      %v610 = vsel %vm343, %v609, -inf
      %611 = vmax.xlane.f32.xlu0 %v610
      %v612 = vpop.xlane.xlu0 %611
      %v613 = vsub.f32 %v609, %v612
      %v614 = vmul.f32 %v613, 1.442695
      %v615 = vpow.pop %v614
      %v616 = vsel %vm343, %v615, 0.0
      %617 = vadd.xlane.f32.xlu0 %v616
      %v618 = vpop.xlane.xlu0 %617
      %v619 = vrcp.pop %v618
      %v620 = vmul.f32 %v618, %v619
      %v621 = vsub.f32 2.0, %v620
      %v622 = vmul.f32 %v619, %v621
      %v623 = vmul.f32 %v615, %v622
      %626 = vrot.lane.b32.xlu0 %v571, 104
      %v627 = vpop.permute.xlu0 %626
      %628 = vrot.lane.b32.xlu0 %v572, 104
      %v629 = vpop.permute.xlu0 %628
      %v633 = vsel %vm343, %v623, 0
      %635 = vmatpush.msra.mxu0 0.0
      %636 = vmatpush.msra.mxu0 0.0
      %637 = vmatpush.msra.mxu0 0.0
      %638 = vmatpush.msra.mxu0 0.0
      %639 = vmatpush.msra.mxu0 0.0
      %640 = vmatpush.msra.mxu0 0.0
      %641 = vmatpush.msra.mxu0 0.0
      %642 = vmatpush.msra.mxu0 0.0
      %643 = vmatpush.msra.mxu0 0.0
      %644 = vmatpush.msra.mxu0 0.0
      %645 = vmatpush.msra.mxu0 0.0
      %646 = vmatpush.msra.mxu0 0.0
      %647 = vmatpush.msra.mxu0 0.0
      %648 = vmatpush.msra.mxu0 0.0
      %649 = vmatpush.msra.mxu0 %v629
      %650 = vmatpush.msra.mxu0 %v627
      %651 = vmatmul.f32.gmra.mxu0 %v633
      %v652 = vpop.f32.mrf.mxu0
      %v653 = vadd.f32 0.0, %v652
      %654 = vdwg.mxu0
      %656 = vrot.lane.b32.xlu0 %v653, 24
      %v657 = vpop.permute.xlu0 %656
      %vm659 = vcmask 261312
      %660 = vst.msk [vmem:[%s299] sm:$0xff] %vm659, %v657
      %p661 = scmp.lt.s32.totalorder %s19, 1
      %s662 = scalar_select %p661, %s19, 1
      %p663 = scmp.lt.s32.totalorder %s20, 0
      %s664 = scalar_select %p663, %s20, 0
      %s665 = sadd.s32 %s664, %s662
      %s666 = smul.addr %s665, 8
      %s667 = scalar_lea.vmem %s4, %s666
      // Predicated region
      $region37: #{decoder_layer_forward.13} parent=35 // pred_check
        %p668 = pneg %p157
      $region38: #{decoder_layer_forward.13} parent=35 // pred_check_branch
        %670 = sbr.rel (%p668) target = $region40
      $region39: #{decoder_layer_forward.13} parent=35 // pred_region
        _
      $region40: #{decoder_layer_forward.13} parent=35 // pred_fallthru
        _
    $region36: #{decoder_layer_forward.13} parent=5 // pred_fallthru
      _
    %p671 = scmp.le.s32.totalorder 2, %s10
    // Predicated region
    $region41: #{decoder_layer_forward.13} parent=5 // pred_check
      %p672 = pneg %p671
    $region42: #{decoder_layer_forward.13} parent=5 // pred_check_branch
      %674 = sbr.rel (%p672) target = $region44
    $region43: #{decoder_layer_forward.13} parent=5 // pred_region
      %s675 = ssub.s32 %s10, 2
      // Predicated region
      $region45: #{decoder_layer_forward.13} parent=43 // pred_check
        %p676 = pneg %p163
      $region46: #{decoder_layer_forward.13} parent=43 // pred_check_branch
        %678 = sbr.rel (%p676) target = $region48
      $region47: #{decoder_layer_forward.13} parent=43 // pred_region
        %p679 = scmp.lt.s32.totalorder %s21, 1
        %s680 = scalar_select %p679, %s21, 1
        %p681 = scmp.lt.s32.totalorder %s22, 0
        %s682 = scalar_select %p681, %s22, 0
        %s683 = sadd.s32 %s682, %s680
        %s684 = smul.addr %s683, 8
        %s685 = scalar_lea.vmem %s4, %s684
      $region48: #{decoder_layer_forward.13} parent=43 // pred_fallthru
        _
    $region44: #{decoder_layer_forward.13} parent=5 // pred_fallthru
      _
  $region6: #{decoder_layer_forward.13} parent=0 // loop_footer
    %s14 = sadd.s32 1, %s10
  $region7: #{decoder_layer_forward.13} parent=0 // loop_footer_branch
    %9 = sbr.rel target = $region3
  $region8: #{decoder_layer_forward.13} parent=0 // loop_exit
    _

// kernel: decoder_layer_forward.15
$region0: #{decoder_layer_forward.15}
  #allocation0 [shape = 'u32[]', space=smem, size = 0x4, offset = 0x4, fixed_abs, tag = 'smem constant byte address 0x4 - core index']
  #allocation1 [shape = 'u32[72,128]{1,0:T(1,128)}', space=vmem, size = 0x9000, scoped, tag = 'internal scratch']
  #allocation2 [shape = 'f32[16,32]{1,0:T(8,128)}', space=vmem, size = 0x2000, scoped, tag = 'scratch operand']
  #allocation3 [shape = 'f32[16,32]{1,0:T(8,128)}', space=vmem, size = 0x2000, scoped, tag = 'scratch operand']
  %s0 = inlined_call_operand.vmem [shape: f32[16,32], index: 0, kind: input, shape index: {}]
  %s1 = inlined_call_operand.vmem [shape: f32[1,32], index: 1, kind: input, shape index: {}]
  %s2 = inlined_call_operand.vmem [shape: f32[1,32], index: 2, kind: input, shape index: {}]
  %s3 = inlined_call_operand.vmem [shape: f32[32,64], index: 3, kind: input, shape index: {}]
  %s4 = inlined_call_operand.vmem [shape: f32[1,64], index: 4, kind: input, shape index: {}]
  %s5 = inlined_call_operand.vmem [shape: f32[64,32], index: 5, kind: input, shape index: {}]
  %s6 = inlined_call_operand.vmem [shape: f32[1,32], index: 6, kind: input, shape index: {}]
  %s7 = inlined_call_operand.hbm [shape: f32[16,32], index: 7, kind: output, shape index: {}]
  %s8 = sld [smem:[#allocation0]]
  $region46: #{decoder_layer_forward.15} parent=0
    _
  %s10 = ssub.s32 1, %s8
  %s11 = scalar_select 0, %s10, %s8
  $region1: #{decoder_layer_forward.15} parent=0
    #allocation4 [shape = 'u8[8192]{0}', space=vmem, size = 0x2000, scoped, tag = 'output window, operand 0, single buffered']
    #allocation5 [shape = 's32[1]{0}', space=sflag, size = 0x4, scoped, tag = 'scoped memory for decoder_layer_forward.15']
    %12 = vsyncpa [#allocation5], 0
    // Predicated region
    $region2: #{decoder_layer_forward.15} parent=1 // pred_check
      _
    $region3: #{decoder_layer_forward.15} parent=1 // pred_check_branch
      %14 = sbr.rel (0) target = $region5
    $region4: #{decoder_layer_forward.15} parent=1 // pred_region
      _
    $region5: #{decoder_layer_forward.15} parent=1 // pred_fallthru
      _
    // Predicated region
    $region6: #{decoder_layer_forward.15} parent=1 // pred_check
      _
    $region7: #{decoder_layer_forward.15} parent=1 // pred_check_branch
      %16 = sbr.rel (0) target = $region9
    $region8: #{decoder_layer_forward.15} parent=1 // pred_region
      _
    $region9: #{decoder_layer_forward.15} parent=1 // pred_fallthru
      _
    // Predicated region
    $region10: #{decoder_layer_forward.15} parent=1 // pred_check
      _
    $region11: #{decoder_layer_forward.15} parent=1 // pred_check_branch
      %18 = sbr.rel (0) target = $region13
    $region12: #{decoder_layer_forward.15} parent=1 // pred_region
      _
    $region13: #{decoder_layer_forward.15} parent=1 // pred_fallthru
      _
    // Predicated region
    $region14: #{decoder_layer_forward.15} parent=1 // pred_check
      _
    $region15: #{decoder_layer_forward.15} parent=1 // pred_check_branch
      %20 = sbr.rel (0) target = $region17
    $region16: #{decoder_layer_forward.15} parent=1 // pred_region
      _
    $region17: #{decoder_layer_forward.15} parent=1 // pred_fallthru
      _
    // Predicated region
    $region18: #{decoder_layer_forward.15} parent=1 // pred_check
      _
    $region19: #{decoder_layer_forward.15} parent=1 // pred_check_branch
      %22 = sbr.rel (0) target = $region21
    $region20: #{decoder_layer_forward.15} parent=1 // pred_region
      _
    $region21: #{decoder_layer_forward.15} parent=1 // pred_fallthru
      _
    // Predicated region
    $region22: #{decoder_layer_forward.15} parent=1 // pred_check
      _
    $region23: #{decoder_layer_forward.15} parent=1 // pred_check_branch
      %24 = sbr.rel (0) target = $region25
    $region24: #{decoder_layer_forward.15} parent=1 // pred_region
      _
    $region25: #{decoder_layer_forward.15} parent=1 // pred_fallthru
      _
    // Predicated region
    $region26: #{decoder_layer_forward.15} parent=1 // pred_check
      _
    $region27: #{decoder_layer_forward.15} parent=1 // pred_check_branch
      %26 = sbr.rel (0) target = $region29
    $region28: #{decoder_layer_forward.15} parent=1 // pred_region
      _
    $region29: #{decoder_layer_forward.15} parent=1 // pred_fallthru
      _
    %p27 = scmp.eq.s32.totalorder 0, 0
    // Predicated region
    $region30: #{decoder_layer_forward.15} parent=1 // pred_check
      %p28 = pneg %p27
    $region31: #{decoder_layer_forward.15} parent=1 // pred_check_branch
      %30 = sbr.rel (%p28) target = $region33
    $region32: #{decoder_layer_forward.15} parent=1 // pred_region
      %v31 = vld [vmem:[%s0] sm:$0xff]
      %v32 = vld [vmem:[%s0 + $0x8] sm:$0xff]
      %vm33 = vcmask 261120
      %v34 = vsel %vm33, %v31, 0.0
      %35 = vadd.xlane.f32.xlu0 %v34
      %v36 = vpop.xlane.xlu0 %35
      %v37 = vsel %vm33, %v32, 0.0
      %38 = vadd.xlane.f32.xlu0 %v37
      %v39 = vpop.xlane.xlu0 %38
      %v40 = vrcp.pop 32.0
      %v41 = vmul.f32 32.0, %v40
      %v42 = vsub.f32 1.0, %v41
      %v43 = vmul.f32 %v40, %v42
      %v44 = vadd.f32 %v40, %v43
      %vm45 = vweird.f32 %v40
      %v46 = vsel %vm45, %v40, %v44
      %v47 = vmul.f32 %v36, %v46
      %v48 = vmul.f32 %v39, %v46
      %v49 = vsub.f32 %v31, %v47
      %v50 = vsub.f32 %v32, %v48
      %v51 = vmul.f32 %v49, %v49
      %v52 = vmul.f32 %v50, %v50
      %v53 = vsel %vm33, %v51, 0.0
      %54 = vadd.xlane.f32.xlu0 %v53
      %v55 = vpop.xlane.xlu0 %54
      %v56 = vsel %vm33, %v52, 0.0
      %57 = vadd.xlane.f32.xlu0 %v56
      %v58 = vpop.xlane.xlu0 %57
      %v59 = vrcp.pop 31.0
      %v60 = vmul.f32 31.0, %v59
      %v61 = vsub.f32 1.0, %v60
      %v62 = vmul.f32 %v59, %v61
      %v63 = vadd.f32 %v59, %v62
      %vm64 = vweird.f32 %v59
      %v65 = vsel %vm64, %v59, %v63
      %v66 = vmul.f32 %v55, %v65
      %v67 = vmul.f32 %v58, %v65
      %v68 = vrsqrt.pop %v66
      %v69 = vmul.f32 %v68, %v66
      %v70 = vmul.f32 %v69, %v68
      %v71 = vmul.f32 0.5, %v70
      %v72 = vsub.f32 1.5, %v71
      %v73 = vmul.f32 %v68, %v72
      %v74 = vmul.f32 %v66, %v73
      %vm75 = vcmp.eq.f32.partialorder %v66, inf
      %v76 = vsel %vm75, %v66, %v74
      %vm77 = vcmp.eq.f32.partialorder %v66, 0.0
      %v78 = vand.u32 %v66, 2147483648
      %v79 = vsel %vm77, %v78, %v76
      %v80 = vrsqrt.pop %v67
      %v81 = vmul.f32 %v80, %v67
      %v82 = vmul.f32 %v81, %v80
      %v83 = vmul.f32 0.5, %v82
      %v84 = vsub.f32 1.5, %v83
      %v85 = vmul.f32 %v80, %v84
      %v86 = vmul.f32 %v67, %v85
      %vm87 = vcmp.eq.f32.partialorder %v67, inf
      %v88 = vsel %vm87, %v67, %v86
      %vm89 = vcmp.eq.f32.partialorder %v67, 0.0
      %v90 = vand.u32 %v67, 2147483648
      %v91 = vsel %vm89, %v90, %v88
      %v92 = vld [vmem:[%s1] sm:$0x1]
      %v93 = vadd.f32 %v79, 1e-06
      %v94 = vadd.f32 %v91, 1e-06
      %v95 = vrcp.pop %v93
      %v96 = vmul.f32 %v93, %v95
      %v97 = vsub.f32 1.0, %v96
      %v98 = vmul.f32 %v95, %v97
      %v99 = vadd.f32 %v95, %v98
      %vm100 = vweird.f32 %v93
      %vm101 = vweird.f32 %v95
      %vm102 = vmor %vm100, %vm101
      %v103 = vsel %vm102, %v95, %v99
      %v104 = vand.u32 2147483647, %v93
      %vm105 = vcmp.eq.f32.partialorder %v104, 8.507059e+37
      %v106 = vand.u32 %v93, 2147483648
      %v107 = vor.u32 1.1754944e-38, %v106
      %v108 = vsel %vm105, %v107, %v103
      %v109 = vmul.f32 1.0, %v108
      %v110 = vrcp.pop %v94
      %v111 = vmul.f32 %v94, %v110
      %v112 = vsub.f32 1.0, %v111
      %v113 = vmul.f32 %v110, %v112
      %v114 = vadd.f32 %v110, %v113
      %vm115 = vweird.f32 %v94
      %vm116 = vweird.f32 %v110
      %vm117 = vmor %vm115, %vm116
      %v118 = vsel %vm117, %v110, %v114
      %v119 = vand.u32 2147483647, %v94
      %vm120 = vcmp.eq.f32.partialorder %v119, 8.507059e+37
      %v121 = vand.u32 %v94, 2147483648
      %v122 = vor.u32 1.1754944e-38, %v121
      %v123 = vsel %vm120, %v122, %v118
      %v124 = vmul.f32 1.0, %v123
      %v125 = vmul.f32 %v49, %v109
      %v126 = vmul.f32 %v50, %v124
      %v128 = vperm.slane %v92, 0
      %v130 = vmul.f32 %v128, %v125
      %v131 = vmul.f32 %v128, %v126
      %v132 = vld [vmem:[%s2] sm:$0x1]
      %v134 = vperm.slane %v132, 0
      %v136 = vadd.f32 %v130, %v134
      %v137 = vadd.f32 %v131, %v134
      %138 = vst.msk [vmem:[#allocation2] sm:$0xff] %vm33, %v136
      %139 = vst.msk [vmem:[#allocation2 + $0x8] sm:$0xff] %vm33, %v137
      %140 = vst.msk [vmem:[#allocation3] sm:$0xff] %vm33, 0.0
      %141 = vst.msk [vmem:[#allocation3 + $0x8] sm:$0xff] %vm33, 0.0
    $region33: #{decoder_layer_forward.15} parent=1 // pred_fallthru
      _
    %v142 = vld [vmem:[#allocation2] sm:$0xff]
    %v143 = vld [vmem:[#allocation2 + $0x8] sm:$0xff]
    %v144 = vld [vmem:[%s3] sm:$0xff]
    %v145 = vld [vmem:[%s3 + $0x8] sm:$0xff]
    %v146 = vld [vmem:[%s3 + $0x10] sm:$0xff]
    %v147 = vld [vmem:[%s3 + $0x18] sm:$0xff]
    %v148 = vld [vmem:[%s4] sm:$0x1]
    %v150 = vperm.slane %v148, 0
    %vm152 = vcmask 261120
    %v154 = vsel %vm152, %v142, 0
    %v157 = vsel %vm152, %v143, 0
    %159 = vmatpush.msra.mxu0 0.0
    %160 = vmatpush.msra.mxu0 0.0
    %161 = vmatpush.msra.mxu0 0.0
    %162 = vmatpush.msra.mxu0 0.0
    %163 = vmatpush.msra.mxu0 0.0
    %164 = vmatpush.msra.mxu0 0.0
    %165 = vmatpush.msra.mxu0 0.0
    %166 = vmatpush.msra.mxu0 0.0
    %167 = vmatpush.msra.mxu0 0.0
    %168 = vmatpush.msra.mxu0 0.0
    %169 = vmatpush.msra.mxu0 0.0
    %170 = vmatpush.msra.mxu0 0.0
    %171 = vmatpush.msra.mxu0 %v147
    %172 = vmatpush.msra.mxu0 %v146
    %173 = vmatpush.msra.mxu0 %v145
    %174 = vmatpush.msra.mxu0 %v144
    %175 = vmatmul.f32.gmra.mxu0 %v154
    %v176 = vpop.f32.mrf.mxu0
    %v177 = vadd.f32 %v150, %v176
    %178 = vmatmul.f32.gmra.mxu0 %v157
    %v179 = vpop.f32.mrf.mxu0
    %v180 = vadd.f32 %v150, %v179
    %181 = vdwg.mxu0
    %v182 = vmax.f32 %v177, 0.0
    %v183 = vmax.f32 %v180, 0.0
    %v184 = vld [vmem:[#allocation3] sm:$0xff]
    %v185 = vld [vmem:[#allocation3 + $0x8] sm:$0xff]
    %v186 = vld [vmem:[%s5] sm:$0xff]
    %v187 = vld [vmem:[%s5 + $0x8] sm:$0xff]
    %v188 = vld [vmem:[%s5 + $0x10] sm:$0xff]
    %v189 = vld [vmem:[%s5 + $0x18] sm:$0xff]
    %v190 = vld [vmem:[%s5 + $0x20] sm:$0xff]
    %v191 = vld [vmem:[%s5 + $0x28] sm:$0xff]
    %v192 = vld [vmem:[%s5 + $0x30] sm:$0xff]
    %v193 = vld [vmem:[%s5 + $0x38] sm:$0xff]
    %vm194 = vcmask 523264
    %v196 = vsel %vm194, %v182, 0
    %v199 = vsel %vm194, %v183, 0
    %201 = vmatpush.msra.mxu0 0.0
    %202 = vmatpush.msra.mxu0 0.0
    %203 = vmatpush.msra.mxu0 0.0
    %204 = vmatpush.msra.mxu0 0.0
    %205 = vmatpush.msra.mxu0 0.0
    %206 = vmatpush.msra.mxu0 0.0
    %207 = vmatpush.msra.mxu0 0.0
    %208 = vmatpush.msra.mxu0 0.0
    %209 = vmatpush.msra.mxu0 %v193
    %210 = vmatpush.msra.mxu0 %v192
    %211 = vmatpush.msra.mxu0 %v191
    %212 = vmatpush.msra.mxu0 %v190
    %213 = vmatpush.msra.mxu0 %v189
    %214 = vmatpush.msra.mxu0 %v188
    %215 = vmatpush.msra.mxu0 %v187
    %216 = vmatpush.msra.mxu0 %v186
    %217 = vmatmul.f32.gmra.mxu0 %v196
    %v218 = vpop.f32.mrf.mxu0
    %v219 = vadd.f32 0.0, %v218
    %220 = vmatmul.f32.gmra.mxu0 %v199
    %v221 = vpop.f32.mrf.mxu0
    %v222 = vadd.f32 0.0, %v221
    %223 = vdwg.mxu0
    %v224 = vadd.f32 %v184, %v219
    %v225 = vadd.f32 %v185, %v222
    %226 = vst.msk [vmem:[#allocation3] sm:$0xff] %vm152, %v224
    %227 = vst.msk [vmem:[#allocation3 + $0x8] sm:$0xff] %vm152, %v225
    // Predicated region
    $region34: #{decoder_layer_forward.15} parent=1 // pred_check
      %p228 = pneg %p27
    $region35: #{decoder_layer_forward.15} parent=1 // pred_check_branch
      %230 = sbr.rel (%p228) target = $region37
    $region36: #{decoder_layer_forward.15} parent=1 // pred_region
      %v231 = vld [vmem:[#allocation3] sm:$0xff]
      %v232 = vld [vmem:[#allocation3 + $0x8] sm:$0xff]
      %v233 = vld [vmem:[%s6] sm:$0x1]
      %v235 = vperm.slane %v233, 0
      %v237 = vadd.f32 %v231, %v235
      %v238 = vadd.f32 %v232, %v235
      %v239 = vld [vmem:[%s0] sm:$0xff]
      %v240 = vld [vmem:[%s0 + $0x8] sm:$0xff]
      %v241 = vadd.f32 %v237, %v239
      %v242 = vadd.f32 %v238, %v240
      %243 = vst.msk [vmem:[#allocation4] sm:$0xff] %vm152, %v241
      %244 = vst.msk [vmem:[#allocation4 + $0x8] sm:$0xff] %vm152, %v242
    $region37: #{decoder_layer_forward.15} parent=1 // pred_fallthru
      _
    // Predicated region
    $region38: #{decoder_layer_forward.15} parent=1 // pred_check
      _
    $region39: #{decoder_layer_forward.15} parent=1 // pred_check_branch
      %246 = sbr.rel (0) target = $region41
    $region40: #{decoder_layer_forward.15} parent=1 // pred_region
      %248 = vsyncadd [#allocation5], 0
      %s249 = sshll.u32 [#allocation4], 4
      %s250 = int_to_ptr.vmem [resolvable:$true] %s249
      %s251 = sshll.u32 %s7, 4
      %s252 = int_to_ptr.hbm [resolvable:$true] %s251
      %257 = dma.vmem_to_hbm [thread:$0]  %s250, 256, %s252, [#allocation5], 128, 128, 8
    $region41: #{decoder_layer_forward.15} parent=1 // pred_fallthru
      _
    // Predicated region
    $region42: #{decoder_layer_forward.15} parent=1 // pred_check
      _
    $region43: #{decoder_layer_forward.15} parent=1 // pred_check_branch
      %259 = sbr.rel (0) target = $region45
    $region44: #{decoder_layer_forward.15} parent=1 // pred_region
      %261 = dma.done [#allocation5], 256
    $region45: #{decoder_layer_forward.15} parent=1 // pred_fallthru
      _
    %262 = vsyncpa [#allocation5], 1

</llo_original>
